<compile_context>
chip_gen: v7x
topology: tpu7x:2x2x1
jax: 0.10.0
libtpu: 0.0.40
codegen_flags: <defaults>
</compile_context>

<pallas_src>
import functools
import math

import jax
import jax.numpy as jnp
import numpy as np
from jax.experimental import pallas as pl
from jax.experimental.pallas import tpu as pltpu

NEG_INF = -1e20  # ParlAI's neginf() for float32


# ---------------------------------------------------------------------------
# Fused encoder kernel: all layers + masked mean pool in one pallas_call
# ---------------------------------------------------------------------------
def fused_encoder_kernel(x_ref, bias_ref,
                         wqkv_ref, bqkv_ref, wo_ref, bo_ref,
                         g1_ref, be1_ref, w1_ref, b1_ref, w2_ref, b2_ref,
                         g2_ref, be2_ref,
                         *out_and_scratch, n_heads, want_full):
    if want_full:
        out_ref, pool_ref, act_ref = out_and_scratch
    else:
        out_ref = None
        pool_ref, act_ref = out_and_scratch

    layer = pl.program_id(1)
    n_layers = pl.num_programs(1)

    # Layer 0: load the embedded (already padding-masked) activation into the
    # VMEM-resident carry.  Subsequent layers read the carry only.
    @pl.when(layer == 0)
    def _():
        act_ref[...] = x_ref[...]

    x = act_ref[...]                         # (Bt, S, D) f32
    Bt, S, D = x.shape
    H = n_heads
    Dh = D // H

    bias = bias_ref[...]                     # (Bt, 1, S): 0 where valid, NEG_INF at pads

    xf = x.reshape(Bt * S, D)                # fill the MXU M dimension
    xb = xf.astype(jnp.bfloat16)

    # --- fused QKV projection: one full-width (D, 3D) matmul ------------------
    # (1/sqrt(Dh) is pre-folded into the Q slice of wqkv / bqkv.)
    qkv = jnp.dot(xb, wqkv_ref[0], preferred_element_type=jnp.float32) + bqkv_ref[0]

    # --- per-head attention scores / PV (inherently head-local) ---------------
    head_outs = []
    for h in range(H):                       # static unroll over heads
        qh = qkv[:, h * Dh:(h + 1) * Dh].reshape(Bt, S, Dh)
        kh = qkv[:, D + h * Dh:D + (h + 1) * Dh].reshape(Bt, S, Dh)
        vh = qkv[:, 2 * D + h * Dh:2 * D + (h + 1) * Dh].reshape(Bt, S, Dh)

        s = jnp.einsum('bqe,bke->bqk', qh.astype(jnp.bfloat16),
                       kh.astype(jnp.bfloat16),
                       preferred_element_type=jnp.float32)
        s = s + bias                         # additive key mask, lane-dense over S_k
        s = s - jnp.max(s, axis=-1, keepdims=True)
        p = jnp.exp(s)
        p = p * pl.reciprocal(jnp.sum(p, axis=-1, keepdims=True), approx=True)

        a = jnp.einsum('bqk,bke->bqe', p.astype(jnp.bfloat16),
                       vh.astype(jnp.bfloat16),
                       preferred_element_type=jnp.float32)
        head_outs.append(a)

    # --- single full-width output projection on concatenated heads ------------
    attn = jnp.concatenate(head_outs, axis=-1).reshape(Bt * S, D)
    attn = jnp.dot(attn.astype(jnp.bfloat16), wo_ref[0],
                   preferred_element_type=jnp.float32) + bo_ref[0]

    # residual + LayerNorm 1 (single-pass stats; dropout is identity)
    xf = xf + attn
    mu = jnp.mean(xf, axis=-1, keepdims=True)
    ms = jnp.mean(xf * xf, axis=-1, keepdims=True)
    rstd = jax.lax.rsqrt(jnp.maximum(ms - mu * mu, 0.0) + 1e-5)
    xf = (xf - mu) * rstd * g1_ref[0] + be1_ref[0]

    # --- FFN -------------------------------------------------------------------
    hdn = jnp.dot(xf.astype(jnp.bfloat16), w1_ref[0],
                  preferred_element_type=jnp.float32) + b1_ref[0]
    hdn = jnp.maximum(hdn, 0.0)
    y = jnp.dot(hdn.astype(jnp.bfloat16), w2_ref[0],
                preferred_element_type=jnp.float32) + b2_ref[0]

    # residual + LayerNorm 2
    xf = xf + y
    mu = jnp.mean(xf, axis=-1, keepdims=True)
    ms = jnp.mean(xf * xf, axis=-1, keepdims=True)
    rstd = jax.lax.rsqrt(jnp.maximum(ms - mu * mu, 0.0) + 1e-5)
    xf = (xf - mu) * rstd * g2_ref[0] + be2_ref[0]

    x = xf.reshape(Bt, S, D)
    act_ref[...] = x                          # carry to next layer

    # Last layer: apply the row mask, write outputs, fused masked mean pool.
    @pl.when(layer == n_layers - 1)
    def _():
        mask_lane = (bias == 0.0).astype(jnp.float32)           # (Bt, 1, S)
        mrow = mask_lane.reshape(Bt, S, 1)                      # (Bt, S, 1)
        xm = x * mrow                                           # zero padded rows
        cnt = jnp.maximum(jnp.sum(mask_lane, axis=-1, keepdims=True), 1e-7)  # (Bt,1,1)
        pool_ref[...] = jnp.sum(xm, axis=1, keepdims=True) / cnt             # (Bt,1,D)
        if want_full:
            out_ref[...] = xm


# ---------------------------------------------------------------------------
# Wrapper around pallas_call
# ---------------------------------------------------------------------------
def run_fused_encoder(x, bias, packed, n_heads, want_full):
    B, S, D = x.shape
    L = packed['wqkv'].shape[0]
    # Split the batch so the "parallel" grid axis has >= 2 programs (v7x megacore).
    Bt = B // 2 if (B % 2 == 0 and B >= 2) else B

    kernel = functools.partial(fused_encoder_kernel, n_heads=n_heads,
                               want_full=want_full)

    weight_names = ['wqkv', 'bqkv', 'wo', 'bo', 'g1', 'be1',
                    'w1', 'b1', 'w2', 'b2', 'g2', 'be2']
    weights = [packed[n] for n in weight_names]

    def wspec(arr):
        shp = (1,) + arr.shape[1:]
        nd = len(shp)
        return pl.BlockSpec(shp, lambda b, l, nd=nd: (l,) + (0,) * (nd - 1))

    def build_in_specs(single_buffer_invariants):
        kw = {}
        if single_buffer_invariants:
            # x / bias are layer-invariant: a second pipeline buffer is wasted VMEM.
            kw = dict(pipeline_mode=pl.Buffered(1))
        specs = [pl.BlockSpec((Bt, S, D), lambda b, l: (b, 0, 0), **kw),
                 pl.BlockSpec((Bt, 1, S), lambda b, l: (b, 0, 0), **kw)]
        specs += [wspec(w) for w in weights]
        return specs

    if want_full:
        out_shape = (jax.ShapeDtypeStruct((B, S, D), jnp.float32),
                     jax.ShapeDtypeStruct((B, 1, D), jnp.float32))
        out_specs = [pl.BlockSpec((Bt, S, D), lambda b, l: (b, 0, 0)),
                     pl.BlockSpec((Bt, 1, D), lambda b, l: (b, 0, 0))]
    else:
        out_shape = jax.ShapeDtypeStruct((B, 1, D), jnp.float32)
        out_specs = pl.BlockSpec((Bt, 1, D), lambda b, l: (b, 0, 0))

    def _call(single_buffer_invariants):
        res = pl.pallas_call(
            kernel,
            out_shape=out_shape,
            grid_spec=pltpu.PrefetchScalarGridSpec(
                num_scalar_prefetch=0,
                grid=(B // Bt, L),                  # layer axis last (VMEM-carried activation)
                in_specs=build_in_specs(single_buffer_invariants),
                out_specs=out_specs,
                scratch_shapes=[pltpu.VMEM((Bt, S, D), jnp.float32)],
            ),
            compiler_params=pltpu.CompilerParams(
                dimension_semantics=("parallel", "arbitrary"),
                vmem_limit_bytes=48 * 1024 * 1024),
        )(x, bias, *weights)
        return jax.block_until_ready(res)

    try:
        return _call(True)
    except Exception:
        # Fallback for jax builds without BlockSpec pipeline_mode / pl.Buffered.
        return _call(False)


# ---------------------------------------------------------------------------
# Parameter construction (deterministic, synthetic) and packing
# ---------------------------------------------------------------------------
def create_position_codes(n_pos, dim):
    pe = np.array(
        [[pos / np.power(10000, 2 * j / dim) for j in range(dim // 2)]
         for pos in range(n_pos)], dtype=np.float32)
    out = np.zeros((n_pos, dim), dtype=np.float32)
    out[:, 0::2] = np.sin(pe)
    out[:, 1::2] = np.cos(pe)
    return jnp.asarray(out)


def init_layer_params(key, dim, ffn_dim):
    ks = jax.random.split(key, 6)

    def xavier(k, shape):
        fan_in, fan_out = shape
        std = math.sqrt(2.0 / (fan_in + fan_out))
        return (std * jax.random.normal(k, shape)).astype(jnp.float32)

    def xavier_uniform(k, shape):
        fan_in, fan_out = shape
        a = math.sqrt(6.0 / (fan_in + fan_out))
        return jax.random.uniform(k, shape, jnp.float32, -a, a)

    z_d = jnp.zeros((1, dim), jnp.float32)
    z_f = jnp.zeros((1, ffn_dim), jnp.float32)
    return {
        'wq': xavier(ks[0], (dim, dim)), 'bq': z_d,
        'wk': xavier(ks[1], (dim, dim)), 'bk': z_d,
        'wv': xavier(ks[2], (dim, dim)), 'bv': z_d,
        'wo': xavier(ks[3], (dim, dim)), 'bo': z_d,
        'g1': jnp.ones((1, dim), jnp.float32), 'be1': z_d,
        'w1': xavier_uniform(ks[4], (dim, ffn_dim)), 'b1': z_f,
        'w2': xavier_uniform(ks[5], (ffn_dim, dim)), 'b2': z_d,
        'g2': jnp.ones((1, dim), jnp.float32), 'be2': z_d,
    }


def pack_layer_params(layer_params, n_heads):
    """Stack per-layer weights with a leading L dim, fuse Q/K/V into one (D,3D)
    weight (1/sqrt(Dh) folded into the Q slice), and cast matmul weights to bf16."""
    D = layer_params[0]['wq'].shape[0]
    Dh = D // n_heads
    scale = math.sqrt(Dh)

    def stack(name):
        return jnp.stack([lp[name] for lp in layer_params], axis=0)

    wqkv = jnp.concatenate([stack('wq') / scale, stack('wk'), stack('wv')],
                           axis=-1)                                   # (L, D, 3D)
    bqkv = jnp.concatenate([stack('bq') / scale, stack('bk'), stack('bv')],
                           axis=-1)                                   # (L, 1, 3D)
    return {
        'wqkv': wqkv.astype(jnp.bfloat16),
        'bqkv': bqkv.astype(jnp.float32),
        'wo': stack('wo').astype(jnp.bfloat16),
        'bo': stack('bo').astype(jnp.float32),
        'g1': stack('g1'), 'be1': stack('be1'),
        'w1': stack('w1').astype(jnp.bfloat16), 'b1': stack('b1'),
        'w2': stack('w2').astype(jnp.bfloat16), 'b2': stack('b2'),
        'g2': stack('g2'), 'be2': stack('be2'),
    }


# ---------------------------------------------------------------------------
# Full TransformerEncoder forward
# ---------------------------------------------------------------------------
def transformer_encoder_forward(tokens, params, *, padding_idx=0,
                                embeddings_scale=False, reduction=True):
    emb = params['embeddings']               # (V, D)
    pos_emb = params['position_embeddings']  # (P, D)
    B = tokens.shape[0]
    D = emb.shape[1]

    mask = (tokens != padding_idx)                                    # (B, S) bool
    positions = jnp.maximum(jnp.cumsum(mask.astype(jnp.int32), axis=1) - 1, 0)

    tensor = jnp.take(emb, tokens, axis=0)                            # (B, S, D)
    if embeddings_scale:
        tensor = tensor * math.sqrt(D)
    tensor = tensor + jnp.take(pos_emb, positions, axis=0)
    # dropout -> identity
    mask_f = mask.astype(jnp.float32)
    tensor = tensor * mask_f[..., None]

    bias = (1.0 - mask_f)[:, None, :] * NEG_INF                       # (B, 1, S) additive

    if reduction:
        pooled = run_fused_encoder(tensor, bias, params['packed'],
                                   params['n_heads'], want_full=False)
        return pooled.reshape(B, D)
    else:
        full, _pooled = run_fused_encoder(tensor, bias, params['packed'],
                                          params['n_heads'], want_full=True)
        return full, mask


# ---------------------------------------------------------------------------
if __name__ == "__main__":
    # small config consistent with the module
    n_heads = 2
    n_layers = 2
    embedding_size = 32
    ffn_size = 64
    vocab_size = 50
    n_positions = 64
    batch, seq = 2, 8
    padding_idx = 0

    key = jax.random.PRNGKey(0)
    k_emb, k_tok, *k_layers = jax.random.split(key, 2 + n_layers)

    # token embedding ~ N(0, D^-0.5), padding row zeroed
    emb = (embedding_size ** -0.5) * jax.random.normal(
        k_emb, (vocab_size, embedding_size), jnp.float32)
    emb = emb.at[padding_idx].set(0.0)

    layer_params = [init_layer_params(k_layers[i], embedding_size, ffn_size)
                    for i in range(n_layers)]

    params = {
        'n_heads': n_heads,
        'embeddings': emb,
        'position_embeddings': create_position_codes(n_positions, embedding_size),
        'packed': pack_layer_params(layer_params, n_heads),
    }

    tokens = jax.random.randint(k_tok, (batch, seq), 1, vocab_size, jnp.int32)
    tokens = tokens.at[0, 6:].set(padding_idx)   # some padding to exercise the mask
    tokens = tokens.at[1, 4:].set(padding_idx)

    # reduction=True: pooled-only kernel variant (no full-sequence writeback)
    pooled = transformer_encoder_forward(tokens, params,
                                         padding_idx=padding_idx,
                                         embeddings_scale=False,
                                         reduction=True)
    pooled = jax.block_until_ready(pooled)
    assert pooled.shape == (batch, embedding_size)
    assert bool(jnp.all(jnp.isfinite(pooled)))

    # reduction=False: full-sequence output variant
    full, out_mask = transformer_encoder_forward(tokens, params,
                                                 padding_idx=padding_idx,
                                                 embeddings_scale=False,
                                                 reduction=False)
    full = jax.block_until_ready(full)
    assert full.shape == (batch, seq, embedding_size)
    assert bool(jnp.all(jnp.isfinite(full)))
    # padded rows must be zeroed, matching ParlAI
    assert bool(jnp.all(jnp.abs(full[0, 6:]) == 0.0))

    print("KERNEL_OK")
</pallas_src>

<mosaic_0001>
module attributes {stable_mosaic.version = 11 : i64} {
  func.func @fused_encoder_kernel(%arg0: i32, %arg1: i32, %arg2: memref<1x8x32xf32, #tpu.memory_space<vmem>>, %arg3: memref<1x1x8xf32, #tpu.memory_space<vmem>>, %arg4: memref<1x32x96xbf16, #tpu.memory_space<vmem>>, %arg5: memref<1x1x96xf32, #tpu.memory_space<vmem>>, %arg6: memref<1x32x32xbf16, #tpu.memory_space<vmem>>, %arg7: memref<1x1x32xf32, #tpu.memory_space<vmem>>, %arg8: memref<1x1x32xf32, #tpu.memory_space<vmem>>, %arg9: memref<1x1x32xf32, #tpu.memory_space<vmem>>, %arg10: memref<1x32x64xbf16, #tpu.memory_space<vmem>>, %arg11: memref<1x1x64xf32, #tpu.memory_space<vmem>>, %arg12: memref<1x64x32xbf16, #tpu.memory_space<vmem>>, %arg13: memref<1x1x32xf32, #tpu.memory_space<vmem>>, %arg14: memref<1x1x32xf32, #tpu.memory_space<vmem>>, %arg15: memref<1x1x32xf32, #tpu.memory_space<vmem>>, %arg16: memref<1x1x32xf32, #tpu.memory_space<vmem>>, %arg17: memref<1x8x32xf32, #tpu.memory_space<vmem>>) attributes {dimension_semantics = [#tpu.dimension_semantics<parallel>, #tpu.dimension_semantics<arbitrary>], iteration_bounds = array<i64: 2, 2>, scalar_prefetch = 0 : i64, scratch_operands = 1 : i64, tpu.core_type = #tpu.core_type<tc>, window_params = [{pipeline_mode = #tpu.pipeline_mode<synchronous>, transform_indices = @transform_0, window_bounds = array<i64: 1, 8, 32>}, {pipeline_mode = #tpu.pipeline_mode<synchronous>, transform_indices = @transform_1, window_bounds = array<i64: 1, 1, 8>}, {transform_indices = @transform_2, window_bounds = array<i64: 1, 32, 96>}, {transform_indices = @transform_3, window_bounds = array<i64: 1, 1, 96>}, {transform_indices = @transform_4, window_bounds = array<i64: 1, 32, 32>}, {transform_indices = @transform_5, window_bounds = array<i64: 1, 1, 32>}, {transform_indices = @transform_6, window_bounds = array<i64: 1, 1, 32>}, {transform_indices = @transform_7, window_bounds = array<i64: 1, 1, 32>}, {transform_indices = @transform_8, window_bounds = array<i64: 1, 32, 64>}, {transform_indices = @transform_9, window_bounds = array<i64: 1, 1, 64>}, {transform_indices = @transform_10, window_bounds = array<i64: 1, 64, 32>}, {transform_indices = @transform_11, window_bounds = array<i64: 1, 1, 32>}, {transform_indices = @transform_12, window_bounds = array<i64: 1, 1, 32>}, {transform_indices = @transform_13, window_bounds = array<i64: 1, 1, 32>}, {transform_indices = @transform_14, window_bounds = array<i64: 1, 1, 32>}]} {
    %c0_i32 = arith.constant 0 : i32
    %0 = arith.cmpi eq, %arg1, %c0_i32 : i32
    %1 = arith.extui %0 : i1 to i32
    %c0_i32_0 = arith.constant 0 : i32
    %2 = arith.cmpi ne, %1, %c0_i32_0 : i32
    scf.if %2 {
      %c0_70 = arith.constant 0 : index
      %c0_71 = arith.constant 0 : index
      %c0_72 = arith.constant 0 : index
      %153 = vector.load %arg2[%c0_70, %c0_71, %c0_72] : memref<1x8x32xf32, #tpu.memory_space<vmem>>, vector<1x8x32xf32>
      %c0_73 = arith.constant 0 : index
      %c0_74 = arith.constant 0 : index
      %c0_75 = arith.constant 0 : index
      %154 = vector.load %arg17[%c0_73, %c0_74, %c0_75] : memref<1x8x32xf32, #tpu.memory_space<vmem>>, vector<1x8x32xf32>
      tpu.vector_store %arg17[%c0_73, %c0_74, %c0_75], %153 {strides = array<i32>} : memref<1x8x32xf32, #tpu.memory_space<vmem>>, vector<1x8x32xf32>,
    } else {
    }
    %c0 = arith.constant 0 : index
    %c0_1 = arith.constant 0 : index
    %c0_2 = arith.constant 0 : index
    %3 = vector.load %arg17[%c0, %c0_1, %c0_2] : memref<1x8x32xf32, #tpu.memory_space<vmem>>, vector<1x8x32xf32>
    %c0_3 = arith.constant 0 : index
    %c0_4 = arith.constant 0 : index
    %c0_5 = arith.constant 0 : index
    %4 = vector.load %arg3[%c0_3, %c0_4, %c0_5] : memref<1x1x8xf32, #tpu.memory_space<vmem>>, vector<1x1x8xf32>
    %5 = vector.shape_cast %3 : vector<1x8x32xf32> to vector<8x32xf32>
    %6 = arith.truncf %5 : vector<8x32xf32> to vector<8x32xbf16>
    %c0_6 = arith.constant 0 : index
    %c0_7 = arith.constant 0 : index
    %c0_8 = arith.constant 0 : index
    %7 = vector.load %arg4[%c0_6, %c0_7, %c0_8] : memref<1x32x96xbf16, #tpu.memory_space<vmem>>, vector<1x32x96xbf16>
    %8 = vector.shape_cast %7 : vector<1x32x96xbf16> to vector<32x96xbf16>
    %cst = arith.constant dense<0.000000e+00> : vector<8x96xf32>
    %9 = tpu.matmul %6, %8, %cst {dimension_numbers = #tpu.dot_dimension_numbers<[1], [0], [0], [1], [0, 0, 1, 1], [], []>} : vector<8x32xbf16>, vector<32x96xbf16>, vector<8x96xf32> -> vector<8x96xf32>
    %c0_9 = arith.constant 0 : index
    %c0_10 = arith.constant 0 : index
    %c0_11 = arith.constant 0 : index
    %10 = vector.load %arg5[%c0_9, %c0_10, %c0_11] : memref<1x1x96xf32, #tpu.memory_space<vmem>>, vector<1x1x96xf32>
    %11 = vector.shape_cast %10 : vector<1x1x96xf32> to vector<1x96xf32>
    %12 = vector.broadcast %11 : vector<1x96xf32> to vector<8x96xf32>
    %13 = arith.addf %9, %12 : vector<8x96xf32>
    %14 = vector.extract_strided_slice %13 {offsets = [0, 0], sizes = [8, 16], strides = [1, 1]} : vector<8x96xf32> to vector<8x16xf32>
    %15 = vector.shape_cast %14 : vector<8x16xf32> to vector<1x8x16xf32>
    %16 = vector.extract_strided_slice %13 {offsets = [0, 32], sizes = [8, 16], strides = [1, 1]} : vector<8x96xf32> to vector<8x16xf32>
    %17 = vector.shape_cast %16 : vector<8x16xf32> to vector<1x8x16xf32>
    %18 = vector.extract_strided_slice %13 {offsets = [0, 64], sizes = [8, 16], strides = [1, 1]} : vector<8x96xf32> to vector<8x16xf32>
    %19 = vector.shape_cast %18 : vector<8x16xf32> to vector<1x8x16xf32>
    %20 = arith.truncf %15 : vector<1x8x16xf32> to vector<1x8x16xbf16>
    %21 = arith.truncf %17 : vector<1x8x16xf32> to vector<1x8x16xbf16>
    "tpu.trace_start"() <{level = 10 : i32, message = "bqe,bke->bqk"}> : () -> ()
    %cst_12 = arith.constant dense<0.000000e+00> : vector<1x8x8xf32>
    %22 = tpu.matmul %20, %21, %cst_12 {dimension_numbers = #tpu.dot_dimension_numbers<[2], [2], [1], [1], [0, 0, 0, 1, 1, 1], [0], [0]>} : vector<1x8x16xbf16>, vector<1x8x16xbf16>, vector<1x8x8xf32> -> vector<1x8x8xf32>
    "tpu.trace_stop"() : () -> ()
    %23 = vector.broadcast %4 : vector<1x1x8xf32> to vector<1x8x8xf32>
    %24 = arith.addf %22, %23 : vector<1x8x8xf32>
    %cst_13 = arith.constant dense<0xFF800000> : vector<1x8xf32>
    %25 = vector.multi_reduction <maximumf>, %24, %cst_13 [2] : vector<1x8x8xf32> to vector<1x8xf32>
    %26 = vector.shape_cast %25 : vector<1x8xf32> to vector<1x8x1xf32>
    %27 = vector.broadcast %26 : vector<1x8x1xf32> to vector<1x8x8xf32>
    %28 = arith.subf %24, %27 : vector<1x8x8xf32>
    %29 = math.exp %28 : vector<1x8x8xf32>
    %cst_14 = arith.constant dense<0.000000e+00> : vector<1x8xf32>
    %30 = vector.multi_reduction <add>, %29, %cst_14 [2] : vector<1x8x8xf32> to vector<1x8xf32>
    %31 = vector.shape_cast %30 : vector<1x8xf32> to vector<1x8x1xf32>
    %32 = tpu.reciprocal %31 {approx = true} : vector<1x8x1xf32> -> vector<1x8x1xf32>
    %33 = vector.broadcast %32 : vector<1x8x1xf32> to vector<1x8x8xf32>
    %34 = arith.mulf %29, %33 : vector<1x8x8xf32>
    %35 = arith.truncf %34 : vector<1x8x8xf32> to vector<1x8x8xbf16>
    %36 = arith.truncf %19 : vector<1x8x16xf32> to vector<1x8x16xbf16>
    "tpu.trace_start"() <{level = 10 : i32, message = "bqk,bke->bqe"}> : () -> ()
    %cst_15 = arith.constant dense<0.000000e+00> : vector<1x8x16xf32>
    %37 = tpu.matmul %35, %36, %cst_15 {dimension_numbers = #tpu.dot_dimension_numbers<[2], [1], [1], [2], [0, 0, 0, 1, 1, 2], [0], [0]>} : vector<1x8x8xbf16>, vector<1x8x16xbf16>, vector<1x8x16xf32> -> vector<1x8x16xf32>
    "tpu.trace_stop"() : () -> ()
    %38 = vector.extract_strided_slice %13 {offsets = [0, 16], sizes = [8, 16], strides = [1, 1]} : vector<8x96xf32> to vector<8x16xf32>
    %39 = vector.shape_cast %38 : vector<8x16xf32> to vector<1x8x16xf32>
    %40 = vector.extract_strided_slice %13 {offsets = [0, 48], sizes = [8, 16], strides = [1, 1]} : vector<8x96xf32> to vector<8x16xf32>
    %41 = vector.shape_cast %40 : vector<8x16xf32> to vector<1x8x16xf32>
    %42 = vector.extract_strided_slice %13 {offsets = [0, 80], sizes = [8, 16], strides = [1, 1]} : vector<8x96xf32> to vector<8x16xf32>
    %43 = vector.shape_cast %42 : vector<8x16xf32> to vector<1x8x16xf32>
    %44 = arith.truncf %39 : vector<1x8x16xf32> to vector<1x8x16xbf16>
    %45 = arith.truncf %41 : vector<1x8x16xf32> to vector<1x8x16xbf16>
    "tpu.trace_start"() <{level = 10 : i32, message = "bqe,bke->bqk"}> : () -> ()
    %cst_16 = arith.constant dense<0.000000e+00> : vector<1x8x8xf32>
    %46 = tpu.matmul %44, %45, %cst_16 {dimension_numbers = #tpu.dot_dimension_numbers<[2], [2], [1], [1], [0, 0, 0, 1, 1, 1], [0], [0]>} : vector<1x8x16xbf16>, vector<1x8x16xbf16>, vector<1x8x8xf32> -> vector<1x8x8xf32>
    "tpu.trace_stop"() : () -> ()
    %47 = vector.broadcast %4 : vector<1x1x8xf32> to vector<1x8x8xf32>
    %48 = arith.addf %46, %47 : vector<1x8x8xf32>
    %cst_17 = arith.constant dense<0xFF800000> : vector<1x8xf32>
    %49 = vector.multi_reduction <maximumf>, %48, %cst_17 [2] : vector<1x8x8xf32> to vector<1x8xf32>
    %50 = vector.shape_cast %49 : vector<1x8xf32> to vector<1x8x1xf32>
    %51 = vector.broadcast %50 : vector<1x8x1xf32> to vector<1x8x8xf32>
    %52 = arith.subf %48, %51 : vector<1x8x8xf32>
    %53 = math.exp %52 : vector<1x8x8xf32>
    %cst_18 = arith.constant dense<0.000000e+00> : vector<1x8xf32>
    %54 = vector.multi_reduction <add>, %53, %cst_18 [2] : vector<1x8x8xf32> to vector<1x8xf32>
    %55 = vector.shape_cast %54 : vector<1x8xf32> to vector<1x8x1xf32>
    %56 = tpu.reciprocal %55 {approx = true} : vector<1x8x1xf32> -> vector<1x8x1xf32>
    %57 = vector.broadcast %56 : vector<1x8x1xf32> to vector<1x8x8xf32>
    %58 = arith.mulf %53, %57 : vector<1x8x8xf32>
    %59 = arith.truncf %58 : vector<1x8x8xf32> to vector<1x8x8xbf16>
    %60 = arith.truncf %43 : vector<1x8x16xf32> to vector<1x8x16xbf16>
    "tpu.trace_start"() <{level = 10 : i32, message = "bqk,bke->bqe"}> : () -> ()
    %cst_19 = arith.constant dense<0.000000e+00> : vector<1x8x16xf32>
    %61 = tpu.matmul %59, %60, %cst_19 {dimension_numbers = #tpu.dot_dimension_numbers<[2], [1], [1], [2], [0, 0, 0, 1, 1, 2], [0], [0]>} : vector<1x8x8xbf16>, vector<1x8x16xbf16>, vector<1x8x16xf32> -> vector<1x8x16xf32>
    "tpu.trace_stop"() : () -> ()
    %62 = tpu.concatenate %37, %61 in 2 : vector<1x8x16xf32>, vector<1x8x16xf32> -> vector<1x8x32xf32>
    %63 = vector.shape_cast %62 : vector<1x8x32xf32> to vector<8x32xf32>
    %64 = arith.truncf %63 : vector<8x32xf32> to vector<8x32xbf16>
    %c0_20 = arith.constant 0 : index
    %c0_21 = arith.constant 0 : index
    %c0_22 = arith.constant 0 : index
    %65 = vector.load %arg6[%c0_20, %c0_21, %c0_22] : memref<1x32x32xbf16, #tpu.memory_space<vmem>>, vector<1x32x32xbf16>
    %66 = vector.shape_cast %65 : vector<1x32x32xbf16> to vector<32x32xbf16>
    %cst_23 = arith.constant dense<0.000000e+00> : vector<8x32xf32>
    %67 = tpu.matmul %64, %66, %cst_23 {dimension_numbers = #tpu.dot_dimension_numbers<[1], [0], [0], [1], [0, 0, 1, 1], [], []>} : vector<8x32xbf16>, vector<32x32xbf16>, vector<8x32xf32> -> vector<8x32xf32>
    %c0_24 = arith.constant 0 : index
    %c0_25 = arith.constant 0 : index
    %c0_26 = arith.constant 0 : index
    %68 = vector.load %arg7[%c0_24, %c0_25, %c0_26] : memref<1x1x32xf32, #tpu.memory_space<vmem>>, vector<1x1x32xf32>
    %69 = vector.shape_cast %68 : vector<1x1x32xf32> to vector<1x32xf32>
    %70 = vector.broadcast %69 : vector<1x32xf32> to vector<8x32xf32>
    %71 = arith.addf %67, %70 : vector<8x32xf32>
    %72 = arith.addf %5, %71 : vector<8x32xf32>
    %cst_27 = arith.constant dense<0.000000e+00> : vector<8xf32>
    %73 = vector.multi_reduction <add>, %72, %cst_27 [1] : vector<8x32xf32> to vector<8xf32>
    %74 = vector.shape_cast %73 : vector<8xf32> to vector<8x1xf32>
    %cst_28 = arith.constant 3.200000e+01 : f32
    %75 = vector.broadcast %cst_28 : f32 to vector<8x1xf32>
    %76 = arith.divf %74, %75 : vector<8x1xf32>
    %77 = arith.mulf %72, %72 : vector<8x32xf32>
    %cst_29 = arith.constant dense<0.000000e+00> : vector<8xf32>
    %78 = vector.multi_reduction <add>, %77, %cst_29 [1] : vector<8x32xf32> to vector<8xf32>
    %79 = vector.shape_cast %78 : vector<8xf32> to vector<8x1xf32>
    %cst_30 = arith.constant 3.200000e+01 : f32
    %80 = vector.broadcast %cst_30 : f32 to vector<8x1xf32>
    %81 = arith.divf %79, %80 : vector<8x1xf32>
    %82 = arith.mulf %76, %76 : vector<8x1xf32>
    %83 = arith.subf %81, %82 : vector<8x1xf32>
    %cst_31 = arith.constant 0.000000e+00 : f32
    %84 = vector.broadcast %cst_31 : f32 to vector<8x1xf32>
    %85 = arith.maximumf %83, %84 : vector<8x1xf32>
    %cst_32 = arith.constant 9.99999974E-6 : f32
    %86 = vector.broadcast %cst_32 : f32 to vector<8x1xf32>
    %87 = arith.addf %85, %86 : vector<8x1xf32>
    %88 = math.rsqrt %87 : vector<8x1xf32>
    %89 = vector.broadcast %76 : vector<8x1xf32> to vector<8x32xf32>
    %90 = arith.subf %72, %89 : vector<8x32xf32>
    %91 = vector.broadcast %88 : vector<8x1xf32> to vector<8x32xf32>
    %92 = arith.mulf %90, %91 : vector<8x32xf32>
    %c0_33 = arith.constant 0 : index
    %c0_34 = arith.constant 0 : index
    %c0_35 = arith.constant 0 : index
    %93 = vector.load %arg8[%c0_33, %c0_34, %c0_35] : memref<1x1x32xf32, #tpu.memory_space<vmem>>, vector<1x1x32xf32>
    %94 = vector.shape_cast %93 : vector<1x1x32xf32> to vector<1x32xf32>
    %95 = vector.broadcast %94 : vector<1x32xf32> to vector<8x32xf32>
    %96 = arith.mulf %92, %95 : vector<8x32xf32>
    %c0_36 = arith.constant 0 : index
    %c0_37 = arith.constant 0 : index
    %c0_38 = arith.constant 0 : index
    %97 = vector.load %arg9[%c0_36, %c0_37, %c0_38] : memref<1x1x32xf32, #tpu.memory_space<vmem>>, vector<1x1x32xf32>
    %98 = vector.shape_cast %97 : vector<1x1x32xf32> to vector<1x32xf32>
    %99 = vector.broadcast %98 : vector<1x32xf32> to vector<8x32xf32>
    %100 = arith.addf %96, %99 : vector<8x32xf32>
    %101 = arith.truncf %100 : vector<8x32xf32> to vector<8x32xbf16>
    %c0_39 = arith.constant 0 : index
    %c0_40 = arith.constant 0 : index
    %c0_41 = arith.constant 0 : index
    %102 = vector.load %arg10[%c0_39, %c0_40, %c0_41] : memref<1x32x64xbf16, #tpu.memory_space<vmem>>, vector<1x32x64xbf16>
    %103 = vector.shape_cast %102 : vector<1x32x64xbf16> to vector<32x64xbf16>
    %cst_42 = arith.constant dense<0.000000e+00> : vector<8x64xf32>
    %104 = tpu.matmul %101, %103, %cst_42 {dimension_numbers = #tpu.dot_dimension_numbers<[1], [0], [0], [1], [0, 0, 1, 1], [], []>} : vector<8x32xbf16>, vector<32x64xbf16>, vector<8x64xf32> -> vector<8x64xf32>
    %c0_43 = arith.constant 0 : index
    %c0_44 = arith.constant 0 : index
    %c0_45 = arith.constant 0 : index
    %105 = vector.load %arg11[%c0_43, %c0_44, %c0_45] : memref<1x1x64xf32, #tpu.memory_space<vmem>>, vector<1x1x64xf32>
    %106 = vector.shape_cast %105 : vector<1x1x64xf32> to vector<1x64xf32>
    %107 = vector.broadcast %106 : vector<1x64xf32> to vector<8x64xf32>
    %108 = arith.addf %104, %107 : vector<8x64xf32>
    %cst_46 = arith.constant 0.000000e+00 : f32
    %109 = vector.broadcast %cst_46 : f32 to vector<8x64xf32>
    %110 = arith.maximumf %108, %109 : vector<8x64xf32>
    %111 = arith.truncf %110 : vector<8x64xf32> to vector<8x64xbf16>
    %c0_47 = arith.constant 0 : index
    %c0_48 = arith.constant 0 : index
    %c0_49 = arith.constant 0 : index
    %112 = vector.load %arg12[%c0_47, %c0_48, %c0_49] : memref<1x64x32xbf16, #tpu.memory_space<vmem>>, vector<1x64x32xbf16>
    %113 = vector.shape_cast %112 : vector<1x64x32xbf16> to vector<64x32xbf16>
    %cst_50 = arith.constant dense<0.000000e+00> : vector<8x32xf32>
    %114 = tpu.matmul %111, %113, %cst_50 {dimension_numbers = #tpu.dot_dimension_numbers<[1], [0], [0], [1], [0, 0, 1, 1], [], []>} : vector<8x64xbf16>, vector<64x32xbf16>, vector<8x32xf32> -> vector<8x32xf32>
    %c0_51 = arith.constant 0 : index
    %c0_52 = arith.constant 0 : index
    %c0_53 = arith.constant 0 : index
    %115 = vector.load %arg13[%c0_51, %c0_52, %c0_53] : memref<1x1x32xf32, #tpu.memory_space<vmem>>, vector<1x1x32xf32>
    %116 = vector.shape_cast %115 : vector<1x1x32xf32> to vector<1x32xf32>
    %117 = vector.broadcast %116 : vector<1x32xf32> to vector<8x32xf32>
    %118 = arith.addf %114, %117 : vector<8x32xf32>
    %119 = arith.addf %100, %118 : vector<8x32xf32>
    %cst_54 = arith.constant dense<0.000000e+00> : vector<8xf32>
    %120 = vector.multi_reduction <add>, %119, %cst_54 [1] : vector<8x32xf32> to vector<8xf32>
    %121 = vector.shape_cast %120 : vector<8xf32> to vector<8x1xf32>
    %cst_55 = arith.constant 3.200000e+01 : f32
    %122 = vector.broadcast %cst_55 : f32 to vector<8x1xf32>
    %123 = arith.divf %121, %122 : vector<8x1xf32>
    %124 = arith.mulf %119, %119 : vector<8x32xf32>
    %cst_56 = arith.constant dense<0.000000e+00> : vector<8xf32>
    %125 = vector.multi_reduction <add>, %124, %cst_56 [1] : vector<8x32xf32> to vector<8xf32>
    %126 = vector.shape_cast %125 : vector<8xf32> to vector<8x1xf32>
    %cst_57 = arith.constant 3.200000e+01 : f32
    %127 = vector.broadcast %cst_57 : f32 to vector<8x1xf32>
    %128 = arith.divf %126, %127 : vector<8x1xf32>
    %129 = arith.mulf %123, %123 : vector<8x1xf32>
    %130 = arith.subf %128, %129 : vector<8x1xf32>
    %cst_58 = arith.constant 0.000000e+00 : f32
    %131 = vector.broadcast %cst_58 : f32 to vector<8x1xf32>
    %132 = arith.maximumf %130, %131 : vector<8x1xf32>
    %cst_59 = arith.constant 9.99999974E-6 : f32
    %133 = vector.broadcast %cst_59 : f32 to vector<8x1xf32>
    %134 = arith.addf %132, %133 : vector<8x1xf32>
    %135 = math.rsqrt %134 : vector<8x1xf32>
    %136 = vector.broadcast %123 : vector<8x1xf32> to vector<8x32xf32>
    %137 = arith.subf %119, %136 : vector<8x32xf32>
    %138 = vector.broadcast %135 : vector<8x1xf32> to vector<8x32xf32>
    %139 = arith.mulf %137, %138 : vector<8x32xf32>
    %c0_60 = arith.constant 0 : index
    %c0_61 = arith.constant 0 : index
    %c0_62 = arith.constant 0 : index
    %140 = vector.load %arg14[%c0_60, %c0_61, %c0_62] : memref<1x1x32xf32, #tpu.memory_space<vmem>>, vector<1x1x32xf32>
    %141 = vector.shape_cast %140 : vector<1x1x32xf32> to vector<1x32xf32>
    %142 = vector.broadcast %141 : vector<1x32xf32> to vector<8x32xf32>
    %143 = arith.mulf %139, %142 : vector<8x32xf32>
    %c0_63 = arith.constant 0 : index
    %c0_64 = arith.constant 0 : index
    %c0_65 = arith.constant 0 : index
    %144 = vector.load %arg15[%c0_63, %c0_64, %c0_65] : memref<1x1x32xf32, #tpu.memory_space<vmem>>, vector<1x1x32xf32>
    %145 = vector.shape_cast %144 : vector<1x1x32xf32> to vector<1x32xf32>
    %146 = vector.broadcast %145 : vector<1x32xf32> to vector<8x32xf32>
    %147 = arith.addf %143, %146 : vector<8x32xf32>
    %148 = vector.shape_cast %147 : vector<8x32xf32> to vector<1x8x32xf32>
    %c0_66 = arith.constant 0 : index
    %c0_67 = arith.constant 0 : index
    %c0_68 = arith.constant 0 : index
    %149 = vector.load %arg17[%c0_66, %c0_67, %c0_68] : memref<1x8x32xf32, #tpu.memory_space<vmem>>, vector<1x8x32xf32>
    tpu.vector_store %arg17[%c0_66, %c0_67, %c0_68], %148 {strides = array<i32>} : memref<1x8x32xf32, #tpu.memory_space<vmem>>, vector<1x8x32xf32>,
    %c1_i32 = arith.constant 1 : i32
    %150 = arith.cmpi eq, %arg1, %c1_i32 : i32
    %151 = arith.extui %150 : i1 to i32
    %c0_i32_69 = arith.constant 0 : i32
    %152 = arith.cmpi ne, %151, %c0_i32_69 : i32
    scf.if %152 {
      %cst_70 = arith.constant 0.000000e+00 : f32
      %153 = vector.broadcast %cst_70 : f32 to vector<1x1x8xf32>
      %154 = arith.cmpf oeq, %4, %153 : vector<1x1x8xf32>
      %155 = arith.extui %154 : vector<1x1x8xi1> to vector<1x1x8xi32>
      %156 = arith.sitofp %155 : vector<1x1x8xi32> to vector<1x1x8xf32>
      %157 = vector.shape_cast %156 : vector<1x1x8xf32> to vector<1x8x1xf32>
      %158 = vector.broadcast %157 : vector<1x8x1xf32> to vector<1x8x32xf32>
      %159 = arith.mulf %148, %158 : vector<1x8x32xf32>
      %cst_71 = arith.constant dense<0.000000e+00> : vector<1x1xf32>
      %160 = vector.multi_reduction <add>, %156, %cst_71 [2] : vector<1x1x8xf32> to vector<1x1xf32>
      %161 = vector.shape_cast %160 : vector<1x1xf32> to vector<1x1x1xf32>
      %cst_72 = arith.constant 1.000000e-07 : f32
      %162 = vector.broadcast %cst_72 : f32 to vector<1x1x1xf32>
      %163 = arith.maximumf %161, %162 : vector<1x1x1xf32>
      %cst_73 = arith.constant dense<0.000000e+00> : vector<1x32xf32>
      %164 = vector.multi_reduction <add>, %159, %cst_73 [1] : vector<1x8x32xf32> to vector<1x32xf32>
      %165 = vector.shape_cast %164 : vector<1x32xf32> to vector<1x1x32xf32>
      %166 = vector.broadcast %163 : vector<1x1x1xf32> to vector<1x1x32xf32>
      %167 = arith.divf %165, %166 : vector<1x1x32xf32>
      %c0_74 = arith.constant 0 : index
      %c0_75 = arith.constant 0 : index
      %c0_76 = arith.constant 0 : index
      %168 = vector.load %arg16[%c0_74, %c0_75, %c0_76] : memref<1x1x32xf32, #tpu.memory_space<vmem>>, vector<1x1x32xf32>
      tpu.vector_store %arg16[%c0_74, %c0_75, %c0_76], %167 {strides = array<i32>} : memref<1x1x32xf32, #tpu.memory_space<vmem>>, vector<1x1x32xf32>,
    } else {
    }
    return
  }
  func.func @transform_0(%arg0: i32, %arg1: i32) -> (i32, i32, i32) {
    %c0_i32 = arith.constant 0 : i32
    %c0_i32_0 = arith.constant 0 : i32
    %c0_i32_1 = arith.constant 0 : i32
    return %arg0, %c0_i32, %c0_i32_0 : i32, i32, i32
  }
  func.func @transform_1(%arg0: i32, %arg1: i32) -> (i32, i32, i32) {
    %c0_i32 = arith.constant 0 : i32
    %c0_i32_0 = arith.constant 0 : i32
    %c0_i32_1 = arith.constant 0 : i32
    return %arg0, %c0_i32, %c0_i32_0 : i32, i32, i32
  }
  func.func @transform_2(%arg0: i32, %arg1: i32) -> (i32, i32, i32) {
    %c0_i32 = arith.constant 0 : i32
    %c0_i32_0 = arith.constant 0 : i32
    %c0_i32_1 = arith.constant 0 : i32
    return %arg1, %c0_i32, %c0_i32_0 : i32, i32, i32
  }
  func.func @transform_3(%arg0: i32, %arg1: i32) -> (i32, i32, i32) {
    %c0_i32 = arith.constant 0 : i32
    %c0_i32_0 = arith.constant 0 : i32
    %c0_i32_1 = arith.constant 0 : i32
    return %arg1, %c0_i32, %c0_i32_0 : i32, i32, i32
  }
  func.func @transform_4(%arg0: i32, %arg1: i32) -> (i32, i32, i32) {
    %c0_i32 = arith.constant 0 : i32
    %c0_i32_0 = arith.constant 0 : i32
    %c0_i32_1 = arith.constant 0 : i32
    return %arg1, %c0_i32, %c0_i32_0 : i32, i32, i32
  }
  func.func @transform_5(%arg0: i32, %arg1: i32) -> (i32, i32, i32) {
    %c0_i32 = arith.constant 0 : i32
    %c0_i32_0 = arith.constant 0 : i32
    %c0_i32_1 = arith.constant 0 : i32
    return %arg1, %c0_i32, %c0_i32_0 : i32, i32, i32
  }
  func.func @transform_6(%arg0: i32, %arg1: i32) -> (i32, i32, i32) {
    %c0_i32 = arith.constant 0 : i32
    %c0_i32_0 = arith.constant 0 : i32
    %c0_i32_1 = arith.constant 0 : i32
    return %arg1, %c0_i32, %c0_i32_0 : i32, i32, i32
  }
  func.func @transform_7(%arg0: i32, %arg1: i32) -> (i32, i32, i32) {
    %c0_i32 = arith.constant 0 : i32
    %c0_i32_0 = arith.constant 0 : i32
    %c0_i32_1 = arith.constant 0 : i32
    return %arg1, %c0_i32, %c0_i32_0 : i32, i32, i32
  }
  func.func @transform_8(%arg0: i32, %arg1: i32) -> (i32, i32, i32) {
    %c0_i32 = arith.constant 0 : i32
    %c0_i32_0 = arith.constant 0 : i32
    %c0_i32_1 = arith.constant 0 : i32
    return %arg1, %c0_i32, %c0_i32_0 : i32, i32, i32
  }
  func.func @transform_9(%arg0: i32, %arg1: i32) -> (i32, i32, i32) {
    %c0_i32 = arith.constant 0 : i32
    %c0_i32_0 = arith.constant 0 : i32
    %c0_i32_1 = arith.constant 0 : i32
    return %arg1, %c0_i32, %c0_i32_0 : i32, i32, i32
  }
  func.func @transform_10(%arg0: i32, %arg1: i32) -> (i32, i32, i32) {
    %c0_i32 = arith.constant 0 : i32
    %c0_i32_0 = arith.constant 0 : i32
    %c0_i32_1 = arith.constant 0 : i32
    return %arg1, %c0_i32, %c0_i32_0 : i32, i32, i32
  }
  func.func @transform_11(%arg0: i32, %arg1: i32) -> (i32, i32, i32) {
    %c0_i32 = arith.constant 0 : i32
    %c0_i32_0 = arith.constant 0 : i32
    %c0_i32_1 = arith.constant 0 : i32
    return %arg1, %c0_i32, %c0_i32_0 : i32, i32, i32
  }
  func.func @transform_12(%arg0: i32, %arg1: i32) -> (i32, i32, i32) {
    %c0_i32 = arith.constant 0 : i32
    %c0_i32_0 = arith.constant 0 : i32
    %c0_i32_1 = arith.constant 0 : i32
    return %arg1, %c0_i32, %c0_i32_0 : i32, i32, i32
  }
  func.func @transform_13(%arg0: i32, %arg1: i32) -> (i32, i32, i32) {
    %c0_i32 = arith.constant 0 : i32
    %c0_i32_0 = arith.constant 0 : i32
    %c0_i32_1 = arith.constant 0 : i32
    return %arg1, %c0_i32, %c0_i32_0 : i32, i32, i32
  }
  func.func @transform_14(%arg0: i32, %arg1: i32) -> (i32, i32, i32) {
    %c0_i32 = arith.constant 0 : i32
    %c0_i32_0 = arith.constant 0 : i32
    %c0_i32_1 = arith.constant 0 : i32
    return %arg0, %c0_i32, %c0_i32_0 : i32, i32, i32
  }
}

module attributes {stable_mosaic.version = 11 : i64} {
  func.func @fused_encoder_kernel(%arg0: i32, %arg1: i32, %arg2: memref<1x8x32xf32, #tpu.memory_space<vmem>>, %arg3: memref<1x1x8xf32, #tpu.memory_space<vmem>>, %arg4: memref<1x32x96xbf16, #tpu.memory_space<vmem>>, %arg5: memref<1x1x96xf32, #tpu.memory_space<vmem>>, %arg6: memref<1x32x32xbf16, #tpu.memory_space<vmem>>, %arg7: memref<1x1x32xf32, #tpu.memory_space<vmem>>, %arg8: memref<1x1x32xf32, #tpu.memory_space<vmem>>, %arg9: memref<1x1x32xf32, #tpu.memory_space<vmem>>, %arg10: memref<1x32x64xbf16, #tpu.memory_space<vmem>>, %arg11: memref<1x1x64xf32, #tpu.memory_space<vmem>>, %arg12: memref<1x64x32xbf16, #tpu.memory_space<vmem>>, %arg13: memref<1x1x32xf32, #tpu.memory_space<vmem>>, %arg14: memref<1x1x32xf32, #tpu.memory_space<vmem>>, %arg15: memref<1x1x32xf32, #tpu.memory_space<vmem>>, %arg16: memref<1x1x32xf32, #tpu.memory_space<vmem>>, %arg17: memref<1x8x32xf32, #tpu.memory_space<vmem>>) attributes {dimension_semantics = [#tpu.dimension_semantics<parallel>, #tpu.dimension_semantics<arbitrary>], iteration_bounds = array<i64: 2, 2>, scalar_prefetch = 0 : i64, scratch_operands = 1 : i64, tpu.core_type = #tpu.core_type<tc>, window_params = [{transform_indices = @transform_0, window_bounds = array<i64: 1, 8, 32>}, {transform_indices = @transform_1, window_bounds = array<i64: 1, 1, 8>}, {transform_indices = @transform_2, window_bounds = array<i64: 1, 32, 96>}, {transform_indices = @transform_3, window_bounds = array<i64: 1, 1, 96>}, {transform_indices = @transform_4, window_bounds = array<i64: 1, 32, 32>}, {transform_indices = @transform_5, window_bounds = array<i64: 1, 1, 32>}, {transform_indices = @transform_6, window_bounds = array<i64: 1, 1, 32>}, {transform_indices = @transform_7, window_bounds = array<i64: 1, 1, 32>}, {transform_indices = @transform_8, window_bounds = array<i64: 1, 32, 64>}, {transform_indices = @transform_9, window_bounds = array<i64: 1, 1, 64>}, {transform_indices = @transform_10, window_bounds = array<i64: 1, 64, 32>}, {transform_indices = @transform_11, window_bounds = array<i64: 1, 1, 32>}, {transform_indices = @transform_12, window_bounds = array<i64: 1, 1, 32>}, {transform_indices = @transform_13, window_bounds = array<i64: 1, 1, 32>}, {transform_indices = @transform_14, window_bounds = array<i64: 1, 1, 32>}]} {
    %c0_i32 = arith.constant 0 : i32
    %0 = arith.cmpi eq, %arg1, %c0_i32 : i32
    %1 = arith.extui %0 : i1 to i32
    %c0_i32_0 = arith.constant 0 : i32
    %2 = arith.cmpi ne, %1, %c0_i32_0 : i32
    scf.if %2 {
      %c0_70 = arith.constant 0 : index
      %c0_71 = arith.constant 0 : index
      %c0_72 = arith.constant 0 : index
      %153 = vector.load %arg2[%c0_70, %c0_71, %c0_72] : memref<1x8x32xf32, #tpu.memory_space<vmem>>, vector<1x8x32xf32>
      %c0_73 = arith.constant 0 : index
      %c0_74 = arith.constant 0 : index
      %c0_75 = arith.constant 0 : index
      %154 = vector.load %arg17[%c0_73, %c0_74, %c0_75] : memref<1x8x32xf32, #tpu.memory_space<vmem>>, vector<1x8x32xf32>
      tpu.vector_store %arg17[%c0_73, %c0_74, %c0_75], %153 {strides = array<i32>} : memref<1x8x32xf32, #tpu.memory_space<vmem>>, vector<1x8x32xf32>,
    } else {
    }
    %c0 = arith.constant 0 : index
    %c0_1 = arith.constant 0 : index
    %c0_2 = arith.constant 0 : index
    %3 = vector.load %arg17[%c0, %c0_1, %c0_2] : memref<1x8x32xf32, #tpu.memory_space<vmem>>, vector<1x8x32xf32>
    %c0_3 = arith.constant 0 : index
    %c0_4 = arith.constant 0 : index
    %c0_5 = arith.constant 0 : index
    %4 = vector.load %arg3[%c0_3, %c0_4, %c0_5] : memref<1x1x8xf32, #tpu.memory_space<vmem>>, vector<1x1x8xf32>
    %5 = vector.shape_cast %3 : vector<1x8x32xf32> to vector<8x32xf32>
    %6 = arith.truncf %5 : vector<8x32xf32> to vector<8x32xbf16>
    %c0_6 = arith.constant 0 : index
    %c0_7 = arith.constant 0 : index
    %c0_8 = arith.constant 0 : index
    %7 = vector.load %arg4[%c0_6, %c0_7, %c0_8] : memref<1x32x96xbf16, #tpu.memory_space<vmem>>, vector<1x32x96xbf16>
    %8 = vector.shape_cast %7 : vector<1x32x96xbf16> to vector<32x96xbf16>
    %cst = arith.constant dense<0.000000e+00> : vector<8x96xf32>
    %9 = tpu.matmul %6, %8, %cst {dimension_numbers = #tpu.dot_dimension_numbers<[1], [0], [0], [1], [0, 0, 1, 1], [], []>} : vector<8x32xbf16>, vector<32x96xbf16>, vector<8x96xf32> -> vector<8x96xf32>
    %c0_9 = arith.constant 0 : index
    %c0_10 = arith.constant 0 : index
    %c0_11 = arith.constant 0 : index
    %10 = vector.load %arg5[%c0_9, %c0_10, %c0_11] : memref<1x1x96xf32, #tpu.memory_space<vmem>>, vector<1x1x96xf32>
    %11 = vector.shape_cast %10 : vector<1x1x96xf32> to vector<1x96xf32>
    %12 = vector.broadcast %11 : vector<1x96xf32> to vector<8x96xf32>
    %13 = arith.addf %9, %12 : vector<8x96xf32>
    %14 = vector.extract_strided_slice %13 {offsets = [0, 0], sizes = [8, 16], strides = [1, 1]} : vector<8x96xf32> to vector<8x16xf32>
    %15 = vector.shape_cast %14 : vector<8x16xf32> to vector<1x8x16xf32>
    %16 = vector.extract_strided_slice %13 {offsets = [0, 32], sizes = [8, 16], strides = [1, 1]} : vector<8x96xf32> to vector<8x16xf32>
    %17 = vector.shape_cast %16 : vector<8x16xf32> to vector<1x8x16xf32>
    %18 = vector.extract_strided_slice %13 {offsets = [0, 64], sizes = [8, 16], strides = [1, 1]} : vector<8x96xf32> to vector<8x16xf32>
    %19 = vector.shape_cast %18 : vector<8x16xf32> to vector<1x8x16xf32>
    %20 = arith.truncf %15 : vector<1x8x16xf32> to vector<1x8x16xbf16>
    %21 = arith.truncf %17 : vector<1x8x16xf32> to vector<1x8x16xbf16>
    "tpu.trace_start"() <{level = 10 : i32, message = "bqe,bke->bqk"}> : () -> ()
    %cst_12 = arith.constant dense<0.000000e+00> : vector<1x8x8xf32>
    %22 = tpu.matmul %20, %21, %cst_12 {dimension_numbers = #tpu.dot_dimension_numbers<[2], [2], [1], [1], [0, 0, 0, 1, 1, 1], [0], [0]>} : vector<1x8x16xbf16>, vector<1x8x16xbf16>, vector<1x8x8xf32> -> vector<1x8x8xf32>
    "tpu.trace_stop"() : () -> ()
    %23 = vector.broadcast %4 : vector<1x1x8xf32> to vector<1x8x8xf32>
    %24 = arith.addf %22, %23 : vector<1x8x8xf32>
    %cst_13 = arith.constant dense<0xFF800000> : vector<1x8xf32>
    %25 = vector.multi_reduction <maximumf>, %24, %cst_13 [2] : vector<1x8x8xf32> to vector<1x8xf32>
    %26 = vector.shape_cast %25 : vector<1x8xf32> to vector<1x8x1xf32>
    %27 = vector.broadcast %26 : vector<1x8x1xf32> to vector<1x8x8xf32>
    %28 = arith.subf %24, %27 : vector<1x8x8xf32>
    %29 = math.exp %28 : vector<1x8x8xf32>
    %cst_14 = arith.constant dense<0.000000e+00> : vector<1x8xf32>
    %30 = vector.multi_reduction <add>, %29, %cst_14 [2] : vector<1x8x8xf32> to vector<1x8xf32>
    %31 = vector.shape_cast %30 : vector<1x8xf32> to vector<1x8x1xf32>
    %32 = tpu.reciprocal %31 {approx = true} : vector<1x8x1xf32> -> vector<1x8x1xf32>
    %33 = vector.broadcast %32 : vector<1x8x1xf32> to vector<1x8x8xf32>
    %34 = arith.mulf %29, %33 : vector<1x8x8xf32>
    %35 = arith.truncf %34 : vector<1x8x8xf32> to vector<1x8x8xbf16>
    %36 = arith.truncf %19 : vector<1x8x16xf32> to vector<1x8x16xbf16>
    "tpu.trace_start"() <{level = 10 : i32, message = "bqk,bke->bqe"}> : () -> ()
    %cst_15 = arith.constant dense<0.000000e+00> : vector<1x8x16xf32>
    %37 = tpu.matmul %35, %36, %cst_15 {dimension_numbers = #tpu.dot_dimension_numbers<[2], [1], [1], [2], [0, 0, 0, 1, 1, 2], [0], [0]>} : vector<1x8x8xbf16>, vector<1x8x16xbf16>, vector<1x8x16xf32> -> vector<1x8x16xf32>
    "tpu.trace_stop"() : () -> ()
    %38 = vector.extract_strided_slice %13 {offsets = [0, 16], sizes = [8, 16], strides = [1, 1]} : vector<8x96xf32> to vector<8x16xf32>
    %39 = vector.shape_cast %38 : vector<8x16xf32> to vector<1x8x16xf32>
    %40 = vector.extract_strided_slice %13 {offsets = [0, 48], sizes = [8, 16], strides = [1, 1]} : vector<8x96xf32> to vector<8x16xf32>
    %41 = vector.shape_cast %40 : vector<8x16xf32> to vector<1x8x16xf32>
    %42 = vector.extract_strided_slice %13 {offsets = [0, 80], sizes = [8, 16], strides = [1, 1]} : vector<8x96xf32> to vector<8x16xf32>
    %43 = vector.shape_cast %42 : vector<8x16xf32> to vector<1x8x16xf32>
    %44 = arith.truncf %39 : vector<1x8x16xf32> to vector<1x8x16xbf16>
    %45 = arith.truncf %41 : vector<1x8x16xf32> to vector<1x8x16xbf16>
    "tpu.trace_start"() <{level = 10 : i32, message = "bqe,bke->bqk"}> : () -> ()
    %cst_16 = arith.constant dense<0.000000e+00> : vector<1x8x8xf32>
    %46 = tpu.matmul %44, %45, %cst_16 {dimension_numbers = #tpu.dot_dimension_numbers<[2], [2], [1], [1], [0, 0, 0, 1, 1, 1], [0], [0]>} : vector<1x8x16xbf16>, vector<1x8x16xbf16>, vector<1x8x8xf32> -> vector<1x8x8xf32>
    "tpu.trace_stop"() : () -> ()
    %47 = vector.broadcast %4 : vector<1x1x8xf32> to vector<1x8x8xf32>
    %48 = arith.addf %46, %47 : vector<1x8x8xf32>
    %cst_17 = arith.constant dense<0xFF800000> : vector<1x8xf32>
    %49 = vector.multi_reduction <maximumf>, %48, %cst_17 [2] : vector<1x8x8xf32> to vector<1x8xf32>
    %50 = vector.shape_cast %49 : vector<1x8xf32> to vector<1x8x1xf32>
    %51 = vector.broadcast %50 : vector<1x8x1xf32> to vector<1x8x8xf32>
    %52 = arith.subf %48, %51 : vector<1x8x8xf32>
    %53 = math.exp %52 : vector<1x8x8xf32>
    %cst_18 = arith.constant dense<0.000000e+00> : vector<1x8xf32>
    %54 = vector.multi_reduction <add>, %53, %cst_18 [2] : vector<1x8x8xf32> to vector<1x8xf32>
    %55 = vector.shape_cast %54 : vector<1x8xf32> to vector<1x8x1xf32>
    %56 = tpu.reciprocal %55 {approx = true} : vector<1x8x1xf32> -> vector<1x8x1xf32>
    %57 = vector.broadcast %56 : vector<1x8x1xf32> to vector<1x8x8xf32>
    %58 = arith.mulf %53, %57 : vector<1x8x8xf32>
    %59 = arith.truncf %58 : vector<1x8x8xf32> to vector<1x8x8xbf16>
    %60 = arith.truncf %43 : vector<1x8x16xf32> to vector<1x8x16xbf16>
    "tpu.trace_start"() <{level = 10 : i32, message = "bqk,bke->bqe"}> : () -> ()
    %cst_19 = arith.constant dense<0.000000e+00> : vector<1x8x16xf32>
    %61 = tpu.matmul %59, %60, %cst_19 {dimension_numbers = #tpu.dot_dimension_numbers<[2], [1], [1], [2], [0, 0, 0, 1, 1, 2], [0], [0]>} : vector<1x8x8xbf16>, vector<1x8x16xbf16>, vector<1x8x16xf32> -> vector<1x8x16xf32>
    "tpu.trace_stop"() : () -> ()
    %62 = tpu.concatenate %37, %61 in 2 : vector<1x8x16xf32>, vector<1x8x16xf32> -> vector<1x8x32xf32>
    %63 = vector.shape_cast %62 : vector<1x8x32xf32> to vector<8x32xf32>
    %64 = arith.truncf %63 : vector<8x32xf32> to vector<8x32xbf16>
    %c0_20 = arith.constant 0 : index
    %c0_21 = arith.constant 0 : index
    %c0_22 = arith.constant 0 : index
    %65 = vector.load %arg6[%c0_20, %c0_21, %c0_22] : memref<1x32x32xbf16, #tpu.memory_space<vmem>>, vector<1x32x32xbf16>
    %66 = vector.shape_cast %65 : vector<1x32x32xbf16> to vector<32x32xbf16>
    %cst_23 = arith.constant dense<0.000000e+00> : vector<8x32xf32>
    %67 = tpu.matmul %64, %66, %cst_23 {dimension_numbers = #tpu.dot_dimension_numbers<[1], [0], [0], [1], [0, 0, 1, 1], [], []>} : vector<8x32xbf16>, vector<32x32xbf16>, vector<8x32xf32> -> vector<8x32xf32>
    %c0_24 = arith.constant 0 : index
    %c0_25 = arith.constant 0 : index
    %c0_26 = arith.constant 0 : index
    %68 = vector.load %arg7[%c0_24, %c0_25, %c0_26] : memref<1x1x32xf32, #tpu.memory_space<vmem>>, vector<1x1x32xf32>
    %69 = vector.shape_cast %68 : vector<1x1x32xf32> to vector<1x32xf32>
    %70 = vector.broadcast %69 : vector<1x32xf32> to vector<8x32xf32>
    %71 = arith.addf %67, %70 : vector<8x32xf32>
    %72 = arith.addf %5, %71 : vector<8x32xf32>
    %cst_27 = arith.constant dense<0.000000e+00> : vector<8xf32>
    %73 = vector.multi_reduction <add>, %72, %cst_27 [1] : vector<8x32xf32> to vector<8xf32>
    %74 = vector.shape_cast %73 : vector<8xf32> to vector<8x1xf32>
    %cst_28 = arith.constant 3.200000e+01 : f32
    %75 = vector.broadcast %cst_28 : f32 to vector<8x1xf32>
    %76 = arith.divf %74, %75 : vector<8x1xf32>
    %77 = arith.mulf %72, %72 : vector<8x32xf32>
    %cst_29 = arith.constant dense<0.000000e+00> : vector<8xf32>
    %78 = vector.multi_reduction <add>, %77, %cst_29 [1] : vector<8x32xf32> to vector<8xf32>
    %79 = vector.shape_cast %78 : vector<8xf32> to vector<8x1xf32>
    %cst_30 = arith.constant 3.200000e+01 : f32
    %80 = vector.broadcast %cst_30 : f32 to vector<8x1xf32>
    %81 = arith.divf %79, %80 : vector<8x1xf32>
    %82 = arith.mulf %76, %76 : vector<8x1xf32>
    %83 = arith.subf %81, %82 : vector<8x1xf32>
    %cst_31 = arith.constant 0.000000e+00 : f32
    %84 = vector.broadcast %cst_31 : f32 to vector<8x1xf32>
    %85 = arith.maximumf %83, %84 : vector<8x1xf32>
    %cst_32 = arith.constant 9.99999974E-6 : f32
    %86 = vector.broadcast %cst_32 : f32 to vector<8x1xf32>
    %87 = arith.addf %85, %86 : vector<8x1xf32>
    %88 = math.rsqrt %87 : vector<8x1xf32>
    %89 = vector.broadcast %76 : vector<8x1xf32> to vector<8x32xf32>
    %90 = arith.subf %72, %89 : vector<8x32xf32>
    %91 = vector.broadcast %88 : vector<8x1xf32> to vector<8x32xf32>
    %92 = arith.mulf %90, %91 : vector<8x32xf32>
    %c0_33 = arith.constant 0 : index
    %c0_34 = arith.constant 0 : index
    %c0_35 = arith.constant 0 : index
    %93 = vector.load %arg8[%c0_33, %c0_34, %c0_35] : memref<1x1x32xf32, #tpu.memory_space<vmem>>, vector<1x1x32xf32>
    %94 = vector.shape_cast %93 : vector<1x1x32xf32> to vector<1x32xf32>
    %95 = vector.broadcast %94 : vector<1x32xf32> to vector<8x32xf32>
    %96 = arith.mulf %92, %95 : vector<8x32xf32>
    %c0_36 = arith.constant 0 : index
    %c0_37 = arith.constant 0 : index
    %c0_38 = arith.constant 0 : index
    %97 = vector.load %arg9[%c0_36, %c0_37, %c0_38] : memref<1x1x32xf32, #tpu.memory_space<vmem>>, vector<1x1x32xf32>
    %98 = vector.shape_cast %97 : vector<1x1x32xf32> to vector<1x32xf32>
    %99 = vector.broadcast %98 : vector<1x32xf32> to vector<8x32xf32>
    %100 = arith.addf %96, %99 : vector<8x32xf32>
    %101 = arith.truncf %100 : vector<8x32xf32> to vector<8x32xbf16>
    %c0_39 = arith.constant 0 : index
    %c0_40 = arith.constant 0 : index
    %c0_41 = arith.constant 0 : index
    %102 = vector.load %arg10[%c0_39, %c0_40, %c0_41] : memref<1x32x64xbf16, #tpu.memory_space<vmem>>, vector<1x32x64xbf16>
    %103 = vector.shape_cast %102 : vector<1x32x64xbf16> to vector<32x64xbf16>
    %cst_42 = arith.constant dense<0.000000e+00> : vector<8x64xf32>
    %104 = tpu.matmul %101, %103, %cst_42 {dimension_numbers = #tpu.dot_dimension_numbers<[1], [0], [0], [1], [0, 0, 1, 1], [], []>} : vector<8x32xbf16>, vector<32x64xbf16>, vector<8x64xf32> -> vector<8x64xf32>
    %c0_43 = arith.constant 0 : index
    %c0_44 = arith.constant 0 : index
    %c0_45 = arith.constant 0 : index
    %105 = vector.load %arg11[%c0_43, %c0_44, %c0_45] : memref<1x1x64xf32, #tpu.memory_space<vmem>>, vector<1x1x64xf32>
    %106 = vector.shape_cast %105 : vector<1x1x64xf32> to vector<1x64xf32>
    %107 = vector.broadcast %106 : vector<1x64xf32> to vector<8x64xf32>
    %108 = arith.addf %104, %107 : vector<8x64xf32>
    %cst_46 = arith.constant 0.000000e+00 : f32
    %109 = vector.broadcast %cst_46 : f32 to vector<8x64xf32>
    %110 = arith.maximumf %108, %109 : vector<8x64xf32>
    %111 = arith.truncf %110 : vector<8x64xf32> to vector<8x64xbf16>
    %c0_47 = arith.constant 0 : index
    %c0_48 = arith.constant 0 : index
    %c0_49 = arith.constant 0 : index
    %112 = vector.load %arg12[%c0_47, %c0_48, %c0_49] : memref<1x64x32xbf16, #tpu.memory_space<vmem>>, vector<1x64x32xbf16>
    %113 = vector.shape_cast %112 : vector<1x64x32xbf16> to vector<64x32xbf16>
    %cst_50 = arith.constant dense<0.000000e+00> : vector<8x32xf32>
    %114 = tpu.matmul %111, %113, %cst_50 {dimension_numbers = #tpu.dot_dimension_numbers<[1], [0], [0], [1], [0, 0, 1, 1], [], []>} : vector<8x64xbf16>, vector<64x32xbf16>, vector<8x32xf32> -> vector<8x32xf32>
    %c0_51 = arith.constant 0 : index
    %c0_52 = arith.constant 0 : index
    %c0_53 = arith.constant 0 : index
    %115 = vector.load %arg13[%c0_51, %c0_52, %c0_53] : memref<1x1x32xf32, #tpu.memory_space<vmem>>, vector<1x1x32xf32>
    %116 = vector.shape_cast %115 : vector<1x1x32xf32> to vector<1x32xf32>
    %117 = vector.broadcast %116 : vector<1x32xf32> to vector<8x32xf32>
    %118 = arith.addf %114, %117 : vector<8x32xf32>
    %119 = arith.addf %100, %118 : vector<8x32xf32>
    %cst_54 = arith.constant dense<0.000000e+00> : vector<8xf32>
    %120 = vector.multi_reduction <add>, %119, %cst_54 [1] : vector<8x32xf32> to vector<8xf32>
    %121 = vector.shape_cast %120 : vector<8xf32> to vector<8x1xf32>
    %cst_55 = arith.constant 3.200000e+01 : f32
    %122 = vector.broadcast %cst_55 : f32 to vector<8x1xf32>
    %123 = arith.divf %121, %122 : vector<8x1xf32>
    %124 = arith.mulf %119, %119 : vector<8x32xf32>
    %cst_56 = arith.constant dense<0.000000e+00> : vector<8xf32>
    %125 = vector.multi_reduction <add>, %124, %cst_56 [1] : vector<8x32xf32> to vector<8xf32>
    %126 = vector.shape_cast %125 : vector<8xf32> to vector<8x1xf32>
    %cst_57 = arith.constant 3.200000e+01 : f32
    %127 = vector.broadcast %cst_57 : f32 to vector<8x1xf32>
    %128 = arith.divf %126, %127 : vector<8x1xf32>
    %129 = arith.mulf %123, %123 : vector<8x1xf32>
    %130 = arith.subf %128, %129 : vector<8x1xf32>
    %cst_58 = arith.constant 0.000000e+00 : f32
    %131 = vector.broadcast %cst_58 : f32 to vector<8x1xf32>
    %132 = arith.maximumf %130, %131 : vector<8x1xf32>
    %cst_59 = arith.constant 9.99999974E-6 : f32
    %133 = vector.broadcast %cst_59 : f32 to vector<8x1xf32>
    %134 = arith.addf %132, %133 : vector<8x1xf32>
    %135 = math.rsqrt %134 : vector<8x1xf32>
    %136 = vector.broadcast %123 : vector<8x1xf32> to vector<8x32xf32>
    %137 = arith.subf %119, %136 : vector<8x32xf32>
    %138 = vector.broadcast %135 : vector<8x1xf32> to vector<8x32xf32>
    %139 = arith.mulf %137, %138 : vector<8x32xf32>
    %c0_60 = arith.constant 0 : index
    %c0_61 = arith.constant 0 : index
    %c0_62 = arith.constant 0 : index
    %140 = vector.load %arg14[%c0_60, %c0_61, %c0_62] : memref<1x1x32xf32, #tpu.memory_space<vmem>>, vector<1x1x32xf32>
    %141 = vector.shape_cast %140 : vector<1x1x32xf32> to vector<1x32xf32>
    %142 = vector.broadcast %141 : vector<1x32xf32> to vector<8x32xf32>
    %143 = arith.mulf %139, %142 : vector<8x32xf32>
    %c0_63 = arith.constant 0 : index
    %c0_64 = arith.constant 0 : index
    %c0_65 = arith.constant 0 : index
    %144 = vector.load %arg15[%c0_63, %c0_64, %c0_65] : memref<1x1x32xf32, #tpu.memory_space<vmem>>, vector<1x1x32xf32>
    %145 = vector.shape_cast %144 : vector<1x1x32xf32> to vector<1x32xf32>
    %146 = vector.broadcast %145 : vector<1x32xf32> to vector<8x32xf32>
    %147 = arith.addf %143, %146 : vector<8x32xf32>
    %148 = vector.shape_cast %147 : vector<8x32xf32> to vector<1x8x32xf32>
    %c0_66 = arith.constant 0 : index
    %c0_67 = arith.constant 0 : index
    %c0_68 = arith.constant 0 : index
    %149 = vector.load %arg17[%c0_66, %c0_67, %c0_68] : memref<1x8x32xf32, #tpu.memory_space<vmem>>, vector<1x8x32xf32>
    tpu.vector_store %arg17[%c0_66, %c0_67, %c0_68], %148 {strides = array<i32>} : memref<1x8x32xf32, #tpu.memory_space<vmem>>, vector<1x8x32xf32>,
    %c1_i32 = arith.constant 1 : i32
    %150 = arith.cmpi eq, %arg1, %c1_i32 : i32
    %151 = arith.extui %150 : i1 to i32
    %c0_i32_69 = arith.constant 0 : i32
    %152 = arith.cmpi ne, %151, %c0_i32_69 : i32
    scf.if %152 {
      %cst_70 = arith.constant 0.000000e+00 : f32
      %153 = vector.broadcast %cst_70 : f32 to vector<1x1x8xf32>
      %154 = arith.cmpf oeq, %4, %153 : vector<1x1x8xf32>
      %155 = arith.extui %154 : vector<1x1x8xi1> to vector<1x1x8xi32>
      %156 = arith.sitofp %155 : vector<1x1x8xi32> to vector<1x1x8xf32>
      %157 = vector.shape_cast %156 : vector<1x1x8xf32> to vector<1x8x1xf32>
      %158 = vector.broadcast %157 : vector<1x8x1xf32> to vector<1x8x32xf32>
      %159 = arith.mulf %148, %158 : vector<1x8x32xf32>
      %cst_71 = arith.constant dense<0.000000e+00> : vector<1x1xf32>
      %160 = vector.multi_reduction <add>, %156, %cst_71 [2] : vector<1x1x8xf32> to vector<1x1xf32>
      %161 = vector.shape_cast %160 : vector<1x1xf32> to vector<1x1x1xf32>
      %cst_72 = arith.constant 1.000000e-07 : f32
      %162 = vector.broadcast %cst_72 : f32 to vector<1x1x1xf32>
      %163 = arith.maximumf %161, %162 : vector<1x1x1xf32>
      %cst_73 = arith.constant dense<0.000000e+00> : vector<1x32xf32>
      %164 = vector.multi_reduction <add>, %159, %cst_73 [1] : vector<1x8x32xf32> to vector<1x32xf32>
      %165 = vector.shape_cast %164 : vector<1x32xf32> to vector<1x1x32xf32>
      %166 = vector.broadcast %163 : vector<1x1x1xf32> to vector<1x1x32xf32>
      %167 = arith.divf %165, %166 : vector<1x1x32xf32>
      %c0_74 = arith.constant 0 : index
      %c0_75 = arith.constant 0 : index
      %c0_76 = arith.constant 0 : index
      %168 = vector.load %arg16[%c0_74, %c0_75, %c0_76] : memref<1x1x32xf32, #tpu.memory_space<vmem>>, vector<1x1x32xf32>
      tpu.vector_store %arg16[%c0_74, %c0_75, %c0_76], %167 {strides = array<i32>} : memref<1x1x32xf32, #tpu.memory_space<vmem>>, vector<1x1x32xf32>,
    } else {
    }
    return
  }
  func.func @transform_0(%arg0: i32, %arg1: i32) -> (i32, i32, i32) {
    %c0_i32 = arith.constant 0 : i32
    %c0_i32_0 = arith.constant 0 : i32
    %c0_i32_1 = arith.constant 0 : i32
    return %arg0, %c0_i32, %c0_i32_0 : i32, i32, i32
  }
  func.func @transform_1(%arg0: i32, %arg1: i32) -> (i32, i32, i32) {
    %c0_i32 = arith.constant 0 : i32
    %c0_i32_0 = arith.constant 0 : i32
    %c0_i32_1 = arith.constant 0 : i32
    return %arg0, %c0_i32, %c0_i32_0 : i32, i32, i32
  }
  func.func @transform_2(%arg0: i32, %arg1: i32) -> (i32, i32, i32) {
    %c0_i32 = arith.constant 0 : i32
    %c0_i32_0 = arith.constant 0 : i32
    %c0_i32_1 = arith.constant 0 : i32
    return %arg1, %c0_i32, %c0_i32_0 : i32, i32, i32
  }
  func.func @transform_3(%arg0: i32, %arg1: i32) -> (i32, i32, i32) {
    %c0_i32 = arith.constant 0 : i32
    %c0_i32_0 = arith.constant 0 : i32
    %c0_i32_1 = arith.constant 0 : i32
    return %arg1, %c0_i32, %c0_i32_0 : i32, i32, i32
  }
  func.func @transform_4(%arg0: i32, %arg1: i32) -> (i32, i32, i32) {
    %c0_i32 = arith.constant 0 : i32
    %c0_i32_0 = arith.constant 0 : i32
    %c0_i32_1 = arith.constant 0 : i32
    return %arg1, %c0_i32, %c0_i32_0 : i32, i32, i32
  }
  func.func @transform_5(%arg0: i32, %arg1: i32) -> (i32, i32, i32) {
    %c0_i32 = arith.constant 0 : i32
    %c0_i32_0 = arith.constant 0 : i32
    %c0_i32_1 = arith.constant 0 : i32
    return %arg1, %c0_i32, %c0_i32_0 : i32, i32, i32
  }
  func.func @transform_6(%arg0: i32, %arg1: i32) -> (i32, i32, i32) {
    %c0_i32 = arith.constant 0 : i32
    %c0_i32_0 = arith.constant 0 : i32
    %c0_i32_1 = arith.constant 0 : i32
    return %arg1, %c0_i32, %c0_i32_0 : i32, i32, i32
  }
  func.func @transform_7(%arg0: i32, %arg1: i32) -> (i32, i32, i32) {
    %c0_i32 = arith.constant 0 : i32
    %c0_i32_0 = arith.constant 0 : i32
    %c0_i32_1 = arith.constant 0 : i32
    return %arg1, %c0_i32, %c0_i32_0 : i32, i32, i32
  }
  func.func @transform_8(%arg0: i32, %arg1: i32) -> (i32, i32, i32) {
    %c0_i32 = arith.constant 0 : i32
    %c0_i32_0 = arith.constant 0 : i32
    %c0_i32_1 = arith.constant 0 : i32
    return %arg1, %c0_i32, %c0_i32_0 : i32, i32, i32
  }
  func.func @transform_9(%arg0: i32, %arg1: i32) -> (i32, i32, i32) {
    %c0_i32 = arith.constant 0 : i32
    %c0_i32_0 = arith.constant 0 : i32
    %c0_i32_1 = arith.constant 0 : i32
    return %arg1, %c0_i32, %c0_i32_0 : i32, i32, i32
  }
  func.func @transform_10(%arg0: i32, %arg1: i32) -> (i32, i32, i32) {
    %c0_i32 = arith.constant 0 : i32
    %c0_i32_0 = arith.constant 0 : i32
    %c0_i32_1 = arith.constant 0 : i32
    return %arg1, %c0_i32, %c0_i32_0 : i32, i32, i32
  }
  func.func @transform_11(%arg0: i32, %arg1: i32) -> (i32, i32, i32) {
    %c0_i32 = arith.constant 0 : i32
    %c0_i32_0 = arith.constant 0 : i32
    %c0_i32_1 = arith.constant 0 : i32
    return %arg1, %c0_i32, %c0_i32_0 : i32, i32, i32
  }
  func.func @transform_12(%arg0: i32, %arg1: i32) -> (i32, i32, i32) {
    %c0_i32 = arith.constant 0 : i32
    %c0_i32_0 = arith.constant 0 : i32
    %c0_i32_1 = arith.constant 0 : i32
    return %arg1, %c0_i32, %c0_i32_0 : i32, i32, i32
  }
  func.func @transform_13(%arg0: i32, %arg1: i32) -> (i32, i32, i32) {
    %c0_i32 = arith.constant 0 : i32
    %c0_i32_0 = arith.constant 0 : i32
    %c0_i32_1 = arith.constant 0 : i32
    return %arg1, %c0_i32, %c0_i32_0 : i32, i32, i32
  }
  func.func @transform_14(%arg0: i32, %arg1: i32) -> (i32, i32, i32) {
    %c0_i32 = arith.constant 0 : i32
    %c0_i32_0 = arith.constant 0 : i32
    %c0_i32_1 = arith.constant 0 : i32
    return %arg0, %c0_i32, %c0_i32_0 : i32, i32, i32
  }
}

</mosaic_0001>

<llo_original>
// kernel: tpu_custom_call.1
$region0: #{tpu_custom_call.1}
  #allocation0 [shape = 'u32[]', space=smem, size = 0x4, offset = 0x4, fixed_abs, tag = 'smem constant byte address 0x4 - core index']
  #allocation1 [shape = 'u32[144,128]{1,0:T(1,128)}', space=vmem, size = 0x12000, scoped, tag = 'internal scratch']
  #allocation2 [shape = 'f32[1,8,32]{2,1,0:T(8,128)}', space=vmem, size = 0x1000, scoped, tag = 'scratch operand']
  %s0 = inlined_call_operand.hbm [shape: f32[2,8,32], index: 0, kind: input, shape index: {}]
  %s1 = inlined_call_operand.vmem [shape: f32[2,1,8], index: 1, kind: input, shape index: {}]
  %s2 = inlined_call_operand.vmem [shape: bf16[2,32,96], index: 2, kind: input, shape index: {}]
  %s3 = inlined_call_operand.vmem [shape: f32[2,1,96], index: 3, kind: input, shape index: {}]
  %s4 = inlined_call_operand.vmem [shape: bf16[2,32,32], index: 4, kind: input, shape index: {}]
  %s5 = inlined_call_operand.hbm [shape: f32[2,1,32], index: 5, kind: input, shape index: {}]
  %s6 = inlined_call_operand.hbm [shape: f32[2,1,32], index: 6, kind: input, shape index: {}]
  %s7 = inlined_call_operand.hbm [shape: f32[2,1,32], index: 7, kind: input, shape index: {}]
  %s8 = inlined_call_operand.vmem [shape: bf16[2,32,64], index: 8, kind: input, shape index: {}]
  %s9 = inlined_call_operand.hbm [shape: f32[2,1,64], index: 9, kind: input, shape index: {}]
  %s10 = inlined_call_operand.vmem [shape: bf16[2,64,32], index: 10, kind: input, shape index: {}]
  %s11 = inlined_call_operand.vmem [shape: f32[2,1,32], index: 11, kind: input, shape index: {}]
  %s12 = inlined_call_operand.vmem [shape: f32[2,1,32], index: 12, kind: input, shape index: {}]
  %s13 = inlined_call_operand.vmem [shape: f32[2,1,32], index: 13, kind: input, shape index: {}]
  %s14 = inlined_call_operand.hbm [shape: f32[2,1,32], index: 14, kind: output, shape index: {}]
  %s15 = sld [smem:[#allocation0]]
  $region117: #{tpu_custom_call.1} parent=0
    _
  %s17 = ssub.s32 1, %s15
  %s18 = scalar_select 0, %s17, %s15
  $region1: #{tpu_custom_call.1} parent=0
    #allocation3 [shape = 'u8[4096]{0}', space=vmem, size = 0x1000, scoped, tag = 'input window, operand 0, single buffered']
    #allocation4 [shape = 's32[2]{0}', space=sflag, size = 0x8, scoped, tag = 'scoped memory for tpu_custom_call.1']
    #allocation5 [shape = 's32[2]{0}', space=sflag, size = 0x8, scoped, tag = 'scoped memory for tpu_custom_call.1']
    #allocation6 [shape = 'u8[1024]{0}', space=vmem, size = 0x400, scoped, tag = 'input window, operand 5']
    #allocation7 [shape = 's32[2]{0}', space=sflag, size = 0x8, scoped, tag = 'scoped memory for tpu_custom_call.1']
    #allocation8 [shape = 'u8[1024]{0}', space=vmem, size = 0x400, scoped, tag = 'input window, operand 6']
    #allocation9 [shape = 'u8[1024]{0}', space=vmem, size = 0x400, scoped, tag = 'input window, operand 7']
    #allocation10 [shape = 's32[2]{0}', space=sflag, size = 0x8, scoped, tag = 'scoped memory for tpu_custom_call.1']
    #allocation11 [shape = 'u8[1024]{0}', space=vmem, size = 0x400, scoped, tag = 'input window, operand 9']
    #allocation12 [shape = 'u8[1024]{0}', space=vmem, size = 0x400, scoped, tag = 'output window, operand 0']
    %19 = vsyncpa [#allocation4], 0
    %20 = vsyncpa [#allocation7], 0
    %s21 = scalar_lea.sflag [#allocation7], 1
    %22 = vsyncpa %s21, 0
    %23 = vsyncpa [#allocation10], 0
    %s24 = scalar_lea.sflag [#allocation10], 1
    %25 = vsyncpa %s24, 0
    %26 = vsyncpa [#allocation5], 0
    %s27 = scalar_lea.sflag [#allocation5], 1
    %28 = vsyncpa %s27, 0
    loop: start=0, step=1, limit=6
    $region2: #{tpu_custom_call.1} parent=1 // loop_pre_header
      _
    $region3: #{tpu_custom_call.1} parent=1 // loop_header
      %s30 = sphi 0, %s34
      %p31 = scmp.ge.s32.totalorder %s30, 6
      %s37 = sphi 0, %s49
      %s38 = sphi 0, %s45
      %s39 = sphi 0, %s37
      %s40 = sphi 0, %s38
      %s41 = sphi 0, %s39
      %s42 = sphi 0, %s40
      %s52 = sphi 0, %s54
      %s55 = sphi 0, %s52
      %s56 = sphi 0, %s55
      %s72 = sphi 0, %s56
      %s78 = sphi 0, %s80
      %s81 = sphi 0, %s78
      %s82 = sphi 0, %s81
      %s98 = sphi 0, %s82
      %s104 = sphi 0, %s106
      %s107 = sphi 0, %s104
      %s108 = sphi 0, %s107
      %s124 = sphi 0, %s108
      %s130 = sphi 0, %s132
      %s133 = sphi 0, %s130
      %s134 = sphi 0, %s133
      %s150 = sphi 0, %s134
      %s156 = sphi 0, %s158
      %s159 = sphi 0, %s156
      %s160 = sphi 0, %s159
      %s176 = sphi 0, %s160
      %s182 = sphi 0, %s184
      %s185 = sphi 0, %s182
      %s186 = sphi 0, %s185
      %s202 = sphi 0, %s186
      %s208 = sphi 0, %s210
      %s211 = sphi 0, %s208
      %s212 = sphi 0, %s211
      %s228 = sphi 0, %s212
      %s234 = sphi 0, %s236
      %s237 = sphi 0, %s234
      %s238 = sphi 0, %s237
      %s254 = sphi 0, %s238
      %s260 = sphi 0, %s262
      %s263 = sphi 0, %s260
      %s264 = sphi 0, %s263
      %s280 = sphi 0, %s264
      %s286 = sphi 0, %s288
      %s289 = sphi 0, %s286
      %s290 = sphi 0, %s289
      %s306 = sphi 0, %s290
      %s312 = sphi 0, %s314
      %s315 = sphi 0, %s312
      %s316 = sphi 0, %s315
      %s332 = sphi 0, %s316
      %s338 = sphi 0, %s340
      %s341 = sphi 0, %s338
      %s342 = sphi 0, %s341
      %s358 = sphi 0, %s342
      %s364 = sphi 0, %s366
      %s367 = sphi 0, %s364
      %s368 = sphi 0, %s367
      %s384 = sphi 0, %s368
      %s390 = sphi 0, %s392
      %s393 = sphi 0, %s390
      %s394 = sphi 0, %s393
      %s410 = sphi 0, %s394
      %s416 = sphi 0, %s418
      %s419 = sphi 0, %s416
      %s420 = sphi 0, %s419
      %s436 = sphi 0, %s420
    $region4: #{tpu_custom_call.1} parent=1 // loop_header_branch
      %33 = sbr.rel (%p31) target = $region8
    $region5: #{tpu_custom_call.1} parent=1 // loop_body
      %s35 = ssub.s32 %s30, 1
      %s36 = ssub.s32 %s30, 2
      %s43 = sadd.s32 1, %s38
      %p44 = scmp.ge.s32.totalorder %s43, 2
      %s45 = scalar_select %p44, 0, %s43
      %s46 = sadd.s32 1, %s37
      %s47 = scalar_select %p44, %s46, %s37
      %p48 = scmp.ge.s32.totalorder %s47, 2
      %s49 = scalar_select %p48, 0, %s47
      %s50 = ssub.s32 %s37, %s49
      %p51 = scmp.eq.s32.totalorder %s50, 0
      %s53 = sadd.s32 %s52, 1
      %s54 = scalar_select %p51, %s52, %s53
      %p57 = pneg %p51
      %p58 = scmp.eq.s32.totalorder %s30, 3
      %p59 = por %p57, %p58
      %p60 = scmp.ne.s32.totalorder %s52, %s55
      %p61 = scmp.eq.s32.totalorder %s30, 0
      %p62 = por %p60, %p61
      %p63 = scmp.ne.s32.totalorder %s52, %s55
      %p64 = scmp.eq.s32.totalorder %s35, 3
      %p65 = por %p63, %p64
      %p66 = scmp.ne.s32.totalorder %s55, %s56
      %p67 = scmp.eq.s32.totalorder %s35, 0
      %p68 = por %p66, %p67
      %p69 = scmp.ne.s32.totalorder %s55, %s56
      %p70 = scmp.eq.s32.totalorder %s36, 3
      %p71 = por %p69, %p70
      %p73 = scmp.ne.s32.totalorder %s56, %s72
      %p74 = scmp.eq.s32.totalorder %s36, 0
      %p75 = por %p73, %p74
      %s76 = ssub.s32 %s37, %s49
      %p77 = scmp.eq.s32.totalorder %s76, 0
      %s79 = sadd.s32 %s78, 1
      %s80 = scalar_select %p77, %s78, %s79
      %p83 = pneg %p77
      %p84 = scmp.eq.s32.totalorder %s30, 3
      %p85 = por %p83, %p84
      %p86 = scmp.ne.s32.totalorder %s78, %s81
      %p87 = scmp.eq.s32.totalorder %s30, 0
      %p88 = por %p86, %p87
      %p89 = scmp.ne.s32.totalorder %s78, %s81
      %p90 = scmp.eq.s32.totalorder %s35, 3
      %p91 = por %p89, %p90
      %p92 = scmp.ne.s32.totalorder %s81, %s82
      %p93 = scmp.eq.s32.totalorder %s35, 0
      %p94 = por %p92, %p93
      %p95 = scmp.ne.s32.totalorder %s81, %s82
      %p96 = scmp.eq.s32.totalorder %s36, 3
      %p97 = por %p95, %p96
      %p99 = scmp.ne.s32.totalorder %s82, %s98
      %p100 = scmp.eq.s32.totalorder %s36, 0
      %p101 = por %p99, %p100
      %s102 = ssub.s32 %s38, %s45
      %p103 = scmp.eq.s32.totalorder %s102, 0
      %s105 = sadd.s32 %s104, 1
      %s106 = scalar_select %p103, %s104, %s105
      %p109 = pneg %p103
      %p110 = scmp.eq.s32.totalorder %s30, 3
      %p111 = por %p109, %p110
      %p112 = scmp.ne.s32.totalorder %s104, %s107
      %p113 = scmp.eq.s32.totalorder %s30, 0
      %p114 = por %p112, %p113
      %p115 = scmp.ne.s32.totalorder %s104, %s107
      %p116 = scmp.eq.s32.totalorder %s35, 3
      %p117 = por %p115, %p116
      %p118 = scmp.ne.s32.totalorder %s107, %s108
      %p119 = scmp.eq.s32.totalorder %s35, 0
      %p120 = por %p118, %p119
      %p121 = scmp.ne.s32.totalorder %s107, %s108
      %p122 = scmp.eq.s32.totalorder %s36, 3
      %p123 = por %p121, %p122
      %p125 = scmp.ne.s32.totalorder %s108, %s124
      %p126 = scmp.eq.s32.totalorder %s36, 0
      %p127 = por %p125, %p126
      %s128 = ssub.s32 %s38, %s45
      %p129 = scmp.eq.s32.totalorder %s128, 0
      %s131 = sadd.s32 %s130, 1
      %s132 = scalar_select %p129, %s130, %s131
      %p135 = pneg %p129
      %p136 = scmp.eq.s32.totalorder %s30, 3
      %p137 = por %p135, %p136
      %p138 = scmp.ne.s32.totalorder %s130, %s133
      %p139 = scmp.eq.s32.totalorder %s30, 0
      %p140 = por %p138, %p139
      %p141 = scmp.ne.s32.totalorder %s130, %s133
      %p142 = scmp.eq.s32.totalorder %s35, 3
      %p143 = por %p141, %p142
      %p144 = scmp.ne.s32.totalorder %s133, %s134
      %p145 = scmp.eq.s32.totalorder %s35, 0
      %p146 = por %p144, %p145
      %p147 = scmp.ne.s32.totalorder %s133, %s134
      %p148 = scmp.eq.s32.totalorder %s36, 3
      %p149 = por %p147, %p148
      %p151 = scmp.ne.s32.totalorder %s134, %s150
      %p152 = scmp.eq.s32.totalorder %s36, 0
      %p153 = por %p151, %p152
      %s154 = ssub.s32 %s38, %s45
      %p155 = scmp.eq.s32.totalorder %s154, 0
      %s157 = sadd.s32 %s156, 1
      %s158 = scalar_select %p155, %s156, %s157
      %p161 = pneg %p155
      %p162 = scmp.eq.s32.totalorder %s30, 3
      %p163 = por %p161, %p162
      %p164 = scmp.ne.s32.totalorder %s156, %s159
      %p165 = scmp.eq.s32.totalorder %s30, 0
      %p166 = por %p164, %p165
      %p167 = scmp.ne.s32.totalorder %s156, %s159
      %p168 = scmp.eq.s32.totalorder %s35, 3
      %p169 = por %p167, %p168
      %p170 = scmp.ne.s32.totalorder %s159, %s160
      %p171 = scmp.eq.s32.totalorder %s35, 0
      %p172 = por %p170, %p171
      %p173 = scmp.ne.s32.totalorder %s159, %s160
      %p174 = scmp.eq.s32.totalorder %s36, 3
      %p175 = por %p173, %p174
      %p177 = scmp.ne.s32.totalorder %s160, %s176
      %p178 = scmp.eq.s32.totalorder %s36, 0
      %p179 = por %p177, %p178
      %s180 = ssub.s32 %s38, %s45
      %p181 = scmp.eq.s32.totalorder %s180, 0
      %s183 = sadd.s32 %s182, 1
      %s184 = scalar_select %p181, %s182, %s183
      %p187 = pneg %p181
      %p188 = scmp.eq.s32.totalorder %s30, 3
      %p189 = por %p187, %p188
      %p190 = scmp.ne.s32.totalorder %s182, %s185
      %p191 = scmp.eq.s32.totalorder %s30, 0
      %p192 = por %p190, %p191
      %p193 = scmp.ne.s32.totalorder %s182, %s185
      %p194 = scmp.eq.s32.totalorder %s35, 3
      %p195 = por %p193, %p194
      %p196 = scmp.ne.s32.totalorder %s185, %s186
      %p197 = scmp.eq.s32.totalorder %s35, 0
      %p198 = por %p196, %p197
      %p199 = scmp.ne.s32.totalorder %s185, %s186
      %p200 = scmp.eq.s32.totalorder %s36, 3
      %p201 = por %p199, %p200
      %p203 = scmp.ne.s32.totalorder %s186, %s202
      %p204 = scmp.eq.s32.totalorder %s36, 0
      %p205 = por %p203, %p204
      %s206 = ssub.s32 %s38, %s45
      %p207 = scmp.eq.s32.totalorder %s206, 0
      %s209 = sadd.s32 %s208, 1
      %s210 = scalar_select %p207, %s208, %s209
      %p213 = pneg %p207
      %p214 = scmp.eq.s32.totalorder %s30, 3
      %p215 = por %p213, %p214
      %p216 = scmp.ne.s32.totalorder %s208, %s211
      %p217 = scmp.eq.s32.totalorder %s30, 0
      %p218 = por %p216, %p217
      %p219 = scmp.ne.s32.totalorder %s208, %s211
      %p220 = scmp.eq.s32.totalorder %s35, 3
      %p221 = por %p219, %p220
      %p222 = scmp.ne.s32.totalorder %s211, %s212
      %p223 = scmp.eq.s32.totalorder %s35, 0
      %p224 = por %p222, %p223
      %p225 = scmp.ne.s32.totalorder %s211, %s212
      %p226 = scmp.eq.s32.totalorder %s36, 3
      %p227 = por %p225, %p226
      %p229 = scmp.ne.s32.totalorder %s212, %s228
      %p230 = scmp.eq.s32.totalorder %s36, 0
      %p231 = por %p229, %p230
      %s232 = ssub.s32 %s38, %s45
      %p233 = scmp.eq.s32.totalorder %s232, 0
      %s235 = sadd.s32 %s234, 1
      %s236 = scalar_select %p233, %s234, %s235
      %p239 = pneg %p233
      %p240 = scmp.eq.s32.totalorder %s30, 3
      %p241 = por %p239, %p240
      %p242 = scmp.ne.s32.totalorder %s234, %s237
      %p243 = scmp.eq.s32.totalorder %s30, 0
      %p244 = por %p242, %p243
      %p245 = scmp.ne.s32.totalorder %s234, %s237
      %p246 = scmp.eq.s32.totalorder %s35, 3
      %p247 = por %p245, %p246
      %p248 = scmp.ne.s32.totalorder %s237, %s238
      %p249 = scmp.eq.s32.totalorder %s35, 0
      %p250 = por %p248, %p249
      %p251 = scmp.ne.s32.totalorder %s237, %s238
      %p252 = scmp.eq.s32.totalorder %s36, 3
      %p253 = por %p251, %p252
      %p255 = scmp.ne.s32.totalorder %s238, %s254
      %p256 = scmp.eq.s32.totalorder %s36, 0
      %p257 = por %p255, %p256
      %s258 = ssub.s32 %s38, %s45
      %p259 = scmp.eq.s32.totalorder %s258, 0
      %s261 = sadd.s32 %s260, 1
      %s262 = scalar_select %p259, %s260, %s261
      %p265 = pneg %p259
      %p266 = scmp.eq.s32.totalorder %s30, 3
      %p267 = por %p265, %p266
      %p268 = scmp.ne.s32.totalorder %s260, %s263
      %p269 = scmp.eq.s32.totalorder %s30, 0
      %p270 = por %p268, %p269
      %p271 = scmp.ne.s32.totalorder %s260, %s263
      %p272 = scmp.eq.s32.totalorder %s35, 3
      %p273 = por %p271, %p272
      %p274 = scmp.ne.s32.totalorder %s263, %s264
      %p275 = scmp.eq.s32.totalorder %s35, 0
      %p276 = por %p274, %p275
      %p277 = scmp.ne.s32.totalorder %s263, %s264
      %p278 = scmp.eq.s32.totalorder %s36, 3
      %p279 = por %p277, %p278
      %p281 = scmp.ne.s32.totalorder %s264, %s280
      %p282 = scmp.eq.s32.totalorder %s36, 0
      %p283 = por %p281, %p282
      %s284 = ssub.s32 %s38, %s45
      %p285 = scmp.eq.s32.totalorder %s284, 0
      %s287 = sadd.s32 %s286, 1
      %s288 = scalar_select %p285, %s286, %s287
      %p291 = pneg %p285
      %p292 = scmp.eq.s32.totalorder %s30, 3
      %p293 = por %p291, %p292
      %p294 = scmp.ne.s32.totalorder %s286, %s289
      %p295 = scmp.eq.s32.totalorder %s30, 0
      %p296 = por %p294, %p295
      %p297 = scmp.ne.s32.totalorder %s286, %s289
      %p298 = scmp.eq.s32.totalorder %s35, 3
      %p299 = por %p297, %p298
      %p300 = scmp.ne.s32.totalorder %s289, %s290
      %p301 = scmp.eq.s32.totalorder %s35, 0
      %p302 = por %p300, %p301
      %p303 = scmp.ne.s32.totalorder %s289, %s290
      %p304 = scmp.eq.s32.totalorder %s36, 3
      %p305 = por %p303, %p304
      %p307 = scmp.ne.s32.totalorder %s290, %s306
      %p308 = scmp.eq.s32.totalorder %s36, 0
      %p309 = por %p307, %p308
      %s310 = ssub.s32 %s38, %s45
      %p311 = scmp.eq.s32.totalorder %s310, 0
      %s313 = sadd.s32 %s312, 1
      %s314 = scalar_select %p311, %s312, %s313
      %p317 = pneg %p311
      %p318 = scmp.eq.s32.totalorder %s30, 3
      %p319 = por %p317, %p318
      %p320 = scmp.ne.s32.totalorder %s312, %s315
      %p321 = scmp.eq.s32.totalorder %s30, 0
      %p322 = por %p320, %p321
      %p323 = scmp.ne.s32.totalorder %s312, %s315
      %p324 = scmp.eq.s32.totalorder %s35, 3
      %p325 = por %p323, %p324
      %p326 = scmp.ne.s32.totalorder %s315, %s316
      %p327 = scmp.eq.s32.totalorder %s35, 0
      %p328 = por %p326, %p327
      %p329 = scmp.ne.s32.totalorder %s315, %s316
      %p330 = scmp.eq.s32.totalorder %s36, 3
      %p331 = por %p329, %p330
      %p333 = scmp.ne.s32.totalorder %s316, %s332
      %p334 = scmp.eq.s32.totalorder %s36, 0
      %p335 = por %p333, %p334
      %s336 = ssub.s32 %s38, %s45
      %p337 = scmp.eq.s32.totalorder %s336, 0
      %s339 = sadd.s32 %s338, 1
      %s340 = scalar_select %p337, %s338, %s339
      %p343 = pneg %p337
      %p344 = scmp.eq.s32.totalorder %s30, 3
      %p345 = por %p343, %p344
      %p346 = scmp.ne.s32.totalorder %s338, %s341
      %p347 = scmp.eq.s32.totalorder %s30, 0
      %p348 = por %p346, %p347
      %p349 = scmp.ne.s32.totalorder %s338, %s341
      %p350 = scmp.eq.s32.totalorder %s35, 3
      %p351 = por %p349, %p350
      %p352 = scmp.ne.s32.totalorder %s341, %s342
      %p353 = scmp.eq.s32.totalorder %s35, 0
      %p354 = por %p352, %p353
      %p355 = scmp.ne.s32.totalorder %s341, %s342
      %p356 = scmp.eq.s32.totalorder %s36, 3
      %p357 = por %p355, %p356
      %p359 = scmp.ne.s32.totalorder %s342, %s358
      %p360 = scmp.eq.s32.totalorder %s36, 0
      %p361 = por %p359, %p360
      %s362 = ssub.s32 %s38, %s45
      %p363 = scmp.eq.s32.totalorder %s362, 0
      %s365 = sadd.s32 %s364, 1
      %s366 = scalar_select %p363, %s364, %s365
      %p369 = pneg %p363
      %p370 = scmp.eq.s32.totalorder %s30, 3
      %p371 = por %p369, %p370
      %p372 = scmp.ne.s32.totalorder %s364, %s367
      %p373 = scmp.eq.s32.totalorder %s30, 0
      %p374 = por %p372, %p373
      %p375 = scmp.ne.s32.totalorder %s364, %s367
      %p376 = scmp.eq.s32.totalorder %s35, 3
      %p377 = por %p375, %p376
      %p378 = scmp.ne.s32.totalorder %s367, %s368
      %p379 = scmp.eq.s32.totalorder %s35, 0
      %p380 = por %p378, %p379
      %p381 = scmp.ne.s32.totalorder %s367, %s368
      %p382 = scmp.eq.s32.totalorder %s36, 3
      %p383 = por %p381, %p382
      %p385 = scmp.ne.s32.totalorder %s368, %s384
      %p386 = scmp.eq.s32.totalorder %s36, 0
      %p387 = por %p385, %p386
      %s388 = ssub.s32 %s38, %s45
      %p389 = scmp.eq.s32.totalorder %s388, 0
      %s391 = sadd.s32 %s390, 1
      %s392 = scalar_select %p389, %s390, %s391
      %p395 = pneg %p389
      %p396 = scmp.eq.s32.totalorder %s30, 3
      %p397 = por %p395, %p396
      %p398 = scmp.ne.s32.totalorder %s390, %s393
      %p399 = scmp.eq.s32.totalorder %s30, 0
      %p400 = por %p398, %p399
      %p401 = scmp.ne.s32.totalorder %s390, %s393
      %p402 = scmp.eq.s32.totalorder %s35, 3
      %p403 = por %p401, %p402
      %p404 = scmp.ne.s32.totalorder %s393, %s394
      %p405 = scmp.eq.s32.totalorder %s35, 0
      %p406 = por %p404, %p405
      %p407 = scmp.ne.s32.totalorder %s393, %s394
      %p408 = scmp.eq.s32.totalorder %s36, 3
      %p409 = por %p407, %p408
      %p411 = scmp.ne.s32.totalorder %s394, %s410
      %p412 = scmp.eq.s32.totalorder %s36, 0
      %p413 = por %p411, %p412
      %s414 = ssub.s32 %s37, %s49
      %p415 = scmp.eq.s32.totalorder %s414, 0
      %s417 = sadd.s32 %s416, 1
      %s418 = scalar_select %p415, %s416, %s417
      %p421 = pneg %p415
      %p422 = scmp.eq.s32.totalorder %s30, 3
      %p423 = por %p421, %p422
      %p424 = scmp.ne.s32.totalorder %s416, %s419
      %p425 = scmp.eq.s32.totalorder %s30, 0
      %p426 = por %p424, %p425
      %p427 = scmp.ne.s32.totalorder %s416, %s419
      %p428 = scmp.eq.s32.totalorder %s35, 3
      %p429 = por %p427, %p428
      %p430 = scmp.ne.s32.totalorder %s419, %s420
      %p431 = scmp.eq.s32.totalorder %s35, 0
      %p432 = por %p430, %p431
      %p433 = scmp.ne.s32.totalorder %s419, %s420
      %p434 = scmp.eq.s32.totalorder %s36, 3
      %p435 = por %p433, %p434
      %p437 = scmp.ne.s32.totalorder %s420, %s436
      %p438 = scmp.eq.s32.totalorder %s36, 0
      %p439 = por %p437, %p438
      %p440 = scmp.le.s32.totalorder 1, %s30
      %p441 = scmp.lt.s32.totalorder %s30, 5
      %p442 = pnand %p440, %p441
      %p443 = pneg %p442
      // Predicated region
      $region9: #{tpu_custom_call.1} parent=5 // pred_check
        _
      $region10: #{tpu_custom_call.1} parent=5 // pred_check_branch
        %445 = sbr.rel (%p442) target = $region12
      $region11: #{tpu_custom_call.1} parent=5 // pred_region
        %s446 = ssub.s32 %s30, 1
        // Predicated region
        $region13: #{tpu_custom_call.1} parent=11 // pred_check
          %p447 = pneg %p68
        $region14: #{tpu_custom_call.1} parent=11 // pred_check_branch
          %449 = sbr.rel (%p447) target = $region16
        $region15: #{tpu_custom_call.1} parent=11 // pred_region
          %s451 = ssub.s32 128, 128
          %452 = vsyncadd [#allocation4], %s451
          %s453 = smul.addr %s39, 128
          %s454 = scalar_lea.hbm %s0, %s453
          %s456 = sshll.u32 [#allocation3], 4
          %s457 = int_to_ptr.vmem [resolvable:$true] %s456
          %459 = dma.hbm_to_vmem [thread:$0]  %s454, 128, %s457, [#allocation4]
        $region16: #{tpu_custom_call.1} parent=11 // pred_fallthru
          _
        // Predicated region
        $region17: #{tpu_custom_call.1} parent=11 // pred_check
          %p460 = pneg %p94
        $region18: #{tpu_custom_call.1} parent=11 // pred_check_branch
          %462 = sbr.rel (%p460) target = $region20
        $region19: #{tpu_custom_call.1} parent=11 // pred_region
          %p463 = scmp.lt.s32.totalorder %s39, 1
          %s464 = scalar_select %p463, %s39, 1
          %s465 = scalar_lea.vmem %s1, %s464
        $region20: #{tpu_custom_call.1} parent=11 // pred_fallthru
          _
      $region12: #{tpu_custom_call.1} parent=5 // pred_fallthru
        _
      %p466 = scmp.lt.s32.totalorder %s30, 4
      // Predicated region
      $region21: #{tpu_custom_call.1} parent=5 // pred_check
        %p467 = pneg %p466
      $region22: #{tpu_custom_call.1} parent=5 // pred_check_branch
        %469 = sbr.rel (%p467) target = $region24
      $region23: #{tpu_custom_call.1} parent=5 // pred_region
        // Predicated region
        $region25: #{tpu_custom_call.1} parent=23 // pred_check
          %p470 = pneg %p114
        $region26: #{tpu_custom_call.1} parent=23 // pred_check_branch
          %472 = sbr.rel (%p470) target = $region28
        $region27: #{tpu_custom_call.1} parent=23 // pred_region
          %p473 = scmp.lt.s32.totalorder %s38, 1
          %s474 = scalar_select %p473, %s38, 1
          %s475 = smul.addr %s474, 4
          %s476 = smul.addr %s475, 4
          %s477 = scalar_lea.vmem %s2, %s476
        $region28: #{tpu_custom_call.1} parent=23 // pred_fallthru
          _
        // Predicated region
        $region29: #{tpu_custom_call.1} parent=23 // pred_check
          %p478 = pneg %p140
        $region30: #{tpu_custom_call.1} parent=23 // pred_check_branch
          %480 = sbr.rel (%p478) target = $region32
        $region31: #{tpu_custom_call.1} parent=23 // pred_region
          %p481 = scmp.lt.s32.totalorder %s38, 1
          %s482 = scalar_select %p481, %s38, 1
          %s483 = scalar_lea.vmem %s3, %s482
        $region32: #{tpu_custom_call.1} parent=23 // pred_fallthru
          _
        // Predicated region
        $region33: #{tpu_custom_call.1} parent=23 // pred_check
          %p484 = pneg %p166
        $region34: #{tpu_custom_call.1} parent=23 // pred_check_branch
          %486 = sbr.rel (%p484) target = $region36
        $region35: #{tpu_custom_call.1} parent=23 // pred_region
          %p487 = scmp.lt.s32.totalorder %s38, 1
          %s488 = scalar_select %p487, %s38, 1
          %s489 = smul.addr %s488, 4
          %s490 = smul.addr %s489, 4
          %s491 = scalar_lea.vmem %s4, %s490
        $region36: #{tpu_custom_call.1} parent=23 // pred_fallthru
          _
        // Predicated region
        $region37: #{tpu_custom_call.1} parent=23 // pred_check
          %p492 = pneg %p192
        $region38: #{tpu_custom_call.1} parent=23 // pred_check_branch
          %494 = sbr.rel (%p492) target = $region40
        $region39: #{tpu_custom_call.1} parent=23 // pred_region
          %s495 = sand.u32 %s30, 1
          %s496 = scalar_lea.sflag [#allocation7], %s495
          %s497 = sand.u32 %s182, 1
          %s498 = scalar_lea.vmem [#allocation6], %s497
          %s500 = ssub.s32 16, 16
          %501 = vsyncadd %s496, %s500
          %s502 = smul.addr %s38, 16
          %s503 = scalar_lea.hbm %s5, %s502
          %s505 = sshll.u32 %s498, 4
          %s506 = int_to_ptr.vmem [resolvable:$true] %s505
          %508 = dma.hbm_to_vmem [thread:$0]  %s503, 16, %s506, %s496
        $region40: #{tpu_custom_call.1} parent=23 // pred_fallthru
          _
        // Predicated region
        $region41: #{tpu_custom_call.1} parent=23 // pred_check
          %p509 = pneg %p218
        $region42: #{tpu_custom_call.1} parent=23 // pred_check_branch
          %511 = sbr.rel (%p509) target = $region44
        $region43: #{tpu_custom_call.1} parent=23 // pred_region
          %s512 = sand.u32 %s30, 1
          %s513 = scalar_lea.sflag [#allocation7], %s512
          %s514 = sand.u32 %s208, 1
          %s515 = scalar_lea.vmem [#allocation8], %s514
          %s517 = ssub.s32 16, 16
          %518 = vsyncadd %s513, %s517
          %s519 = smul.addr %s38, 16
          %s520 = scalar_lea.hbm %s6, %s519
          %s522 = sshll.u32 %s515, 4
          %s523 = int_to_ptr.vmem [resolvable:$true] %s522
          %525 = dma.hbm_to_vmem [thread:$0]  %s520, 16, %s523, %s513
        $region44: #{tpu_custom_call.1} parent=23 // pred_fallthru
          _
        // Predicated region
        $region45: #{tpu_custom_call.1} parent=23 // pred_check
          %p526 = pneg %p244
        $region46: #{tpu_custom_call.1} parent=23 // pred_check_branch
          %528 = sbr.rel (%p526) target = $region48
        $region47: #{tpu_custom_call.1} parent=23 // pred_region
          %s529 = sand.u32 %s30, 1
          %s530 = scalar_lea.sflag [#allocation10], %s529
          %s531 = sand.u32 %s234, 1
          %s532 = scalar_lea.vmem [#allocation9], %s531
          %s534 = ssub.s32 16, 16
          %535 = vsyncadd %s530, %s534
          %s536 = smul.addr %s38, 16
          %s537 = scalar_lea.hbm %s7, %s536
          %s539 = sshll.u32 %s532, 4
          %s540 = int_to_ptr.vmem [resolvable:$true] %s539
          %542 = dma.hbm_to_vmem [thread:$0]  %s537, 16, %s540, %s530
        $region48: #{tpu_custom_call.1} parent=23 // pred_fallthru
          _
        // Predicated region
        $region49: #{tpu_custom_call.1} parent=23 // pred_check
          %p543 = pneg %p270
        $region50: #{tpu_custom_call.1} parent=23 // pred_check_branch
          %545 = sbr.rel (%p543) target = $region52
        $region51: #{tpu_custom_call.1} parent=23 // pred_region
          %p546 = scmp.lt.s32.totalorder %s38, 1
          %s547 = scalar_select %p546, %s38, 1
          %s548 = smul.addr %s547, 4
          %s549 = smul.addr %s548, 4
          %s550 = scalar_lea.vmem %s8, %s549
        $region52: #{tpu_custom_call.1} parent=23 // pred_fallthru
          _
        // Predicated region
        $region53: #{tpu_custom_call.1} parent=23 // pred_check
          %p551 = pneg %p296
        $region54: #{tpu_custom_call.1} parent=23 // pred_check_branch
          %553 = sbr.rel (%p551) target = $region56
        $region55: #{tpu_custom_call.1} parent=23 // pred_region
          %s554 = sand.u32 %s30, 1
          %s555 = scalar_lea.sflag [#allocation10], %s554
          %s556 = sand.u32 %s286, 1
          %s557 = scalar_lea.vmem [#allocation11], %s556
          %s559 = ssub.s32 16, 16
          %560 = vsyncadd %s555, %s559
          %s561 = smul.addr %s38, 16
          %s562 = scalar_lea.hbm %s9, %s561
          %s564 = sshll.u32 %s557, 4
          %s565 = int_to_ptr.vmem [resolvable:$true] %s564
          %567 = dma.hbm_to_vmem [thread:$0]  %s562, 16, %s565, %s555
        $region56: #{tpu_custom_call.1} parent=23 // pred_fallthru
          _
        // Predicated region
        $region57: #{tpu_custom_call.1} parent=23 // pred_check
          %p568 = pneg %p322
        $region58: #{tpu_custom_call.1} parent=23 // pred_check_branch
          %570 = sbr.rel (%p568) target = $region60
        $region59: #{tpu_custom_call.1} parent=23 // pred_region
          %p571 = scmp.lt.s32.totalorder %s38, 1
          %s572 = scalar_select %p571, %s38, 1
          %s573 = smul.addr %s572, 8
          %s574 = smul.addr %s573, 4
          %s575 = scalar_lea.vmem %s10, %s574
        $region60: #{tpu_custom_call.1} parent=23 // pred_fallthru
          _
        // Predicated region
        $region61: #{tpu_custom_call.1} parent=23 // pred_check
          %p576 = pneg %p348
        $region62: #{tpu_custom_call.1} parent=23 // pred_check_branch
          %578 = sbr.rel (%p576) target = $region64
        $region63: #{tpu_custom_call.1} parent=23 // pred_region
          %p579 = scmp.lt.s32.totalorder %s38, 1
          %s580 = scalar_select %p579, %s38, 1
          %s581 = scalar_lea.vmem %s11, %s580
        $region64: #{tpu_custom_call.1} parent=23 // pred_fallthru
          _
        // Predicated region
        $region65: #{tpu_custom_call.1} parent=23 // pred_check
          %p582 = pneg %p374
        $region66: #{tpu_custom_call.1} parent=23 // pred_check_branch
          %584 = sbr.rel (%p582) target = $region68
        $region67: #{tpu_custom_call.1} parent=23 // pred_region
          %p585 = scmp.lt.s32.totalorder %s38, 1
          %s586 = scalar_select %p585, %s38, 1
          %s587 = scalar_lea.vmem %s12, %s586
        $region68: #{tpu_custom_call.1} parent=23 // pred_fallthru
          _
        // Predicated region
        $region69: #{tpu_custom_call.1} parent=23 // pred_check
          %p588 = pneg %p400
        $region70: #{tpu_custom_call.1} parent=23 // pred_check_branch
          %590 = sbr.rel (%p588) target = $region72
        $region71: #{tpu_custom_call.1} parent=23 // pred_region
          %p591 = scmp.lt.s32.totalorder %s38, 1
          %s592 = scalar_select %p591, %s38, 1
          %s593 = scalar_lea.vmem %s13, %s592
        $region72: #{tpu_custom_call.1} parent=23 // pred_fallthru
          _
      $region24: #{tpu_custom_call.1} parent=5 // pred_fallthru
        _
      %p594 = scmp.le.s32.totalorder 1, %s30
      %p595 = scmp.lt.s32.totalorder %s30, 5
      %p596 = pnand %p594, %p595
      %p597 = pneg %p596
      // Predicated region
      $region73: #{tpu_custom_call.1} parent=5 // pred_check
        _
      $region74: #{tpu_custom_call.1} parent=5 // pred_check_branch
        %599 = sbr.rel (%p596) target = $region76
      $region75: #{tpu_custom_call.1} parent=5 // pred_region
        %s600 = ssub.s32 %s30, 1
        // Predicated region
        $region77: #{tpu_custom_call.1} parent=75 // pred_check
          %p601 = pneg %p68
        $region78: #{tpu_custom_call.1} parent=75 // pred_check_branch
          %603 = sbr.rel (%p601) target = $region80
        $region79: #{tpu_custom_call.1} parent=75 // pred_region
          %604 = dma.done [#allocation4], 128
        $region80: #{tpu_custom_call.1} parent=75 // pred_fallthru
          _
        %s605 = sand.u32 %s35, 1
        %s606 = scalar_lea.sflag [#allocation7], %s605
        %s607 = sand.u32 %s185, 1
        %s608 = scalar_lea.vmem [#allocation6], %s607
        // Predicated region
        $region81: #{tpu_custom_call.1} parent=75 // pred_check
          %p609 = pneg %p198
        $region82: #{tpu_custom_call.1} parent=75 // pred_check_branch
          %611 = sbr.rel (%p609) target = $region84
        $region83: #{tpu_custom_call.1} parent=75 // pred_region
          %612 = dma.done %s606, 16
        $region84: #{tpu_custom_call.1} parent=75 // pred_fallthru
          _
        %s613 = sand.u32 %s35, 1
        %s614 = scalar_lea.sflag [#allocation7], %s613
        %s615 = sand.u32 %s211, 1
        %s616 = scalar_lea.vmem [#allocation8], %s615
        // Predicated region
        $region85: #{tpu_custom_call.1} parent=75 // pred_check
          %p617 = pneg %p224
        $region86: #{tpu_custom_call.1} parent=75 // pred_check_branch
          %619 = sbr.rel (%p617) target = $region88
        $region87: #{tpu_custom_call.1} parent=75 // pred_region
          %620 = dma.done %s614, 16
        $region88: #{tpu_custom_call.1} parent=75 // pred_fallthru
          _
        %s621 = sand.u32 %s35, 1
        %s622 = scalar_lea.sflag [#allocation10], %s621
        %s623 = sand.u32 %s237, 1
        %s624 = scalar_lea.vmem [#allocation9], %s623
        // Predicated region
        $region89: #{tpu_custom_call.1} parent=75 // pred_check
          %p625 = pneg %p250
        $region90: #{tpu_custom_call.1} parent=75 // pred_check_branch
          %627 = sbr.rel (%p625) target = $region92
        $region91: #{tpu_custom_call.1} parent=75 // pred_region
          %628 = dma.done %s622, 16
        $region92: #{tpu_custom_call.1} parent=75 // pred_fallthru
          _
        %s629 = sand.u32 %s35, 1
        %s630 = scalar_lea.sflag [#allocation10], %s629
        %s631 = sand.u32 %s289, 1
        %s632 = scalar_lea.vmem [#allocation11], %s631
        // Predicated region
        $region93: #{tpu_custom_call.1} parent=75 // pred_check
          %p633 = pneg %p302
        $region94: #{tpu_custom_call.1} parent=75 // pred_check_branch
          %635 = sbr.rel (%p633) target = $region96
        $region95: #{tpu_custom_call.1} parent=75 // pred_region
          %636 = dma.done %s630, 16
        $region96: #{tpu_custom_call.1} parent=75 // pred_fallthru
          _
        %p637 = pneg %p68
        %p638 = pneg %p65
        %p639 = scmp.lt.s32.totalorder %s39, 1
        %s640 = scalar_select %p639, %s39, 1
        %s641 = scalar_lea.vmem %s1, %s640
        %p642 = pneg %p94
        %p643 = pneg %p91
        %p644 = scmp.lt.s32.totalorder %s40, 1
        %s645 = scalar_select %p644, %s40, 1
        %s646 = smul.addr %s645, 4
        %s647 = smul.addr %s646, 4
        %s648 = scalar_lea.vmem %s2, %s647
        %p649 = pneg %p120
        %p650 = pneg %p117
        %p651 = scmp.lt.s32.totalorder %s40, 1
        %s652 = scalar_select %p651, %s40, 1
        %s653 = scalar_lea.vmem %s3, %s652
        %p654 = pneg %p146
        %p655 = pneg %p143
        %p656 = scmp.lt.s32.totalorder %s40, 1
        %s657 = scalar_select %p656, %s40, 1
        %s658 = smul.addr %s657, 4
        %s659 = smul.addr %s658, 4
        %s660 = scalar_lea.vmem %s4, %s659
        %p661 = pneg %p172
        %p662 = pneg %p169
        %s663 = sand.u32 %s35, 1
        %s664 = scalar_lea.sflag [#allocation7], %s663
        %s665 = sand.u32 %s185, 1
        %s666 = scalar_lea.vmem [#allocation6], %s665
        %p667 = pneg %p198
        %p668 = pneg %p195
        %s669 = sand.u32 %s35, 1
        %s670 = scalar_lea.sflag [#allocation7], %s669
        %s671 = sand.u32 %s211, 1
        %s672 = scalar_lea.vmem [#allocation8], %s671
        %p673 = pneg %p224
        %p674 = pneg %p221
        %s675 = sand.u32 %s35, 1
        %s676 = scalar_lea.sflag [#allocation10], %s675
        %s677 = sand.u32 %s237, 1
        %s678 = scalar_lea.vmem [#allocation9], %s677
        %p679 = pneg %p250
        %p680 = pneg %p247
        %p681 = scmp.lt.s32.totalorder %s40, 1
        %s682 = scalar_select %p681, %s40, 1
        %s683 = smul.addr %s682, 4
        %s684 = smul.addr %s683, 4
        %s685 = scalar_lea.vmem %s8, %s684
        %p686 = pneg %p276
        %p687 = pneg %p273
        %s688 = sand.u32 %s35, 1
        %s689 = scalar_lea.sflag [#allocation10], %s688
        %s690 = sand.u32 %s289, 1
        %s691 = scalar_lea.vmem [#allocation11], %s690
        %p692 = pneg %p302
        %p693 = pneg %p299
        %p694 = scmp.lt.s32.totalorder %s40, 1
        %s695 = scalar_select %p694, %s40, 1
        %s696 = smul.addr %s695, 8
        %s697 = smul.addr %s696, 4
        %s698 = scalar_lea.vmem %s10, %s697
        %p699 = pneg %p328
        %p700 = pneg %p325
        %p701 = scmp.lt.s32.totalorder %s40, 1
        %s702 = scalar_select %p701, %s40, 1
        %s703 = scalar_lea.vmem %s11, %s702
        %p704 = pneg %p354
        %p705 = pneg %p351
        %p706 = scmp.lt.s32.totalorder %s40, 1
        %s707 = scalar_select %p706, %s40, 1
        %s708 = scalar_lea.vmem %s12, %s707
        %p709 = pneg %p380
        %p710 = pneg %p377
        %p711 = scmp.lt.s32.totalorder %s40, 1
        %s712 = scalar_select %p711, %s40, 1
        %s713 = scalar_lea.vmem %s13, %s712
        %p714 = pneg %p406
        %p715 = pneg %p403
        %p716 = pneg %p432
        %p717 = pneg %p429
        %s718 = sand.u32 %s419, 1
        %s719 = scalar_lea.sflag [#allocation5], %s718
        %s720 = sand.u32 %s419, 1
        %s721 = scalar_lea.vmem [#allocation12], %s720
        %p722 = scmp.lt.s32.totalorder %s39, 1
        %s723 = scalar_select %p722, %s39, 1
        %s724 = scalar_lea.vmem %s1, %s723
        %p725 = scmp.lt.s32.totalorder %s40, 1
        %s726 = scalar_select %p725, %s40, 1
        %s727 = smul.addr %s726, 4
        %s728 = smul.addr %s727, 4
        %s729 = scalar_lea.vmem %s2, %s728
        %p730 = scmp.lt.s32.totalorder %s40, 1
        %s731 = scalar_select %p730, %s40, 1
        %s732 = scalar_lea.vmem %s3, %s731
        %p733 = scmp.lt.s32.totalorder %s40, 1
        %s734 = scalar_select %p733, %s40, 1
        %s735 = smul.addr %s734, 4
        %s736 = smul.addr %s735, 4
        %s737 = scalar_lea.vmem %s4, %s736
        %p738 = scmp.lt.s32.totalorder %s40, 1
        %s739 = scalar_select %p738, %s40, 1
        %s740 = smul.addr %s739, 4
        %s741 = smul.addr %s740, 4
        %s742 = scalar_lea.vmem %s8, %s741
        %p743 = scmp.lt.s32.totalorder %s40, 1
        %s744 = scalar_select %p743, %s40, 1
        %s745 = smul.addr %s744, 8
        %s746 = smul.addr %s745, 4
        %s747 = scalar_lea.vmem %s10, %s746
        %p748 = scmp.lt.s32.totalorder %s40, 1
        %s749 = scalar_select %p748, %s40, 1
        %s750 = scalar_lea.vmem %s11, %s749
        %p751 = scmp.lt.s32.totalorder %s40, 1
        %s752 = scalar_select %p751, %s40, 1
        %s753 = scalar_lea.vmem %s12, %s752
        %p754 = scmp.lt.s32.totalorder %s40, 1
        %s755 = scalar_select %p754, %s40, 1
        %s756 = scalar_lea.vmem %s13, %s755
        %p758 = scmp.eq.s32.totalorder %s40, 0
        // Predicated region
        $region97: #{tpu_custom_call.1} parent=75 // pred_check
          %p759 = pneg %p758
        $region98: #{tpu_custom_call.1} parent=75 // pred_check_branch
          %761 = sbr.rel (%p759) target = $region100
        $region99: #{tpu_custom_call.1} parent=75 // pred_region
          %v762 = vld [vmem:[#allocation3] sm:$0xff]
          %vm763 = vcmask 261120
          %764 = vst.msk [vmem:[#allocation2] sm:$0xff] %vm763, %v762
        $region100: #{tpu_custom_call.1} parent=75 // pred_fallthru
          _
        %v765 = vld [vmem:[#allocation2] sm:$0xff]
        %v766 = vld [vmem:[%s724] sm:$0x1]
        %v767 = vpack.c.bf16 %v765, %v765
        %v768 = vld [vmem:[%s729] sm:$0xf]
        %v769 = vld [vmem:[%s729 + $0x4] sm:$0xf]
        %v770 = vld [vmem:[%s729 + $0x8] sm:$0xf]
        %v771 = vld [vmem:[%s729 + $0xc] sm:$0xf]
        %v772 = vld [vmem:[%s732] sm:$0x1]
        %v774 = vlaneseq
        %v775 = vshrl.u32 %v774, 7
        %v776 = vsub.s32 0, %v775
        %v777 = vrot.slane %v772, %v776
        %v783 = vunpack.c.l.b16 %v768
        %v784 = vunpack.c.l.b16 %v769
        %v785 = vunpack.c.l.b16 %v770
        %v786 = vunpack.c.l.b16 %v771
        %v787 = vpack.c.b16 %v784, %v783
        %v788 = vpack.c.b16 %v786, %v785
        %vm791 = vcmask 261120
        %v793 = vsel %vm791, %v767, 0
        %795 = vmatprep.subr.bf16.mxu0 0
        %796 = vmatpush1.bf16.msra.mxu0 %v787
        %797 = vmatprep.subr.bf16.mxu0 0
        %798 = vmatpush1.bf16.msra.mxu0 %v788
        %799 = vmatprep.subr.bf16.mxu0 0
        %800 = vmatpush1.bf16.msra.mxu0 0
        %801 = vmatprep.subr.bf16.mxu0 0
        %802 = vmatpush1.bf16.msra.mxu0 0
        %803 = vmatprep.subr.bf16.mxu0 0
        %804 = vmatpush1.bf16.msra.mxu0 0
        %805 = vmatprep.subr.bf16.mxu0 0
        %806 = vmatpush1.bf16.msra.mxu0 0
        %807 = vmatprep.subr.bf16.mxu0 0
        %808 = vmatpush1.bf16.msra.mxu0 0
        %809 = vmatprep.subr.bf16.mxu0 0
        %810 = vmatpush1.bf16.msra.mxu0 0
        %811 = vmatprep.subr.bf16.mxu0 0
        %812 = vmatpush1.bf16.msra.mxu0 0
        %813 = vmatprep.subr.bf16.mxu0 0
        %814 = vmatpush1.bf16.msra.mxu0 0
        %815 = vmatprep.subr.bf16.mxu0 0
        %816 = vmatpush1.bf16.msra.mxu0 0
        %817 = vmatprep.subr.bf16.mxu0 0
        %818 = vmatpush1.bf16.msra.mxu0 0
        %819 = vmatprep.subr.bf16.mxu0 0
        %820 = vmatpush1.bf16.msra.mxu0 0
        %821 = vmatprep.subr.bf16.mxu0 0
        %822 = vmatpush1.bf16.msra.mxu0 0
        %823 = vmatprep.subr.bf16.mxu0 0
        %824 = vmatpush1.bf16.msra.mxu0 0
        %825 = vmatprep.subr.bf16.mxu0 0
        %826 = vmatpush1.bf16.msra.mxu0 0
        %827 = vmatprep.mubr.bf16.mxu0 0
        %828 = vmatmul.mubr.bf16.gmra.mrb[0].mxu0 %v793
        %v829 = vpop.f32.mrb[0].mxu0
        %v830 = vadd.f32 %v777, %v829
        %v831 = vpop.f32.mrb[0].mxu0
        %v832 = vpop.f32.mrb[0].mxu0
        %v833 = vpop.f32.mrb[0].mxu0
        %834 = vdwg.mxu0
        %v835 = vpack.c.bf16 %v830, %v830
        %v837 = vlaneseq
        %v838 = vshrl.u32 %v837, 7
        %v839 = vsub.s32 0, %v838
        %v840 = vrot.slane %v766, %v839
        %843 = vrot.lane.b32.xlu0 %v835, 96
        %v844 = vpop.permute.xlu0 %843
        %vm845 = vcmask 130048
        %v847 = vsel %vm845, %v835, 0
        %v850 = vsel %vm845, %v844, 0
        %852 = vmatprep.subr.bf16.mxu0 0
        %853 = vmatpush1.bf16.xpose.msra.mxu0 %v850
        %854 = vmatprep.subr.bf16.mxu0 0
        %855 = vmatpush1.bf16.xpose.msra.mxu0 0
        %856 = vmatprep.subr.bf16.mxu0 0
        %857 = vmatpush1.bf16.xpose.msra.mxu0 0
        %858 = vmatprep.subr.bf16.mxu0 0
        %859 = vmatpush1.bf16.xpose.msra.mxu0 0
        %860 = vmatprep.subr.bf16.mxu0 0
        %861 = vmatpush1.bf16.xpose.msra.mxu0 0
        %862 = vmatprep.subr.bf16.mxu0 0
        %863 = vmatpush1.bf16.xpose.msra.mxu0 0
        %864 = vmatprep.subr.bf16.mxu0 0
        %865 = vmatpush1.bf16.xpose.msra.mxu0 0
        %866 = vmatprep.subr.bf16.mxu0 0
        %867 = vmatpush1.bf16.xpose.msra.mxu0 0
        %868 = vmatprep.subr.bf16.mxu0 0
        %869 = vmatpush1.bf16.xpose.msra.mxu0 0
        %870 = vmatprep.subr.bf16.mxu0 0
        %871 = vmatpush1.bf16.xpose.msra.mxu0 0
        %872 = vmatprep.subr.bf16.mxu0 0
        %873 = vmatpush1.bf16.xpose.msra.mxu0 0
        %874 = vmatprep.subr.bf16.mxu0 0
        %875 = vmatpush1.bf16.xpose.msra.mxu0 0
        %876 = vmatprep.subr.bf16.mxu0 0
        %877 = vmatpush1.bf16.xpose.msra.mxu0 0
        %878 = vmatprep.subr.bf16.mxu0 0
        %879 = vmatpush1.bf16.xpose.msra.mxu0 0
        %880 = vmatprep.subr.bf16.mxu0 0
        %881 = vmatpush1.bf16.xpose.msra.mxu0 0
        %882 = vmatprep.subr.bf16.mxu0 0
        %883 = vmatpush1.bf16.xpose.msra.mxu0 0
        %884 = vmatprep.mubr.bf16.mxu0 0
        %885 = vmatmul.mubr.bf16.gmra.mrb[0].mxu0 %v847
        %v886 = vpop.f32.mrb[0].mxu0
        %v887 = vadd.f32 %v840, %v886
        %v888 = vpop.f32.mrb[0].mxu0
        %v889 = vpop.f32.mrb[0].mxu0
        %v890 = vpop.f32.mrb[0].mxu0
        %891 = vdwg.mxu0
        %vm892 = vcmask 64512
        %v893 = vsel %vm892, %v887, -inf
        %894 = vmax.xlane.f32.xlu0 %v893
        %v895 = vpop.xlane.xlu0 %894
        %v896 = vsub.f32 %v887, %v895
        %v897 = vmul.f32 %v896, 1.442695
        %v898 = vpow.pop %v897
        %v899 = vsel %vm892, %v898, 0.0
        %900 = vadd.xlane.f32.xlu0 %v899
        %v901 = vpop.xlane.xlu0 %900
        %v902 = vrcp.pop %v901
        %v903 = vmul.f32 %v898, %v902
        %v904 = vpack.c.bf16 %v903, %v903
        %905 = vrot.lane.b32.xlu0 %v835, 64
        %v906 = vpop.permute.xlu0 %905
        %v908 = vsel %vm892, %v904, 0
        %vm910 = vcmask 1043456
        %v912 = vsel %vm910, %v906, 0
        %914 = vmatprep.subr.bf16.mxu0 0
        %915 = vmatpush1.bf16.msra.mxu0 %v912
        %916 = vmatprep.subr.bf16.mxu0 0
        %917 = vmatpush1.bf16.msra.mxu0 0
        %918 = vmatprep.subr.bf16.mxu0 0
        %919 = vmatpush1.bf16.msra.mxu0 0
        %920 = vmatprep.subr.bf16.mxu0 0
        %921 = vmatpush1.bf16.msra.mxu0 0
        %922 = vmatprep.subr.bf16.mxu0 0
        %923 = vmatpush1.bf16.msra.mxu0 0
        %924 = vmatprep.subr.bf16.mxu0 0
        %925 = vmatpush1.bf16.msra.mxu0 0
        %926 = vmatprep.subr.bf16.mxu0 0
        %927 = vmatpush1.bf16.msra.mxu0 0
        %928 = vmatprep.subr.bf16.mxu0 0
        %929 = vmatpush1.bf16.msra.mxu0 0
        %930 = vmatprep.subr.bf16.mxu0 0
        %931 = vmatpush1.bf16.msra.mxu0 0
        %932 = vmatprep.subr.bf16.mxu0 0
        %933 = vmatpush1.bf16.msra.mxu0 0
        %934 = vmatprep.subr.bf16.mxu0 0
        %935 = vmatpush1.bf16.msra.mxu0 0
        %936 = vmatprep.subr.bf16.mxu0 0
        %937 = vmatpush1.bf16.msra.mxu0 0
        %938 = vmatprep.subr.bf16.mxu0 0
        %939 = vmatpush1.bf16.msra.mxu0 0
        %940 = vmatprep.subr.bf16.mxu0 0
        %941 = vmatpush1.bf16.msra.mxu0 0
        %942 = vmatprep.subr.bf16.mxu0 0
        %943 = vmatpush1.bf16.msra.mxu0 0
        %944 = vmatprep.subr.bf16.mxu0 0
        %945 = vmatpush1.bf16.msra.mxu0 0
        %946 = vmatprep.mubr.bf16.mxu0 0
        %947 = vmatmul.mubr.bf16.gmra.mrb[0].mxu0 %v908
        %v948 = vpop.f32.mrb[0].mxu0
        %v949 = vadd.f32 0.0, %v948
        %v950 = vpop.f32.mrb[0].mxu0
        %v951 = vpop.f32.mrb[0].mxu0
        %v952 = vpop.f32.mrb[0].mxu0
        %953 = vdwg.mxu0
        %954 = vrot.lane.b32.xlu0 %v835, 112
        %v955 = vpop.permute.xlu0 %954
        %956 = vrot.lane.b32.xlu0 %v835, 80
        %v957 = vpop.permute.xlu0 %956
        %v959 = vsel %vm845, %v955, 0
        %v962 = vsel %vm845, %v957, 0
        %964 = vmatprep.subr.bf16.mxu0 0
        %965 = vmatpush1.bf16.xpose.msra.mxu0 %v962
        %966 = vmatprep.subr.bf16.mxu0 0
        %967 = vmatpush1.bf16.xpose.msra.mxu0 0
        %968 = vmatprep.subr.bf16.mxu0 0
        %969 = vmatpush1.bf16.xpose.msra.mxu0 0
        %970 = vmatprep.subr.bf16.mxu0 0
        %971 = vmatpush1.bf16.xpose.msra.mxu0 0
        %972 = vmatprep.subr.bf16.mxu0 0
        %973 = vmatpush1.bf16.xpose.msra.mxu0 0
        %974 = vmatprep.subr.bf16.mxu0 0
        %975 = vmatpush1.bf16.xpose.msra.mxu0 0
        %976 = vmatprep.subr.bf16.mxu0 0
        %977 = vmatpush1.bf16.xpose.msra.mxu0 0
        %978 = vmatprep.subr.bf16.mxu0 0
        %979 = vmatpush1.bf16.xpose.msra.mxu0 0
        %980 = vmatprep.subr.bf16.mxu0 0
        %981 = vmatpush1.bf16.xpose.msra.mxu0 0
        %982 = vmatprep.subr.bf16.mxu0 0
        %983 = vmatpush1.bf16.xpose.msra.mxu0 0
        %984 = vmatprep.subr.bf16.mxu0 0
        %985 = vmatpush1.bf16.xpose.msra.mxu0 0
        %986 = vmatprep.subr.bf16.mxu0 0
        %987 = vmatpush1.bf16.xpose.msra.mxu0 0
        %988 = vmatprep.subr.bf16.mxu0 0
        %989 = vmatpush1.bf16.xpose.msra.mxu0 0
        %990 = vmatprep.subr.bf16.mxu0 0
        %991 = vmatpush1.bf16.xpose.msra.mxu0 0
        %992 = vmatprep.subr.bf16.mxu0 0
        %993 = vmatpush1.bf16.xpose.msra.mxu0 0
        %994 = vmatprep.subr.bf16.mxu0 0
        %995 = vmatpush1.bf16.xpose.msra.mxu0 0
        %996 = vmatprep.mubr.bf16.mxu0 0
        %997 = vmatmul.mubr.bf16.gmra.mrb[0].mxu0 %v959
        %v998 = vpop.f32.mrb[0].mxu0
        %v999 = vadd.f32 %v840, %v998
        %v1000 = vpop.f32.mrb[0].mxu0
        %v1001 = vpop.f32.mrb[0].mxu0
        %v1002 = vpop.f32.mrb[0].mxu0
        %1003 = vdwg.mxu0
        %v1004 = vsel %vm892, %v999, -inf
        %1005 = vmax.xlane.f32.xlu0 %v1004
        %v1006 = vpop.xlane.xlu0 %1005
        %v1007 = vsub.f32 %v999, %v1006
        %v1008 = vmul.f32 %v1007, 1.442695
        %v1009 = vpow.pop %v1008
        %v1010 = vsel %vm892, %v1009, 0.0
        %1011 = vadd.xlane.f32.xlu0 %v1010
        %v1012 = vpop.xlane.xlu0 %1011
        %v1013 = vrcp.pop %v1012
        %v1014 = vmul.f32 %v1009, %v1013
        %v1015 = vpack.c.bf16 %v1014, %v1014
        %1016 = vrot.lane.b32.xlu0 %v835, 48
        %v1017 = vpop.permute.xlu0 %1016
        %v1019 = vsel %vm892, %v1015, 0
        %v1022 = vsel %vm910, %v1017, 0
        %1024 = vmatprep.subr.bf16.mxu0 0
        %1025 = vmatpush1.bf16.msra.mxu0 %v1022
        %1026 = vmatprep.subr.bf16.mxu0 0
        %1027 = vmatpush1.bf16.msra.mxu0 0
        %1028 = vmatprep.subr.bf16.mxu0 0
        %1029 = vmatpush1.bf16.msra.mxu0 0
        %1030 = vmatprep.subr.bf16.mxu0 0
        %1031 = vmatpush1.bf16.msra.mxu0 0
        %1032 = vmatprep.subr.bf16.mxu0 0
        %1033 = vmatpush1.bf16.msra.mxu0 0
        %1034 = vmatprep.subr.bf16.mxu0 0
        %1035 = vmatpush1.bf16.msra.mxu0 0
        %1036 = vmatprep.subr.bf16.mxu0 0
        %1037 = vmatpush1.bf16.msra.mxu0 0
        %1038 = vmatprep.subr.bf16.mxu0 0
        %1039 = vmatpush1.bf16.msra.mxu0 0
        %1040 = vmatprep.subr.bf16.mxu0 0
        %1041 = vmatpush1.bf16.msra.mxu0 0
        %1042 = vmatprep.subr.bf16.mxu0 0
        %1043 = vmatpush1.bf16.msra.mxu0 0
        %1044 = vmatprep.subr.bf16.mxu0 0
        %1045 = vmatpush1.bf16.msra.mxu0 0
        %1046 = vmatprep.subr.bf16.mxu0 0
        %1047 = vmatpush1.bf16.msra.mxu0 0
        %1048 = vmatprep.subr.bf16.mxu0 0
        %1049 = vmatpush1.bf16.msra.mxu0 0
        %1050 = vmatprep.subr.bf16.mxu0 0
        %1051 = vmatpush1.bf16.msra.mxu0 0
        %1052 = vmatprep.subr.bf16.mxu0 0
        %1053 = vmatpush1.bf16.msra.mxu0 0
        %1054 = vmatprep.subr.bf16.mxu0 0
        %1055 = vmatpush1.bf16.msra.mxu0 0
        %1056 = vmatprep.mubr.bf16.mxu0 0
        %1057 = vmatmul.mubr.bf16.gmra.mrb[0].mxu0 %v1019
        %v1058 = vpop.f32.mrb[0].mxu0
        %v1059 = vadd.f32 0.0, %v1058
        %v1060 = vpop.f32.mrb[0].mxu0
        %v1061 = vpop.f32.mrb[0].mxu0
        %v1062 = vpop.f32.mrb[0].mxu0
        %1063 = vdwg.mxu0
        %1065 = vrot.lane.b32.xlu0 %v1059, 16
        %v1066 = vpop.permute.xlu0 %1065
        %v1068 = vsel %vm845, %v949, %v1066
        %v1069 = vpack.c.bf16 %v1068, %v1068
        %v1070 = vld [vmem:[%s737] sm:$0xf]
        %v1071 = vld [vmem:[%s737 + $0x4] sm:$0xf]
        %v1072 = vld [vmem:[%s737 + $0x8] sm:$0xf]
        %v1073 = vld [vmem:[%s737 + $0xc] sm:$0xf]
        %v1074 = vld [vmem:[%s608] sm:$0x1]
        %v1076 = vlaneseq
        %v1077 = vshrl.u32 %v1076, 7
        %v1078 = vsub.s32 0, %v1077
        %v1079 = vrot.slane %v1074, %v1078
        %v1085 = vunpack.c.l.b16 %v1070
        %v1086 = vunpack.c.l.b16 %v1071
        %v1087 = vunpack.c.l.b16 %v1072
        %v1088 = vunpack.c.l.b16 %v1073
        %v1089 = vpack.c.b16 %v1086, %v1085
        %v1090 = vpack.c.b16 %v1088, %v1087
        %v1094 = vsel %vm791, %v1069, 0
        %1096 = vmatprep.subr.bf16.mxu0 0
        %1097 = vmatpush1.bf16.msra.mxu0 %v1089
        %1098 = vmatprep.subr.bf16.mxu0 0
        %1099 = vmatpush1.bf16.msra.mxu0 %v1090
        %1100 = vmatprep.subr.bf16.mxu0 0
        %1101 = vmatpush1.bf16.msra.mxu0 0
        %1102 = vmatprep.subr.bf16.mxu0 0
        %1103 = vmatpush1.bf16.msra.mxu0 0
        %1104 = vmatprep.subr.bf16.mxu0 0
        %1105 = vmatpush1.bf16.msra.mxu0 0
        %1106 = vmatprep.subr.bf16.mxu0 0
        %1107 = vmatpush1.bf16.msra.mxu0 0
        %1108 = vmatprep.subr.bf16.mxu0 0
        %1109 = vmatpush1.bf16.msra.mxu0 0
        %1110 = vmatprep.subr.bf16.mxu0 0
        %1111 = vmatpush1.bf16.msra.mxu0 0
        %1112 = vmatprep.subr.bf16.mxu0 0
        %1113 = vmatpush1.bf16.msra.mxu0 0
        %1114 = vmatprep.subr.bf16.mxu0 0
        %1115 = vmatpush1.bf16.msra.mxu0 0
        %1116 = vmatprep.subr.bf16.mxu0 0
        %1117 = vmatpush1.bf16.msra.mxu0 0
        %1118 = vmatprep.subr.bf16.mxu0 0
        %1119 = vmatpush1.bf16.msra.mxu0 0
        %1120 = vmatprep.subr.bf16.mxu0 0
        %1121 = vmatpush1.bf16.msra.mxu0 0
        %1122 = vmatprep.subr.bf16.mxu0 0
        %1123 = vmatpush1.bf16.msra.mxu0 0
        %1124 = vmatprep.subr.bf16.mxu0 0
        %1125 = vmatpush1.bf16.msra.mxu0 0
        %1126 = vmatprep.subr.bf16.mxu0 0
        %1127 = vmatpush1.bf16.msra.mxu0 0
        %1128 = vmatprep.mubr.bf16.mxu0 0
        %1129 = vmatmul.mubr.bf16.gmra.mrb[0].mxu0 %v1094
        %v1130 = vpop.f32.mrb[0].mxu0
        %v1131 = vadd.f32 %v1079, %v1130
        %v1132 = vpop.f32.mrb[0].mxu0
        %v1133 = vpop.f32.mrb[0].mxu0
        %v1134 = vpop.f32.mrb[0].mxu0
        %1135 = vdwg.mxu0
        %v1136 = vadd.f32 %v765, %v1131
        %v1137 = vsel %vm791, %v1136, 0.0
        %1138 = vadd.xlane.f32.xlu0 %v1137
        %v1139 = vpop.xlane.xlu0 %1138
        %v1140 = vrcp.pop 32.0
        %v1141 = vmul.f32 %v1139, %v1140
        %v1142 = vmul.f32 %v1136, %v1136
        %v1143 = vsel %vm791, %v1142, 0.0
        %1144 = vadd.xlane.f32.xlu0 %v1143
        %v1145 = vpop.xlane.xlu0 %1144
        %v1146 = vmul.f32 %v1145, %v1140
        %v1147 = vmul.f32 %v1141, %v1141
        %v1148 = vsub.f32 %v1146, %v1147
        %v1149 = vmax.f32 %v1148, 0.0
        %v1150 = vadd.f32 %v1149, 1e-05
        %v1151 = vrsqrt.pop %v1150
        %v1152 = vsub.f32 %v1136, %v1141
        %v1153 = vmul.f32 %v1152, %v1151
        %v1154 = vld [vmem:[%s616] sm:$0x1]
        %v1156 = vlaneseq
        %v1157 = vshrl.u32 %v1156, 7
        %v1158 = vsub.s32 0, %v1157
        %v1159 = vrot.slane %v1154, %v1158
        %v1161 = vmul.f32 %v1153, %v1159
        %v1162 = vld [vmem:[%s624] sm:$0x1]
        %v1164 = vlaneseq
        %v1165 = vshrl.u32 %v1164, 7
        %v1166 = vsub.s32 0, %v1165
        %v1167 = vrot.slane %v1162, %v1166
        %v1169 = vadd.f32 %v1161, %v1167
        %v1170 = vpack.c.bf16 %v1169, %v1169
        %v1171 = vld [vmem:[%s742] sm:$0xf]
        %v1172 = vld [vmem:[%s742 + $0x4] sm:$0xf]
        %v1173 = vld [vmem:[%s742 + $0x8] sm:$0xf]
        %v1174 = vld [vmem:[%s742 + $0xc] sm:$0xf]
        %v1175 = vld [vmem:[%s632] sm:$0x1]
        %v1177 = vlaneseq
        %v1178 = vshrl.u32 %v1177, 7
        %v1179 = vsub.s32 0, %v1178
        %v1180 = vrot.slane %v1175, %v1179
        %v1186 = vunpack.c.l.b16 %v1171
        %v1187 = vunpack.c.l.b16 %v1172
        %v1188 = vunpack.c.l.b16 %v1173
        %v1189 = vunpack.c.l.b16 %v1174
        %v1190 = vpack.c.b16 %v1187, %v1186
        %v1191 = vpack.c.b16 %v1189, %v1188
        %v1195 = vsel %vm791, %v1170, 0
        %1197 = vmatprep.subr.bf16.mxu0 0
        %1198 = vmatpush1.bf16.msra.mxu0 %v1190
        %1199 = vmatprep.subr.bf16.mxu0 0
        %1200 = vmatpush1.bf16.msra.mxu0 %v1191
        %1201 = vmatprep.subr.bf16.mxu0 0
        %1202 = vmatpush1.bf16.msra.mxu0 0
        %1203 = vmatprep.subr.bf16.mxu0 0
        %1204 = vmatpush1.bf16.msra.mxu0 0
        %1205 = vmatprep.subr.bf16.mxu0 0
        %1206 = vmatpush1.bf16.msra.mxu0 0
        %1207 = vmatprep.subr.bf16.mxu0 0
        %1208 = vmatpush1.bf16.msra.mxu0 0
        %1209 = vmatprep.subr.bf16.mxu0 0
        %1210 = vmatpush1.bf16.msra.mxu0 0
        %1211 = vmatprep.subr.bf16.mxu0 0
        %1212 = vmatpush1.bf16.msra.mxu0 0
        %1213 = vmatprep.subr.bf16.mxu0 0
        %1214 = vmatpush1.bf16.msra.mxu0 0
        %1215 = vmatprep.subr.bf16.mxu0 0
        %1216 = vmatpush1.bf16.msra.mxu0 0
        %1217 = vmatprep.subr.bf16.mxu0 0
        %1218 = vmatpush1.bf16.msra.mxu0 0
        %1219 = vmatprep.subr.bf16.mxu0 0
        %1220 = vmatpush1.bf16.msra.mxu0 0
        %1221 = vmatprep.subr.bf16.mxu0 0
        %1222 = vmatpush1.bf16.msra.mxu0 0
        %1223 = vmatprep.subr.bf16.mxu0 0
        %1224 = vmatpush1.bf16.msra.mxu0 0
        %1225 = vmatprep.subr.bf16.mxu0 0
        %1226 = vmatpush1.bf16.msra.mxu0 0
        %1227 = vmatprep.subr.bf16.mxu0 0
        %1228 = vmatpush1.bf16.msra.mxu0 0
        %1229 = vmatprep.mubr.bf16.mxu0 0
        %1230 = vmatmul.mubr.bf16.gmra.mrb[0].mxu0 %v1195
        %v1231 = vpop.f32.mrb[0].mxu0
        %v1232 = vadd.f32 %v1180, %v1231
        %v1233 = vpop.f32.mrb[0].mxu0
        %v1234 = vpop.f32.mrb[0].mxu0
        %v1235 = vpop.f32.mrb[0].mxu0
        %1236 = vdwg.mxu0
        %v1237 = vmax.f32 %v1232, 0.0
        %v1238 = vpack.c.bf16 %v1237, %v1237
        %v1239 = vld [vmem:[%s747] sm:$0xf]
        %v1240 = vld [vmem:[%s747 + $0x4] sm:$0xf]
        %v1241 = vld [vmem:[%s747 + $0x8] sm:$0xf]
        %v1242 = vld [vmem:[%s747 + $0xc] sm:$0xf]
        %v1243 = vld [vmem:[%s747 + $0x10] sm:$0xf]
        %v1244 = vld [vmem:[%s747 + $0x14] sm:$0xf]
        %v1245 = vld [vmem:[%s747 + $0x18] sm:$0xf]
        %v1246 = vld [vmem:[%s747 + $0x1c] sm:$0xf]
        %v1247 = vld [vmem:[%s750] sm:$0x1]
        %v1249 = vlaneseq
        %v1250 = vshrl.u32 %v1249, 7
        %v1251 = vsub.s32 0, %v1250
        %v1252 = vrot.slane %v1247, %v1251
        %v1262 = vunpack.c.l.b16 %v1239
        %v1263 = vunpack.c.l.b16 %v1240
        %v1264 = vunpack.c.l.b16 %v1241
        %v1265 = vunpack.c.l.b16 %v1242
        %v1266 = vunpack.c.l.b16 %v1243
        %v1267 = vunpack.c.l.b16 %v1244
        %v1268 = vunpack.c.l.b16 %v1245
        %v1269 = vunpack.c.l.b16 %v1246
        %v1270 = vpack.c.b16 %v1263, %v1262
        %v1271 = vpack.c.b16 %v1265, %v1264
        %v1272 = vpack.c.b16 %v1267, %v1266
        %v1273 = vpack.c.b16 %v1269, %v1268
        %vm1278 = vcmask 523264
        %v1280 = vsel %vm1278, %v1238, 0
        %1282 = vmatprep.subr.bf16.mxu0 0
        %1283 = vmatpush1.bf16.msra.mxu0 %v1270
        %1284 = vmatprep.subr.bf16.mxu0 0
        %1285 = vmatpush1.bf16.msra.mxu0 %v1271
        %1286 = vmatprep.subr.bf16.mxu0 0
        %1287 = vmatpush1.bf16.msra.mxu0 %v1272
        %1288 = vmatprep.subr.bf16.mxu0 0
        %1289 = vmatpush1.bf16.msra.mxu0 %v1273
        %1290 = vmatprep.subr.bf16.mxu0 0
        %1291 = vmatpush1.bf16.msra.mxu0 0
        %1292 = vmatprep.subr.bf16.mxu0 0
        %1293 = vmatpush1.bf16.msra.mxu0 0
        %1294 = vmatprep.subr.bf16.mxu0 0
        %1295 = vmatpush1.bf16.msra.mxu0 0
        %1296 = vmatprep.subr.bf16.mxu0 0
        %1297 = vmatpush1.bf16.msra.mxu0 0
        %1298 = vmatprep.subr.bf16.mxu0 0
        %1299 = vmatpush1.bf16.msra.mxu0 0
        %1300 = vmatprep.subr.bf16.mxu0 0
        %1301 = vmatpush1.bf16.msra.mxu0 0
        %1302 = vmatprep.subr.bf16.mxu0 0
        %1303 = vmatpush1.bf16.msra.mxu0 0
        %1304 = vmatprep.subr.bf16.mxu0 0
        %1305 = vmatpush1.bf16.msra.mxu0 0
        %1306 = vmatprep.subr.bf16.mxu0 0
        %1307 = vmatpush1.bf16.msra.mxu0 0
        %1308 = vmatprep.subr.bf16.mxu0 0
        %1309 = vmatpush1.bf16.msra.mxu0 0
        %1310 = vmatprep.subr.bf16.mxu0 0
        %1311 = vmatpush1.bf16.msra.mxu0 0
        %1312 = vmatprep.subr.bf16.mxu0 0
        %1313 = vmatpush1.bf16.msra.mxu0 0
        %1314 = vmatprep.mubr.bf16.mxu0 0
        %1315 = vmatmul.mubr.bf16.gmra.mrb[0].mxu0 %v1280
        %v1316 = vpop.f32.mrb[0].mxu0
        %v1317 = vadd.f32 %v1252, %v1316
        %v1318 = vpop.f32.mrb[0].mxu0
        %v1319 = vpop.f32.mrb[0].mxu0
        %v1320 = vpop.f32.mrb[0].mxu0
        %1321 = vdwg.mxu0
        %v1322 = vadd.f32 %v1169, %v1317
        %v1323 = vsel %vm791, %v1322, 0.0
        %1324 = vadd.xlane.f32.xlu0 %v1323
        %v1325 = vpop.xlane.xlu0 %1324
        %v1326 = vmul.f32 %v1325, %v1140
        %v1327 = vmul.f32 %v1322, %v1322
        %v1328 = vsel %vm791, %v1327, 0.0
        %1329 = vadd.xlane.f32.xlu0 %v1328
        %v1330 = vpop.xlane.xlu0 %1329
        %v1331 = vmul.f32 %v1330, %v1140
        %v1332 = vmul.f32 %v1326, %v1326
        %v1333 = vsub.f32 %v1331, %v1332
        %v1334 = vmax.f32 %v1333, 0.0
        %v1335 = vadd.f32 %v1334, 1e-05
        %v1336 = vrsqrt.pop %v1335
        %v1337 = vsub.f32 %v1322, %v1326
        %v1338 = vmul.f32 %v1337, %v1336
        %v1339 = vld [vmem:[%s753] sm:$0x1]
        %v1341 = vlaneseq
        %v1342 = vshrl.u32 %v1341, 7
        %v1343 = vsub.s32 0, %v1342
        %v1344 = vrot.slane %v1339, %v1343
        %v1346 = vmul.f32 %v1338, %v1344
        %v1347 = vld [vmem:[%s756] sm:$0x1]
        %v1349 = vlaneseq
        %v1350 = vshrl.u32 %v1349, 7
        %v1351 = vsub.s32 0, %v1350
        %v1352 = vrot.slane %v1347, %v1351
        %v1354 = vadd.f32 %v1346, %v1352
        %1355 = vst.msk [vmem:[#allocation2] sm:$0xff] %vm791, %v1354
        %p1356 = scmp.eq.s32.totalorder %s40, 1
        // Predicated region
        $region101: #{tpu_custom_call.1} parent=75 // pred_check
          %p1357 = pneg %p1356
        $region102: #{tpu_custom_call.1} parent=75 // pred_check_branch
          %1359 = sbr.rel (%p1357) target = $region104
        $region103: #{tpu_custom_call.1} parent=75 // pred_region
          %vm1360 = vcmp.eq.f32.partialorder %v766, 0.0
          %v1361 = vsel %vm1360, 1, 0
          %v1362 = vcvt.s32.f32 %v1361
          %v1363 = vlaneseq
          %v1364 = vshrl.u32 %v1363, 7
          %v1365 = vsub.s32 0, %v1364
          %v1366 = vrot.slane %v1362, %v1365
          %1368 = vbcast.lane.b32.xlu0 %v1366, 256
          %v1369 = vpop.permute.xlu0 %1368
          %v1370 = vmul.f32 %v1354, %v1369
          %vm1371 = vcmask 57344
          %v1372 = vsel %vm1371, %v1362, 0.0
          %1373 = vadd.xlane.f32.xlu0 %v1372
          %v1374 = vpop.xlane.xlu0 %1373
          %v1375 = vmax.f32 %v1374, 1e-07
          %v1376 = vsel %vm791, %v1370, 0.0
          %v1377 = vrot.slane %v1376, 4
          %v1378 = vadd.f32 %v1376, %v1377
          %v1379 = vrot.slane %v1378, 2
          %v1380 = vadd.f32 %v1378, %v1379
          %v1381 = vrot.slane %v1380, 1
          %v1382 = vadd.f32 %v1380, %v1381
          %v1383 = vrcp.pop %v1375
          %v1384 = vmul.f32 %v1382, %v1383
          %vm1385 = vcmask 253952
          %1386 = vst.msk [vmem:[%s721] sm:$0x1] %vm1385, %v1384
        $region104: #{tpu_custom_call.1} parent=75 // pred_fallthru
          _
        %s1387 = sand.u32 %s419, 1
        %s1388 = scalar_lea.sflag [#allocation5], %s1387
        %s1389 = sand.u32 %s419, 1
        %s1390 = scalar_lea.vmem [#allocation12], %s1389
        // Predicated region
        $region105: #{tpu_custom_call.1} parent=75 // pred_check
          %p1391 = pneg %p429
        $region106: #{tpu_custom_call.1} parent=75 // pred_check_branch
          %1393 = sbr.rel (%p1391) target = $region108
        $region107: #{tpu_custom_call.1} parent=75 // pred_region
          %s1395 = ssub.s32 16, 16
          %1396 = vsyncadd %s1388, %s1395
          %s1397 = smul.addr %s39, 16
          %s1398 = scalar_lea.hbm %s14, %s1397
          %s1400 = sshll.u32 %s1390, 4
          %s1401 = int_to_ptr.vmem [resolvable:$true] %s1400
          %1403 = dma.vmem_to_hbm [thread:$0]  %s1401, 16, %s1398, %s1388
        $region108: #{tpu_custom_call.1} parent=75 // pred_fallthru
          _
      $region76: #{tpu_custom_call.1} parent=5 // pred_fallthru
        _
      %p1404 = scmp.le.s32.totalorder 2, %s30
      // Predicated region
      $region109: #{tpu_custom_call.1} parent=5 // pred_check
        %p1405 = pneg %p1404
      $region110: #{tpu_custom_call.1} parent=5 // pred_check_branch
        %1407 = sbr.rel (%p1405) target = $region112
      $region111: #{tpu_custom_call.1} parent=5 // pred_region
        %s1408 = ssub.s32 %s30, 2
        // Predicated region
        $region113: #{tpu_custom_call.1} parent=111 // pred_check
          %p1409 = pneg %p435
        $region114: #{tpu_custom_call.1} parent=111 // pred_check_branch
          %1411 = sbr.rel (%p1409) target = $region116
        $region115: #{tpu_custom_call.1} parent=111 // pred_region
          %s1412 = sand.u32 %s420, 1
          %s1413 = scalar_lea.sflag [#allocation5], %s1412
          %s1414 = sand.u32 %s420, 1
          %s1415 = scalar_lea.vmem [#allocation12], %s1414
          %1416 = dma.done %s1413, 16
        $region116: #{tpu_custom_call.1} parent=111 // pred_fallthru
          _
      $region112: #{tpu_custom_call.1} parent=5 // pred_fallthru
        _
    $region6: #{tpu_custom_call.1} parent=1 // loop_footer
      %s34 = sadd.s32 1, %s30
    $region7: #{tpu_custom_call.1} parent=1 // loop_footer_branch
      %29 = sbr.rel target = $region3
    $region8: #{tpu_custom_call.1} parent=1 // loop_exit
      _
    %1417 = vsyncpa [#allocation4], 1
    %s1418 = scalar_lea.sflag [#allocation4], 1
    %1419 = vsyncpa %s1418, 1
    %1420 = vsyncpa [#allocation7], 1
    %s1421 = scalar_lea.sflag [#allocation7], 1
    %1422 = vsyncpa %s1421, 1
    %1423 = vsyncpa [#allocation10], 1
    %s1424 = scalar_lea.sflag [#allocation10], 1
    %1425 = vsyncpa %s1424, 1
    %1426 = vsyncpa [#allocation5], 1
    %s1427 = scalar_lea.sflag [#allocation5], 1
    %1428 = vsyncpa %s1427, 1

// kernel: tpu_custom_call.1
$region0: #{tpu_custom_call.1}
  #allocation0 [shape = 'u32[]', space=smem, size = 0x4, offset = 0x4, fixed_abs, tag = 'smem constant byte address 0x4 - core index']
  #allocation1 [shape = 'u32[144,128]{1,0:T(1,128)}', space=vmem, size = 0x12000, scoped, tag = 'internal scratch']
  #allocation2 [shape = 'f32[1,8,32]{2,1,0:T(8,128)}', space=vmem, size = 0x1000, scoped, tag = 'scratch operand']
  %s0 = inlined_call_operand.hbm [shape: f32[2,8,32], index: 0, kind: input, shape index: {}]
  %s1 = inlined_call_operand.vmem [shape: f32[2,1,8], index: 1, kind: input, shape index: {}]
  %s2 = inlined_call_operand.vmem [shape: bf16[2,32,96], index: 2, kind: input, shape index: {}]
  %s3 = inlined_call_operand.vmem [shape: f32[2,1,96], index: 3, kind: input, shape index: {}]
  %s4 = inlined_call_operand.vmem [shape: bf16[2,32,32], index: 4, kind: input, shape index: {}]
  %s5 = inlined_call_operand.hbm [shape: f32[2,1,32], index: 5, kind: input, shape index: {}]
  %s6 = inlined_call_operand.hbm [shape: f32[2,1,32], index: 6, kind: input, shape index: {}]
  %s7 = inlined_call_operand.hbm [shape: f32[2,1,32], index: 7, kind: input, shape index: {}]
  %s8 = inlined_call_operand.vmem [shape: bf16[2,32,64], index: 8, kind: input, shape index: {}]
  %s9 = inlined_call_operand.hbm [shape: f32[2,1,64], index: 9, kind: input, shape index: {}]
  %s10 = inlined_call_operand.vmem [shape: bf16[2,64,32], index: 10, kind: input, shape index: {}]
  %s11 = inlined_call_operand.vmem [shape: f32[2,1,32], index: 11, kind: input, shape index: {}]
  %s12 = inlined_call_operand.vmem [shape: f32[2,1,32], index: 12, kind: input, shape index: {}]
  %s13 = inlined_call_operand.vmem [shape: f32[2,1,32], index: 13, kind: input, shape index: {}]
  %s14 = inlined_call_operand.hbm [shape: f32[2,1,32], index: 14, kind: output, shape index: {}]
  %s15 = sld [smem:[#allocation0]]
  $region117: #{tpu_custom_call.1} parent=0
    _
  %s17 = ssub.s32 1, %s15
  %s18 = scalar_select 0, %s17, %s15
  $region1: #{tpu_custom_call.1} parent=0
    #allocation3 [shape = 'u8[8192]{0}', space=vmem, size = 0x2000, scoped, tag = 'input window, operand 0']
    #allocation4 [shape = 's32[2]{0}', space=sflag, size = 0x8, scoped, tag = 'scoped memory for tpu_custom_call.1']
    #allocation5 [shape = 's32[2]{0}', space=sflag, size = 0x8, scoped, tag = 'scoped memory for tpu_custom_call.1']
    #allocation6 [shape = 'u8[1024]{0}', space=vmem, size = 0x400, scoped, tag = 'input window, operand 5']
    #allocation7 [shape = 's32[2]{0}', space=sflag, size = 0x8, scoped, tag = 'scoped memory for tpu_custom_call.1']
    #allocation8 [shape = 'u8[1024]{0}', space=vmem, size = 0x400, scoped, tag = 'input window, operand 6']
    #allocation9 [shape = 'u8[1024]{0}', space=vmem, size = 0x400, scoped, tag = 'input window, operand 7']
    #allocation10 [shape = 's32[2]{0}', space=sflag, size = 0x8, scoped, tag = 'scoped memory for tpu_custom_call.1']
    #allocation11 [shape = 'u8[1024]{0}', space=vmem, size = 0x400, scoped, tag = 'input window, operand 9']
    #allocation12 [shape = 'u8[1024]{0}', space=vmem, size = 0x400, scoped, tag = 'output window, operand 0']
    %19 = vsyncpa [#allocation4], 0
    %s20 = scalar_lea.sflag [#allocation4], 1
    %21 = vsyncpa %s20, 0
    %22 = vsyncpa [#allocation7], 0
    %s23 = scalar_lea.sflag [#allocation7], 1
    %24 = vsyncpa %s23, 0
    %25 = vsyncpa [#allocation10], 0
    %s26 = scalar_lea.sflag [#allocation10], 1
    %27 = vsyncpa %s26, 0
    %28 = vsyncpa [#allocation5], 0
    %s29 = scalar_lea.sflag [#allocation5], 1
    %30 = vsyncpa %s29, 0
    loop: start=0, step=1, limit=6
    $region2: #{tpu_custom_call.1} parent=1 // loop_pre_header
      _
    $region3: #{tpu_custom_call.1} parent=1 // loop_header
      %s32 = sphi 0, %s36
      %p33 = scmp.ge.s32.totalorder %s32, 6
      %s39 = sphi 0, %s51
      %s40 = sphi 0, %s47
      %s41 = sphi 0, %s39
      %s42 = sphi 0, %s40
      %s43 = sphi 0, %s41
      %s44 = sphi 0, %s42
      %s54 = sphi 0, %s56
      %s57 = sphi 0, %s54
      %s58 = sphi 0, %s57
      %s74 = sphi 0, %s58
      %s80 = sphi 0, %s82
      %s83 = sphi 0, %s80
      %s84 = sphi 0, %s83
      %s100 = sphi 0, %s84
      %s106 = sphi 0, %s108
      %s109 = sphi 0, %s106
      %s110 = sphi 0, %s109
      %s126 = sphi 0, %s110
      %s132 = sphi 0, %s134
      %s135 = sphi 0, %s132
      %s136 = sphi 0, %s135
      %s152 = sphi 0, %s136
      %s158 = sphi 0, %s160
      %s161 = sphi 0, %s158
      %s162 = sphi 0, %s161
      %s178 = sphi 0, %s162
      %s184 = sphi 0, %s186
      %s187 = sphi 0, %s184
      %s188 = sphi 0, %s187
      %s204 = sphi 0, %s188
      %s210 = sphi 0, %s212
      %s213 = sphi 0, %s210
      %s214 = sphi 0, %s213
      %s230 = sphi 0, %s214
      %s236 = sphi 0, %s238
      %s239 = sphi 0, %s236
      %s240 = sphi 0, %s239
      %s256 = sphi 0, %s240
      %s262 = sphi 0, %s264
      %s265 = sphi 0, %s262
      %s266 = sphi 0, %s265
      %s282 = sphi 0, %s266
      %s288 = sphi 0, %s290
      %s291 = sphi 0, %s288
      %s292 = sphi 0, %s291
      %s308 = sphi 0, %s292
      %s314 = sphi 0, %s316
      %s317 = sphi 0, %s314
      %s318 = sphi 0, %s317
      %s334 = sphi 0, %s318
      %s340 = sphi 0, %s342
      %s343 = sphi 0, %s340
      %s344 = sphi 0, %s343
      %s360 = sphi 0, %s344
      %s366 = sphi 0, %s368
      %s369 = sphi 0, %s366
      %s370 = sphi 0, %s369
      %s386 = sphi 0, %s370
      %s392 = sphi 0, %s394
      %s395 = sphi 0, %s392
      %s396 = sphi 0, %s395
      %s412 = sphi 0, %s396
      %s418 = sphi 0, %s420
      %s421 = sphi 0, %s418
      %s422 = sphi 0, %s421
      %s438 = sphi 0, %s422
    $region4: #{tpu_custom_call.1} parent=1 // loop_header_branch
      %35 = sbr.rel (%p33) target = $region8
    $region5: #{tpu_custom_call.1} parent=1 // loop_body
      %s37 = ssub.s32 %s32, 1
      %s38 = ssub.s32 %s32, 2
      %s45 = sadd.s32 1, %s40
      %p46 = scmp.ge.s32.totalorder %s45, 2
      %s47 = scalar_select %p46, 0, %s45
      %s48 = sadd.s32 1, %s39
      %s49 = scalar_select %p46, %s48, %s39
      %p50 = scmp.ge.s32.totalorder %s49, 2
      %s51 = scalar_select %p50, 0, %s49
      %s52 = ssub.s32 %s39, %s51
      %p53 = scmp.eq.s32.totalorder %s52, 0
      %s55 = sadd.s32 %s54, 1
      %s56 = scalar_select %p53, %s54, %s55
      %p59 = pneg %p53
      %p60 = scmp.eq.s32.totalorder %s32, 3
      %p61 = por %p59, %p60
      %p62 = scmp.ne.s32.totalorder %s54, %s57
      %p63 = scmp.eq.s32.totalorder %s32, 0
      %p64 = por %p62, %p63
      %p65 = scmp.ne.s32.totalorder %s54, %s57
      %p66 = scmp.eq.s32.totalorder %s37, 3
      %p67 = por %p65, %p66
      %p68 = scmp.ne.s32.totalorder %s57, %s58
      %p69 = scmp.eq.s32.totalorder %s37, 0
      %p70 = por %p68, %p69
      %p71 = scmp.ne.s32.totalorder %s57, %s58
      %p72 = scmp.eq.s32.totalorder %s38, 3
      %p73 = por %p71, %p72
      %p75 = scmp.ne.s32.totalorder %s58, %s74
      %p76 = scmp.eq.s32.totalorder %s38, 0
      %p77 = por %p75, %p76
      %s78 = ssub.s32 %s39, %s51
      %p79 = scmp.eq.s32.totalorder %s78, 0
      %s81 = sadd.s32 %s80, 1
      %s82 = scalar_select %p79, %s80, %s81
      %p85 = pneg %p79
      %p86 = scmp.eq.s32.totalorder %s32, 3
      %p87 = por %p85, %p86
      %p88 = scmp.ne.s32.totalorder %s80, %s83
      %p89 = scmp.eq.s32.totalorder %s32, 0
      %p90 = por %p88, %p89
      %p91 = scmp.ne.s32.totalorder %s80, %s83
      %p92 = scmp.eq.s32.totalorder %s37, 3
      %p93 = por %p91, %p92
      %p94 = scmp.ne.s32.totalorder %s83, %s84
      %p95 = scmp.eq.s32.totalorder %s37, 0
      %p96 = por %p94, %p95
      %p97 = scmp.ne.s32.totalorder %s83, %s84
      %p98 = scmp.eq.s32.totalorder %s38, 3
      %p99 = por %p97, %p98
      %p101 = scmp.ne.s32.totalorder %s84, %s100
      %p102 = scmp.eq.s32.totalorder %s38, 0
      %p103 = por %p101, %p102
      %s104 = ssub.s32 %s40, %s47
      %p105 = scmp.eq.s32.totalorder %s104, 0
      %s107 = sadd.s32 %s106, 1
      %s108 = scalar_select %p105, %s106, %s107
      %p111 = pneg %p105
      %p112 = scmp.eq.s32.totalorder %s32, 3
      %p113 = por %p111, %p112
      %p114 = scmp.ne.s32.totalorder %s106, %s109
      %p115 = scmp.eq.s32.totalorder %s32, 0
      %p116 = por %p114, %p115
      %p117 = scmp.ne.s32.totalorder %s106, %s109
      %p118 = scmp.eq.s32.totalorder %s37, 3
      %p119 = por %p117, %p118
      %p120 = scmp.ne.s32.totalorder %s109, %s110
      %p121 = scmp.eq.s32.totalorder %s37, 0
      %p122 = por %p120, %p121
      %p123 = scmp.ne.s32.totalorder %s109, %s110
      %p124 = scmp.eq.s32.totalorder %s38, 3
      %p125 = por %p123, %p124
      %p127 = scmp.ne.s32.totalorder %s110, %s126
      %p128 = scmp.eq.s32.totalorder %s38, 0
      %p129 = por %p127, %p128
      %s130 = ssub.s32 %s40, %s47
      %p131 = scmp.eq.s32.totalorder %s130, 0
      %s133 = sadd.s32 %s132, 1
      %s134 = scalar_select %p131, %s132, %s133
      %p137 = pneg %p131
      %p138 = scmp.eq.s32.totalorder %s32, 3
      %p139 = por %p137, %p138
      %p140 = scmp.ne.s32.totalorder %s132, %s135
      %p141 = scmp.eq.s32.totalorder %s32, 0
      %p142 = por %p140, %p141
      %p143 = scmp.ne.s32.totalorder %s132, %s135
      %p144 = scmp.eq.s32.totalorder %s37, 3
      %p145 = por %p143, %p144
      %p146 = scmp.ne.s32.totalorder %s135, %s136
      %p147 = scmp.eq.s32.totalorder %s37, 0
      %p148 = por %p146, %p147
      %p149 = scmp.ne.s32.totalorder %s135, %s136
      %p150 = scmp.eq.s32.totalorder %s38, 3
      %p151 = por %p149, %p150
      %p153 = scmp.ne.s32.totalorder %s136, %s152
      %p154 = scmp.eq.s32.totalorder %s38, 0
      %p155 = por %p153, %p154
      %s156 = ssub.s32 %s40, %s47
      %p157 = scmp.eq.s32.totalorder %s156, 0
      %s159 = sadd.s32 %s158, 1
      %s160 = scalar_select %p157, %s158, %s159
      %p163 = pneg %p157
      %p164 = scmp.eq.s32.totalorder %s32, 3
      %p165 = por %p163, %p164
      %p166 = scmp.ne.s32.totalorder %s158, %s161
      %p167 = scmp.eq.s32.totalorder %s32, 0
      %p168 = por %p166, %p167
      %p169 = scmp.ne.s32.totalorder %s158, %s161
      %p170 = scmp.eq.s32.totalorder %s37, 3
      %p171 = por %p169, %p170
      %p172 = scmp.ne.s32.totalorder %s161, %s162
      %p173 = scmp.eq.s32.totalorder %s37, 0
      %p174 = por %p172, %p173
      %p175 = scmp.ne.s32.totalorder %s161, %s162
      %p176 = scmp.eq.s32.totalorder %s38, 3
      %p177 = por %p175, %p176
      %p179 = scmp.ne.s32.totalorder %s162, %s178
      %p180 = scmp.eq.s32.totalorder %s38, 0
      %p181 = por %p179, %p180
      %s182 = ssub.s32 %s40, %s47
      %p183 = scmp.eq.s32.totalorder %s182, 0
      %s185 = sadd.s32 %s184, 1
      %s186 = scalar_select %p183, %s184, %s185
      %p189 = pneg %p183
      %p190 = scmp.eq.s32.totalorder %s32, 3
      %p191 = por %p189, %p190
      %p192 = scmp.ne.s32.totalorder %s184, %s187
      %p193 = scmp.eq.s32.totalorder %s32, 0
      %p194 = por %p192, %p193
      %p195 = scmp.ne.s32.totalorder %s184, %s187
      %p196 = scmp.eq.s32.totalorder %s37, 3
      %p197 = por %p195, %p196
      %p198 = scmp.ne.s32.totalorder %s187, %s188
      %p199 = scmp.eq.s32.totalorder %s37, 0
      %p200 = por %p198, %p199
      %p201 = scmp.ne.s32.totalorder %s187, %s188
      %p202 = scmp.eq.s32.totalorder %s38, 3
      %p203 = por %p201, %p202
      %p205 = scmp.ne.s32.totalorder %s188, %s204
      %p206 = scmp.eq.s32.totalorder %s38, 0
      %p207 = por %p205, %p206
      %s208 = ssub.s32 %s40, %s47
      %p209 = scmp.eq.s32.totalorder %s208, 0
      %s211 = sadd.s32 %s210, 1
      %s212 = scalar_select %p209, %s210, %s211
      %p215 = pneg %p209
      %p216 = scmp.eq.s32.totalorder %s32, 3
      %p217 = por %p215, %p216
      %p218 = scmp.ne.s32.totalorder %s210, %s213
      %p219 = scmp.eq.s32.totalorder %s32, 0
      %p220 = por %p218, %p219
      %p221 = scmp.ne.s32.totalorder %s210, %s213
      %p222 = scmp.eq.s32.totalorder %s37, 3
      %p223 = por %p221, %p222
      %p224 = scmp.ne.s32.totalorder %s213, %s214
      %p225 = scmp.eq.s32.totalorder %s37, 0
      %p226 = por %p224, %p225
      %p227 = scmp.ne.s32.totalorder %s213, %s214
      %p228 = scmp.eq.s32.totalorder %s38, 3
      %p229 = por %p227, %p228
      %p231 = scmp.ne.s32.totalorder %s214, %s230
      %p232 = scmp.eq.s32.totalorder %s38, 0
      %p233 = por %p231, %p232
      %s234 = ssub.s32 %s40, %s47
      %p235 = scmp.eq.s32.totalorder %s234, 0
      %s237 = sadd.s32 %s236, 1
      %s238 = scalar_select %p235, %s236, %s237
      %p241 = pneg %p235
      %p242 = scmp.eq.s32.totalorder %s32, 3
      %p243 = por %p241, %p242
      %p244 = scmp.ne.s32.totalorder %s236, %s239
      %p245 = scmp.eq.s32.totalorder %s32, 0
      %p246 = por %p244, %p245
      %p247 = scmp.ne.s32.totalorder %s236, %s239
      %p248 = scmp.eq.s32.totalorder %s37, 3
      %p249 = por %p247, %p248
      %p250 = scmp.ne.s32.totalorder %s239, %s240
      %p251 = scmp.eq.s32.totalorder %s37, 0
      %p252 = por %p250, %p251
      %p253 = scmp.ne.s32.totalorder %s239, %s240
      %p254 = scmp.eq.s32.totalorder %s38, 3
      %p255 = por %p253, %p254
      %p257 = scmp.ne.s32.totalorder %s240, %s256
      %p258 = scmp.eq.s32.totalorder %s38, 0
      %p259 = por %p257, %p258
      %s260 = ssub.s32 %s40, %s47
      %p261 = scmp.eq.s32.totalorder %s260, 0
      %s263 = sadd.s32 %s262, 1
      %s264 = scalar_select %p261, %s262, %s263
      %p267 = pneg %p261
      %p268 = scmp.eq.s32.totalorder %s32, 3
      %p269 = por %p267, %p268
      %p270 = scmp.ne.s32.totalorder %s262, %s265
      %p271 = scmp.eq.s32.totalorder %s32, 0
      %p272 = por %p270, %p271
      %p273 = scmp.ne.s32.totalorder %s262, %s265
      %p274 = scmp.eq.s32.totalorder %s37, 3
      %p275 = por %p273, %p274
      %p276 = scmp.ne.s32.totalorder %s265, %s266
      %p277 = scmp.eq.s32.totalorder %s37, 0
      %p278 = por %p276, %p277
      %p279 = scmp.ne.s32.totalorder %s265, %s266
      %p280 = scmp.eq.s32.totalorder %s38, 3
      %p281 = por %p279, %p280
      %p283 = scmp.ne.s32.totalorder %s266, %s282
      %p284 = scmp.eq.s32.totalorder %s38, 0
      %p285 = por %p283, %p284
      %s286 = ssub.s32 %s40, %s47
      %p287 = scmp.eq.s32.totalorder %s286, 0
      %s289 = sadd.s32 %s288, 1
      %s290 = scalar_select %p287, %s288, %s289
      %p293 = pneg %p287
      %p294 = scmp.eq.s32.totalorder %s32, 3
      %p295 = por %p293, %p294
      %p296 = scmp.ne.s32.totalorder %s288, %s291
      %p297 = scmp.eq.s32.totalorder %s32, 0
      %p298 = por %p296, %p297
      %p299 = scmp.ne.s32.totalorder %s288, %s291
      %p300 = scmp.eq.s32.totalorder %s37, 3
      %p301 = por %p299, %p300
      %p302 = scmp.ne.s32.totalorder %s291, %s292
      %p303 = scmp.eq.s32.totalorder %s37, 0
      %p304 = por %p302, %p303
      %p305 = scmp.ne.s32.totalorder %s291, %s292
      %p306 = scmp.eq.s32.totalorder %s38, 3
      %p307 = por %p305, %p306
      %p309 = scmp.ne.s32.totalorder %s292, %s308
      %p310 = scmp.eq.s32.totalorder %s38, 0
      %p311 = por %p309, %p310
      %s312 = ssub.s32 %s40, %s47
      %p313 = scmp.eq.s32.totalorder %s312, 0
      %s315 = sadd.s32 %s314, 1
      %s316 = scalar_select %p313, %s314, %s315
      %p319 = pneg %p313
      %p320 = scmp.eq.s32.totalorder %s32, 3
      %p321 = por %p319, %p320
      %p322 = scmp.ne.s32.totalorder %s314, %s317
      %p323 = scmp.eq.s32.totalorder %s32, 0
      %p324 = por %p322, %p323
      %p325 = scmp.ne.s32.totalorder %s314, %s317
      %p326 = scmp.eq.s32.totalorder %s37, 3
      %p327 = por %p325, %p326
      %p328 = scmp.ne.s32.totalorder %s317, %s318
      %p329 = scmp.eq.s32.totalorder %s37, 0
      %p330 = por %p328, %p329
      %p331 = scmp.ne.s32.totalorder %s317, %s318
      %p332 = scmp.eq.s32.totalorder %s38, 3
      %p333 = por %p331, %p332
      %p335 = scmp.ne.s32.totalorder %s318, %s334
      %p336 = scmp.eq.s32.totalorder %s38, 0
      %p337 = por %p335, %p336
      %s338 = ssub.s32 %s40, %s47
      %p339 = scmp.eq.s32.totalorder %s338, 0
      %s341 = sadd.s32 %s340, 1
      %s342 = scalar_select %p339, %s340, %s341
      %p345 = pneg %p339
      %p346 = scmp.eq.s32.totalorder %s32, 3
      %p347 = por %p345, %p346
      %p348 = scmp.ne.s32.totalorder %s340, %s343
      %p349 = scmp.eq.s32.totalorder %s32, 0
      %p350 = por %p348, %p349
      %p351 = scmp.ne.s32.totalorder %s340, %s343
      %p352 = scmp.eq.s32.totalorder %s37, 3
      %p353 = por %p351, %p352
      %p354 = scmp.ne.s32.totalorder %s343, %s344
      %p355 = scmp.eq.s32.totalorder %s37, 0
      %p356 = por %p354, %p355
      %p357 = scmp.ne.s32.totalorder %s343, %s344
      %p358 = scmp.eq.s32.totalorder %s38, 3
      %p359 = por %p357, %p358
      %p361 = scmp.ne.s32.totalorder %s344, %s360
      %p362 = scmp.eq.s32.totalorder %s38, 0
      %p363 = por %p361, %p362
      %s364 = ssub.s32 %s40, %s47
      %p365 = scmp.eq.s32.totalorder %s364, 0
      %s367 = sadd.s32 %s366, 1
      %s368 = scalar_select %p365, %s366, %s367
      %p371 = pneg %p365
      %p372 = scmp.eq.s32.totalorder %s32, 3
      %p373 = por %p371, %p372
      %p374 = scmp.ne.s32.totalorder %s366, %s369
      %p375 = scmp.eq.s32.totalorder %s32, 0
      %p376 = por %p374, %p375
      %p377 = scmp.ne.s32.totalorder %s366, %s369
      %p378 = scmp.eq.s32.totalorder %s37, 3
      %p379 = por %p377, %p378
      %p380 = scmp.ne.s32.totalorder %s369, %s370
      %p381 = scmp.eq.s32.totalorder %s37, 0
      %p382 = por %p380, %p381
      %p383 = scmp.ne.s32.totalorder %s369, %s370
      %p384 = scmp.eq.s32.totalorder %s38, 3
      %p385 = por %p383, %p384
      %p387 = scmp.ne.s32.totalorder %s370, %s386
      %p388 = scmp.eq.s32.totalorder %s38, 0
      %p389 = por %p387, %p388
      %s390 = ssub.s32 %s40, %s47
      %p391 = scmp.eq.s32.totalorder %s390, 0
      %s393 = sadd.s32 %s392, 1
      %s394 = scalar_select %p391, %s392, %s393
      %p397 = pneg %p391
      %p398 = scmp.eq.s32.totalorder %s32, 3
      %p399 = por %p397, %p398
      %p400 = scmp.ne.s32.totalorder %s392, %s395
      %p401 = scmp.eq.s32.totalorder %s32, 0
      %p402 = por %p400, %p401
      %p403 = scmp.ne.s32.totalorder %s392, %s395
      %p404 = scmp.eq.s32.totalorder %s37, 3
      %p405 = por %p403, %p404
      %p406 = scmp.ne.s32.totalorder %s395, %s396
      %p407 = scmp.eq.s32.totalorder %s37, 0
      %p408 = por %p406, %p407
      %p409 = scmp.ne.s32.totalorder %s395, %s396
      %p410 = scmp.eq.s32.totalorder %s38, 3
      %p411 = por %p409, %p410
      %p413 = scmp.ne.s32.totalorder %s396, %s412
      %p414 = scmp.eq.s32.totalorder %s38, 0
      %p415 = por %p413, %p414
      %s416 = ssub.s32 %s39, %s51
      %p417 = scmp.eq.s32.totalorder %s416, 0
      %s419 = sadd.s32 %s418, 1
      %s420 = scalar_select %p417, %s418, %s419
      %p423 = pneg %p417
      %p424 = scmp.eq.s32.totalorder %s32, 3
      %p425 = por %p423, %p424
      %p426 = scmp.ne.s32.totalorder %s418, %s421
      %p427 = scmp.eq.s32.totalorder %s32, 0
      %p428 = por %p426, %p427
      %p429 = scmp.ne.s32.totalorder %s418, %s421
      %p430 = scmp.eq.s32.totalorder %s37, 3
      %p431 = por %p429, %p430
      %p432 = scmp.ne.s32.totalorder %s421, %s422
      %p433 = scmp.eq.s32.totalorder %s37, 0
      %p434 = por %p432, %p433
      %p435 = scmp.ne.s32.totalorder %s421, %s422
      %p436 = scmp.eq.s32.totalorder %s38, 3
      %p437 = por %p435, %p436
      %p439 = scmp.ne.s32.totalorder %s422, %s438
      %p440 = scmp.eq.s32.totalorder %s38, 0
      %p441 = por %p439, %p440
      %p442 = scmp.le.s32.totalorder 1, %s32
      %p443 = scmp.lt.s32.totalorder %s32, 5
      %p444 = pnand %p442, %p443
      %p445 = pneg %p444
      // Predicated region
      $region9: #{tpu_custom_call.1} parent=5 // pred_check
        _
      $region10: #{tpu_custom_call.1} parent=5 // pred_check_branch
        %447 = sbr.rel (%p444) target = $region12
      $region11: #{tpu_custom_call.1} parent=5 // pred_region
        %s448 = ssub.s32 %s32, 1
      $region12: #{tpu_custom_call.1} parent=5 // pred_fallthru
        _
      %p449 = scmp.lt.s32.totalorder %s32, 4
      // Predicated region
      $region13: #{tpu_custom_call.1} parent=5 // pred_check
        %p450 = pneg %p449
      $region14: #{tpu_custom_call.1} parent=5 // pred_check_branch
        %452 = sbr.rel (%p450) target = $region16
      $region15: #{tpu_custom_call.1} parent=5 // pred_region
        // Predicated region
        $region17: #{tpu_custom_call.1} parent=15 // pred_check
          %p453 = pneg %p64
        $region18: #{tpu_custom_call.1} parent=15 // pred_check_branch
          %455 = sbr.rel (%p453) target = $region20
        $region19: #{tpu_custom_call.1} parent=15 // pred_region
          %s456 = sand.u32 %s54, 1
          %s457 = scalar_lea.sflag [#allocation4], %s456
          %s458 = sand.u32 %s54, 1
          %s459 = smul.addr %s458, 8
          %s460 = scalar_lea.vmem [#allocation3], %s459
          %s462 = ssub.s32 128, 128
          %463 = vsyncadd %s457, %s462
          %s464 = smul.addr %s39, 128
          %s465 = scalar_lea.hbm %s0, %s464
          %s467 = sshll.u32 %s460, 4
          %s468 = int_to_ptr.vmem [resolvable:$true] %s467
          %470 = dma.hbm_to_vmem [thread:$0]  %s465, 128, %s468, %s457
        $region20: #{tpu_custom_call.1} parent=15 // pred_fallthru
          _
        // Predicated region
        $region21: #{tpu_custom_call.1} parent=15 // pred_check
          %p471 = pneg %p90
        $region22: #{tpu_custom_call.1} parent=15 // pred_check_branch
          %473 = sbr.rel (%p471) target = $region24
        $region23: #{tpu_custom_call.1} parent=15 // pred_region
          %p474 = scmp.lt.s32.totalorder %s39, 1
          %s475 = scalar_select %p474, %s39, 1
          %s476 = scalar_lea.vmem %s1, %s475
        $region24: #{tpu_custom_call.1} parent=15 // pred_fallthru
          _
        // Predicated region
        $region25: #{tpu_custom_call.1} parent=15 // pred_check
          %p477 = pneg %p116
        $region26: #{tpu_custom_call.1} parent=15 // pred_check_branch
          %479 = sbr.rel (%p477) target = $region28
        $region27: #{tpu_custom_call.1} parent=15 // pred_region
          %p480 = scmp.lt.s32.totalorder %s40, 1
          %s481 = scalar_select %p480, %s40, 1
          %s482 = smul.addr %s481, 4
          %s483 = smul.addr %s482, 4
          %s484 = scalar_lea.vmem %s2, %s483
        $region28: #{tpu_custom_call.1} parent=15 // pred_fallthru
          _
        // Predicated region
        $region29: #{tpu_custom_call.1} parent=15 // pred_check
          %p485 = pneg %p142
        $region30: #{tpu_custom_call.1} parent=15 // pred_check_branch
          %487 = sbr.rel (%p485) target = $region32
        $region31: #{tpu_custom_call.1} parent=15 // pred_region
          %p488 = scmp.lt.s32.totalorder %s40, 1
          %s489 = scalar_select %p488, %s40, 1
          %s490 = scalar_lea.vmem %s3, %s489
        $region32: #{tpu_custom_call.1} parent=15 // pred_fallthru
          _
        // Predicated region
        $region33: #{tpu_custom_call.1} parent=15 // pred_check
          %p491 = pneg %p168
        $region34: #{tpu_custom_call.1} parent=15 // pred_check_branch
          %493 = sbr.rel (%p491) target = $region36
        $region35: #{tpu_custom_call.1} parent=15 // pred_region
          %p494 = scmp.lt.s32.totalorder %s40, 1
          %s495 = scalar_select %p494, %s40, 1
          %s496 = smul.addr %s495, 4
          %s497 = smul.addr %s496, 4
          %s498 = scalar_lea.vmem %s4, %s497
        $region36: #{tpu_custom_call.1} parent=15 // pred_fallthru
          _
        // Predicated region
        $region37: #{tpu_custom_call.1} parent=15 // pred_check
          %p499 = pneg %p194
        $region38: #{tpu_custom_call.1} parent=15 // pred_check_branch
          %501 = sbr.rel (%p499) target = $region40
        $region39: #{tpu_custom_call.1} parent=15 // pred_region
          %s502 = sand.u32 %s32, 1
          %s503 = scalar_lea.sflag [#allocation7], %s502
          %s504 = sand.u32 %s184, 1
          %s505 = scalar_lea.vmem [#allocation6], %s504
          %s507 = ssub.s32 16, 16
          %508 = vsyncadd %s503, %s507
          %s509 = smul.addr %s40, 16
          %s510 = scalar_lea.hbm %s5, %s509
          %s512 = sshll.u32 %s505, 4
          %s513 = int_to_ptr.vmem [resolvable:$true] %s512
          %515 = dma.hbm_to_vmem [thread:$0]  %s510, 16, %s513, %s503
        $region40: #{tpu_custom_call.1} parent=15 // pred_fallthru
          _
        // Predicated region
        $region41: #{tpu_custom_call.1} parent=15 // pred_check
          %p516 = pneg %p220
        $region42: #{tpu_custom_call.1} parent=15 // pred_check_branch
          %518 = sbr.rel (%p516) target = $region44
        $region43: #{tpu_custom_call.1} parent=15 // pred_region
          %s519 = sand.u32 %s32, 1
          %s520 = scalar_lea.sflag [#allocation7], %s519
          %s521 = sand.u32 %s210, 1
          %s522 = scalar_lea.vmem [#allocation8], %s521
          %s524 = ssub.s32 16, 16
          %525 = vsyncadd %s520, %s524
          %s526 = smul.addr %s40, 16
          %s527 = scalar_lea.hbm %s6, %s526
          %s529 = sshll.u32 %s522, 4
          %s530 = int_to_ptr.vmem [resolvable:$true] %s529
          %532 = dma.hbm_to_vmem [thread:$0]  %s527, 16, %s530, %s520
        $region44: #{tpu_custom_call.1} parent=15 // pred_fallthru
          _
        // Predicated region
        $region45: #{tpu_custom_call.1} parent=15 // pred_check
          %p533 = pneg %p246
        $region46: #{tpu_custom_call.1} parent=15 // pred_check_branch
          %535 = sbr.rel (%p533) target = $region48
        $region47: #{tpu_custom_call.1} parent=15 // pred_region
          %s536 = sand.u32 %s32, 1
          %s537 = scalar_lea.sflag [#allocation10], %s536
          %s538 = sand.u32 %s236, 1
          %s539 = scalar_lea.vmem [#allocation9], %s538
          %s541 = ssub.s32 16, 16
          %542 = vsyncadd %s537, %s541
          %s543 = smul.addr %s40, 16
          %s544 = scalar_lea.hbm %s7, %s543
          %s546 = sshll.u32 %s539, 4
          %s547 = int_to_ptr.vmem [resolvable:$true] %s546
          %549 = dma.hbm_to_vmem [thread:$0]  %s544, 16, %s547, %s537
        $region48: #{tpu_custom_call.1} parent=15 // pred_fallthru
          _
        // Predicated region
        $region49: #{tpu_custom_call.1} parent=15 // pred_check
          %p550 = pneg %p272
        $region50: #{tpu_custom_call.1} parent=15 // pred_check_branch
          %552 = sbr.rel (%p550) target = $region52
        $region51: #{tpu_custom_call.1} parent=15 // pred_region
          %p553 = scmp.lt.s32.totalorder %s40, 1
          %s554 = scalar_select %p553, %s40, 1
          %s555 = smul.addr %s554, 4
          %s556 = smul.addr %s555, 4
          %s557 = scalar_lea.vmem %s8, %s556
        $region52: #{tpu_custom_call.1} parent=15 // pred_fallthru
          _
        // Predicated region
        $region53: #{tpu_custom_call.1} parent=15 // pred_check
          %p558 = pneg %p298
        $region54: #{tpu_custom_call.1} parent=15 // pred_check_branch
          %560 = sbr.rel (%p558) target = $region56
        $region55: #{tpu_custom_call.1} parent=15 // pred_region
          %s561 = sand.u32 %s32, 1
          %s562 = scalar_lea.sflag [#allocation10], %s561
          %s563 = sand.u32 %s288, 1
          %s564 = scalar_lea.vmem [#allocation11], %s563
          %s566 = ssub.s32 16, 16
          %567 = vsyncadd %s562, %s566
          %s568 = smul.addr %s40, 16
          %s569 = scalar_lea.hbm %s9, %s568
          %s571 = sshll.u32 %s564, 4
          %s572 = int_to_ptr.vmem [resolvable:$true] %s571
          %574 = dma.hbm_to_vmem [thread:$0]  %s569, 16, %s572, %s562
        $region56: #{tpu_custom_call.1} parent=15 // pred_fallthru
          _
        // Predicated region
        $region57: #{tpu_custom_call.1} parent=15 // pred_check
          %p575 = pneg %p324
        $region58: #{tpu_custom_call.1} parent=15 // pred_check_branch
          %577 = sbr.rel (%p575) target = $region60
        $region59: #{tpu_custom_call.1} parent=15 // pred_region
          %p578 = scmp.lt.s32.totalorder %s40, 1
          %s579 = scalar_select %p578, %s40, 1
          %s580 = smul.addr %s579, 8
          %s581 = smul.addr %s580, 4
          %s582 = scalar_lea.vmem %s10, %s581
        $region60: #{tpu_custom_call.1} parent=15 // pred_fallthru
          _
        // Predicated region
        $region61: #{tpu_custom_call.1} parent=15 // pred_check
          %p583 = pneg %p350
        $region62: #{tpu_custom_call.1} parent=15 // pred_check_branch
          %585 = sbr.rel (%p583) target = $region64
        $region63: #{tpu_custom_call.1} parent=15 // pred_region
          %p586 = scmp.lt.s32.totalorder %s40, 1
          %s587 = scalar_select %p586, %s40, 1
          %s588 = scalar_lea.vmem %s11, %s587
        $region64: #{tpu_custom_call.1} parent=15 // pred_fallthru
          _
        // Predicated region
        $region65: #{tpu_custom_call.1} parent=15 // pred_check
          %p589 = pneg %p376
        $region66: #{tpu_custom_call.1} parent=15 // pred_check_branch
          %591 = sbr.rel (%p589) target = $region68
        $region67: #{tpu_custom_call.1} parent=15 // pred_region
          %p592 = scmp.lt.s32.totalorder %s40, 1
          %s593 = scalar_select %p592, %s40, 1
          %s594 = scalar_lea.vmem %s12, %s593
        $region68: #{tpu_custom_call.1} parent=15 // pred_fallthru
          _
        // Predicated region
        $region69: #{tpu_custom_call.1} parent=15 // pred_check
          %p595 = pneg %p402
        $region70: #{tpu_custom_call.1} parent=15 // pred_check_branch
          %597 = sbr.rel (%p595) target = $region72
        $region71: #{tpu_custom_call.1} parent=15 // pred_region
          %p598 = scmp.lt.s32.totalorder %s40, 1
          %s599 = scalar_select %p598, %s40, 1
          %s600 = scalar_lea.vmem %s13, %s599
        $region72: #{tpu_custom_call.1} parent=15 // pred_fallthru
          _
      $region16: #{tpu_custom_call.1} parent=5 // pred_fallthru
        _
      %p601 = scmp.le.s32.totalorder 1, %s32
      %p602 = scmp.lt.s32.totalorder %s32, 5
      %p603 = pnand %p601, %p602
      %p604 = pneg %p603
      // Predicated region
      $region73: #{tpu_custom_call.1} parent=5 // pred_check
        _
      $region74: #{tpu_custom_call.1} parent=5 // pred_check_branch
        %606 = sbr.rel (%p603) target = $region76
      $region75: #{tpu_custom_call.1} parent=5 // pred_region
        %s607 = ssub.s32 %s32, 1
        %s608 = sand.u32 %s57, 1
        %s609 = scalar_lea.sflag [#allocation4], %s608
        %s610 = sand.u32 %s57, 1
        %s611 = smul.addr %s610, 8
        %s612 = scalar_lea.vmem [#allocation3], %s611
        // Predicated region
        $region77: #{tpu_custom_call.1} parent=75 // pred_check
          %p613 = pneg %p70
        $region78: #{tpu_custom_call.1} parent=75 // pred_check_branch
          %615 = sbr.rel (%p613) target = $region80
        $region79: #{tpu_custom_call.1} parent=75 // pred_region
          %616 = dma.done %s609, 128
        $region80: #{tpu_custom_call.1} parent=75 // pred_fallthru
          _
        %s617 = sand.u32 %s37, 1
        %s618 = scalar_lea.sflag [#allocation7], %s617
        %s619 = sand.u32 %s187, 1
        %s620 = scalar_lea.vmem [#allocation6], %s619
        // Predicated region
        $region81: #{tpu_custom_call.1} parent=75 // pred_check
          %p621 = pneg %p200
        $region82: #{tpu_custom_call.1} parent=75 // pred_check_branch
          %623 = sbr.rel (%p621) target = $region84
        $region83: #{tpu_custom_call.1} parent=75 // pred_region
          %624 = dma.done %s618, 16
        $region84: #{tpu_custom_call.1} parent=75 // pred_fallthru
          _
        %s625 = sand.u32 %s37, 1
        %s626 = scalar_lea.sflag [#allocation7], %s625
        %s627 = sand.u32 %s213, 1
        %s628 = scalar_lea.vmem [#allocation8], %s627
        // Predicated region
        $region85: #{tpu_custom_call.1} parent=75 // pred_check
          %p629 = pneg %p226
        $region86: #{tpu_custom_call.1} parent=75 // pred_check_branch
          %631 = sbr.rel (%p629) target = $region88
        $region87: #{tpu_custom_call.1} parent=75 // pred_region
          %632 = dma.done %s626, 16
        $region88: #{tpu_custom_call.1} parent=75 // pred_fallthru
          _
        %s633 = sand.u32 %s37, 1
        %s634 = scalar_lea.sflag [#allocation10], %s633
        %s635 = sand.u32 %s239, 1
        %s636 = scalar_lea.vmem [#allocation9], %s635
        // Predicated region
        $region89: #{tpu_custom_call.1} parent=75 // pred_check
          %p637 = pneg %p252
        $region90: #{tpu_custom_call.1} parent=75 // pred_check_branch
          %639 = sbr.rel (%p637) target = $region92
        $region91: #{tpu_custom_call.1} parent=75 // pred_region
          %640 = dma.done %s634, 16
        $region92: #{tpu_custom_call.1} parent=75 // pred_fallthru
          _
        %s641 = sand.u32 %s37, 1
        %s642 = scalar_lea.sflag [#allocation10], %s641
        %s643 = sand.u32 %s291, 1
        %s644 = scalar_lea.vmem [#allocation11], %s643
        // Predicated region
        $region93: #{tpu_custom_call.1} parent=75 // pred_check
          %p645 = pneg %p304
        $region94: #{tpu_custom_call.1} parent=75 // pred_check_branch
          %647 = sbr.rel (%p645) target = $region96
        $region95: #{tpu_custom_call.1} parent=75 // pred_region
          %648 = dma.done %s642, 16
        $region96: #{tpu_custom_call.1} parent=75 // pred_fallthru
          _
        %s649 = sand.u32 %s57, 1
        %s650 = scalar_lea.sflag [#allocation4], %s649
        %s651 = sand.u32 %s57, 1
        %s652 = smul.addr %s651, 8
        %s653 = scalar_lea.vmem [#allocation3], %s652
        %p654 = pneg %p70
        %p655 = pneg %p67
        %p656 = scmp.lt.s32.totalorder %s41, 1
        %s657 = scalar_select %p656, %s41, 1
        %s658 = scalar_lea.vmem %s1, %s657
        %p659 = pneg %p96
        %p660 = pneg %p93
        %p661 = scmp.lt.s32.totalorder %s42, 1
        %s662 = scalar_select %p661, %s42, 1
        %s663 = smul.addr %s662, 4
        %s664 = smul.addr %s663, 4
        %s665 = scalar_lea.vmem %s2, %s664
        %p666 = pneg %p122
        %p667 = pneg %p119
        %p668 = scmp.lt.s32.totalorder %s42, 1
        %s669 = scalar_select %p668, %s42, 1
        %s670 = scalar_lea.vmem %s3, %s669
        %p671 = pneg %p148
        %p672 = pneg %p145
        %p673 = scmp.lt.s32.totalorder %s42, 1
        %s674 = scalar_select %p673, %s42, 1
        %s675 = smul.addr %s674, 4
        %s676 = smul.addr %s675, 4
        %s677 = scalar_lea.vmem %s4, %s676
        %p678 = pneg %p174
        %p679 = pneg %p171
        %s680 = sand.u32 %s37, 1
        %s681 = scalar_lea.sflag [#allocation7], %s680
        %s682 = sand.u32 %s187, 1
        %s683 = scalar_lea.vmem [#allocation6], %s682
        %p684 = pneg %p200
        %p685 = pneg %p197
        %s686 = sand.u32 %s37, 1
        %s687 = scalar_lea.sflag [#allocation7], %s686
        %s688 = sand.u32 %s213, 1
        %s689 = scalar_lea.vmem [#allocation8], %s688
        %p690 = pneg %p226
        %p691 = pneg %p223
        %s692 = sand.u32 %s37, 1
        %s693 = scalar_lea.sflag [#allocation10], %s692
        %s694 = sand.u32 %s239, 1
        %s695 = scalar_lea.vmem [#allocation9], %s694
        %p696 = pneg %p252
        %p697 = pneg %p249
        %p698 = scmp.lt.s32.totalorder %s42, 1
        %s699 = scalar_select %p698, %s42, 1
        %s700 = smul.addr %s699, 4
        %s701 = smul.addr %s700, 4
        %s702 = scalar_lea.vmem %s8, %s701
        %p703 = pneg %p278
        %p704 = pneg %p275
        %s705 = sand.u32 %s37, 1
        %s706 = scalar_lea.sflag [#allocation10], %s705
        %s707 = sand.u32 %s291, 1
        %s708 = scalar_lea.vmem [#allocation11], %s707
        %p709 = pneg %p304
        %p710 = pneg %p301
        %p711 = scmp.lt.s32.totalorder %s42, 1
        %s712 = scalar_select %p711, %s42, 1
        %s713 = smul.addr %s712, 8
        %s714 = smul.addr %s713, 4
        %s715 = scalar_lea.vmem %s10, %s714
        %p716 = pneg %p330
        %p717 = pneg %p327
        %p718 = scmp.lt.s32.totalorder %s42, 1
        %s719 = scalar_select %p718, %s42, 1
        %s720 = scalar_lea.vmem %s11, %s719
        %p721 = pneg %p356
        %p722 = pneg %p353
        %p723 = scmp.lt.s32.totalorder %s42, 1
        %s724 = scalar_select %p723, %s42, 1
        %s725 = scalar_lea.vmem %s12, %s724
        %p726 = pneg %p382
        %p727 = pneg %p379
        %p728 = scmp.lt.s32.totalorder %s42, 1
        %s729 = scalar_select %p728, %s42, 1
        %s730 = scalar_lea.vmem %s13, %s729
        %p731 = pneg %p408
        %p732 = pneg %p405
        %p733 = pneg %p434
        %p734 = pneg %p431
        %s735 = sand.u32 %s421, 1
        %s736 = scalar_lea.sflag [#allocation5], %s735
        %s737 = sand.u32 %s421, 1
        %s738 = scalar_lea.vmem [#allocation12], %s737
        %p739 = scmp.lt.s32.totalorder %s41, 1
        %s740 = scalar_select %p739, %s41, 1
        %s741 = scalar_lea.vmem %s1, %s740
        %p742 = scmp.lt.s32.totalorder %s42, 1
        %s743 = scalar_select %p742, %s42, 1
        %s744 = smul.addr %s743, 4
        %s745 = smul.addr %s744, 4
        %s746 = scalar_lea.vmem %s2, %s745
        %p747 = scmp.lt.s32.totalorder %s42, 1
        %s748 = scalar_select %p747, %s42, 1
        %s749 = scalar_lea.vmem %s3, %s748
        %p750 = scmp.lt.s32.totalorder %s42, 1
        %s751 = scalar_select %p750, %s42, 1
        %s752 = smul.addr %s751, 4
        %s753 = smul.addr %s752, 4
        %s754 = scalar_lea.vmem %s4, %s753
        %p755 = scmp.lt.s32.totalorder %s42, 1
        %s756 = scalar_select %p755, %s42, 1
        %s757 = smul.addr %s756, 4
        %s758 = smul.addr %s757, 4
        %s759 = scalar_lea.vmem %s8, %s758
        %p760 = scmp.lt.s32.totalorder %s42, 1
        %s761 = scalar_select %p760, %s42, 1
        %s762 = smul.addr %s761, 8
        %s763 = smul.addr %s762, 4
        %s764 = scalar_lea.vmem %s10, %s763
        %p765 = scmp.lt.s32.totalorder %s42, 1
        %s766 = scalar_select %p765, %s42, 1
        %s767 = scalar_lea.vmem %s11, %s766
        %p768 = scmp.lt.s32.totalorder %s42, 1
        %s769 = scalar_select %p768, %s42, 1
        %s770 = scalar_lea.vmem %s12, %s769
        %p771 = scmp.lt.s32.totalorder %s42, 1
        %s772 = scalar_select %p771, %s42, 1
        %s773 = scalar_lea.vmem %s13, %s772
        %p775 = scmp.eq.s32.totalorder %s42, 0
        // Predicated region
        $region97: #{tpu_custom_call.1} parent=75 // pred_check
          %p776 = pneg %p775
        $region98: #{tpu_custom_call.1} parent=75 // pred_check_branch
          %778 = sbr.rel (%p776) target = $region100
        $region99: #{tpu_custom_call.1} parent=75 // pred_region
          %v779 = vld [vmem:[%s612] sm:$0xff]
          %vm780 = vcmask 261120
          %781 = vst.msk [vmem:[#allocation2] sm:$0xff] %vm780, %v779
        $region100: #{tpu_custom_call.1} parent=75 // pred_fallthru
          _
        %v782 = vld [vmem:[#allocation2] sm:$0xff]
        %v783 = vld [vmem:[%s741] sm:$0x1]
        %v784 = vpack.c.bf16 %v782, %v782
        %v785 = vld [vmem:[%s746] sm:$0xf]
        %v786 = vld [vmem:[%s746 + $0x4] sm:$0xf]
        %v787 = vld [vmem:[%s746 + $0x8] sm:$0xf]
        %v788 = vld [vmem:[%s746 + $0xc] sm:$0xf]
        %v789 = vld [vmem:[%s749] sm:$0x1]
        %v791 = vlaneseq
        %v792 = vshrl.u32 %v791, 7
        %v793 = vsub.s32 0, %v792
        %v794 = vrot.slane %v789, %v793
        %v800 = vunpack.c.l.b16 %v785
        %v801 = vunpack.c.l.b16 %v786
        %v802 = vunpack.c.l.b16 %v787
        %v803 = vunpack.c.l.b16 %v788
        %v804 = vpack.c.b16 %v801, %v800
        %v805 = vpack.c.b16 %v803, %v802
        %vm808 = vcmask 261120
        %v810 = vsel %vm808, %v784, 0
        %812 = vmatprep.subr.bf16.mxu0 0
        %813 = vmatpush1.bf16.msra.mxu0 %v804
        %814 = vmatprep.subr.bf16.mxu0 0
        %815 = vmatpush1.bf16.msra.mxu0 %v805
        %816 = vmatprep.subr.bf16.mxu0 0
        %817 = vmatpush1.bf16.msra.mxu0 0
        %818 = vmatprep.subr.bf16.mxu0 0
        %819 = vmatpush1.bf16.msra.mxu0 0
        %820 = vmatprep.subr.bf16.mxu0 0
        %821 = vmatpush1.bf16.msra.mxu0 0
        %822 = vmatprep.subr.bf16.mxu0 0
        %823 = vmatpush1.bf16.msra.mxu0 0
        %824 = vmatprep.subr.bf16.mxu0 0
        %825 = vmatpush1.bf16.msra.mxu0 0
        %826 = vmatprep.subr.bf16.mxu0 0
        %827 = vmatpush1.bf16.msra.mxu0 0
        %828 = vmatprep.subr.bf16.mxu0 0
        %829 = vmatpush1.bf16.msra.mxu0 0
        %830 = vmatprep.subr.bf16.mxu0 0
        %831 = vmatpush1.bf16.msra.mxu0 0
        %832 = vmatprep.subr.bf16.mxu0 0
        %833 = vmatpush1.bf16.msra.mxu0 0
        %834 = vmatprep.subr.bf16.mxu0 0
        %835 = vmatpush1.bf16.msra.mxu0 0
        %836 = vmatprep.subr.bf16.mxu0 0
        %837 = vmatpush1.bf16.msra.mxu0 0
        %838 = vmatprep.subr.bf16.mxu0 0
        %839 = vmatpush1.bf16.msra.mxu0 0
        %840 = vmatprep.subr.bf16.mxu0 0
        %841 = vmatpush1.bf16.msra.mxu0 0
        %842 = vmatprep.subr.bf16.mxu0 0
        %843 = vmatpush1.bf16.msra.mxu0 0
        %844 = vmatprep.mubr.bf16.mxu0 0
        %845 = vmatmul.mubr.bf16.gmra.mrb[0].mxu0 %v810
        %v846 = vpop.f32.mrb[0].mxu0
        %v847 = vadd.f32 %v794, %v846
        %v848 = vpop.f32.mrb[0].mxu0
        %v849 = vpop.f32.mrb[0].mxu0
        %v850 = vpop.f32.mrb[0].mxu0
        %851 = vdwg.mxu0
        %v852 = vpack.c.bf16 %v847, %v847
        %v854 = vlaneseq
        %v855 = vshrl.u32 %v854, 7
        %v856 = vsub.s32 0, %v855
        %v857 = vrot.slane %v783, %v856
        %860 = vrot.lane.b32.xlu0 %v852, 96
        %v861 = vpop.permute.xlu0 %860
        %vm862 = vcmask 130048
        %v864 = vsel %vm862, %v852, 0
        %v867 = vsel %vm862, %v861, 0
        %869 = vmatprep.subr.bf16.mxu0 0
        %870 = vmatpush1.bf16.xpose.msra.mxu0 %v867
        %871 = vmatprep.subr.bf16.mxu0 0
        %872 = vmatpush1.bf16.xpose.msra.mxu0 0
        %873 = vmatprep.subr.bf16.mxu0 0
        %874 = vmatpush1.bf16.xpose.msra.mxu0 0
        %875 = vmatprep.subr.bf16.mxu0 0
        %876 = vmatpush1.bf16.xpose.msra.mxu0 0
        %877 = vmatprep.subr.bf16.mxu0 0
        %878 = vmatpush1.bf16.xpose.msra.mxu0 0
        %879 = vmatprep.subr.bf16.mxu0 0
        %880 = vmatpush1.bf16.xpose.msra.mxu0 0
        %881 = vmatprep.subr.bf16.mxu0 0
        %882 = vmatpush1.bf16.xpose.msra.mxu0 0
        %883 = vmatprep.subr.bf16.mxu0 0
        %884 = vmatpush1.bf16.xpose.msra.mxu0 0
        %885 = vmatprep.subr.bf16.mxu0 0
        %886 = vmatpush1.bf16.xpose.msra.mxu0 0
        %887 = vmatprep.subr.bf16.mxu0 0
        %888 = vmatpush1.bf16.xpose.msra.mxu0 0
        %889 = vmatprep.subr.bf16.mxu0 0
        %890 = vmatpush1.bf16.xpose.msra.mxu0 0
        %891 = vmatprep.subr.bf16.mxu0 0
        %892 = vmatpush1.bf16.xpose.msra.mxu0 0
        %893 = vmatprep.subr.bf16.mxu0 0
        %894 = vmatpush1.bf16.xpose.msra.mxu0 0
        %895 = vmatprep.subr.bf16.mxu0 0
        %896 = vmatpush1.bf16.xpose.msra.mxu0 0
        %897 = vmatprep.subr.bf16.mxu0 0
        %898 = vmatpush1.bf16.xpose.msra.mxu0 0
        %899 = vmatprep.subr.bf16.mxu0 0
        %900 = vmatpush1.bf16.xpose.msra.mxu0 0
        %901 = vmatprep.mubr.bf16.mxu0 0
        %902 = vmatmul.mubr.bf16.gmra.mrb[0].mxu0 %v864
        %v903 = vpop.f32.mrb[0].mxu0
        %v904 = vadd.f32 %v857, %v903
        %v905 = vpop.f32.mrb[0].mxu0
        %v906 = vpop.f32.mrb[0].mxu0
        %v907 = vpop.f32.mrb[0].mxu0
        %908 = vdwg.mxu0
        %vm909 = vcmask 64512
        %v910 = vsel %vm909, %v904, -inf
        %911 = vmax.xlane.f32.xlu0 %v910
        %v912 = vpop.xlane.xlu0 %911
        %v913 = vsub.f32 %v904, %v912
        %v914 = vmul.f32 %v913, 1.442695
        %v915 = vpow.pop %v914
        %v916 = vsel %vm909, %v915, 0.0
        %917 = vadd.xlane.f32.xlu0 %v916
        %v918 = vpop.xlane.xlu0 %917
        %v919 = vrcp.pop %v918
        %v920 = vmul.f32 %v915, %v919
        %v921 = vpack.c.bf16 %v920, %v920
        %922 = vrot.lane.b32.xlu0 %v852, 64
        %v923 = vpop.permute.xlu0 %922
        %v925 = vsel %vm909, %v921, 0
        %vm927 = vcmask 1043456
        %v929 = vsel %vm927, %v923, 0
        %931 = vmatprep.subr.bf16.mxu0 0
        %932 = vmatpush1.bf16.msra.mxu0 %v929
        %933 = vmatprep.subr.bf16.mxu0 0
        %934 = vmatpush1.bf16.msra.mxu0 0
        %935 = vmatprep.subr.bf16.mxu0 0
        %936 = vmatpush1.bf16.msra.mxu0 0
        %937 = vmatprep.subr.bf16.mxu0 0
        %938 = vmatpush1.bf16.msra.mxu0 0
        %939 = vmatprep.subr.bf16.mxu0 0
        %940 = vmatpush1.bf16.msra.mxu0 0
        %941 = vmatprep.subr.bf16.mxu0 0
        %942 = vmatpush1.bf16.msra.mxu0 0
        %943 = vmatprep.subr.bf16.mxu0 0
        %944 = vmatpush1.bf16.msra.mxu0 0
        %945 = vmatprep.subr.bf16.mxu0 0
        %946 = vmatpush1.bf16.msra.mxu0 0
        %947 = vmatprep.subr.bf16.mxu0 0
        %948 = vmatpush1.bf16.msra.mxu0 0
        %949 = vmatprep.subr.bf16.mxu0 0
        %950 = vmatpush1.bf16.msra.mxu0 0
        %951 = vmatprep.subr.bf16.mxu0 0
        %952 = vmatpush1.bf16.msra.mxu0 0
        %953 = vmatprep.subr.bf16.mxu0 0
        %954 = vmatpush1.bf16.msra.mxu0 0
        %955 = vmatprep.subr.bf16.mxu0 0
        %956 = vmatpush1.bf16.msra.mxu0 0
        %957 = vmatprep.subr.bf16.mxu0 0
        %958 = vmatpush1.bf16.msra.mxu0 0
        %959 = vmatprep.subr.bf16.mxu0 0
        %960 = vmatpush1.bf16.msra.mxu0 0
        %961 = vmatprep.subr.bf16.mxu0 0
        %962 = vmatpush1.bf16.msra.mxu0 0
        %963 = vmatprep.mubr.bf16.mxu0 0
        %964 = vmatmul.mubr.bf16.gmra.mrb[0].mxu0 %v925
        %v965 = vpop.f32.mrb[0].mxu0
        %v966 = vadd.f32 0.0, %v965
        %v967 = vpop.f32.mrb[0].mxu0
        %v968 = vpop.f32.mrb[0].mxu0
        %v969 = vpop.f32.mrb[0].mxu0
        %970 = vdwg.mxu0
        %971 = vrot.lane.b32.xlu0 %v852, 112
        %v972 = vpop.permute.xlu0 %971
        %973 = vrot.lane.b32.xlu0 %v852, 80
        %v974 = vpop.permute.xlu0 %973
        %v976 = vsel %vm862, %v972, 0
        %v979 = vsel %vm862, %v974, 0
        %981 = vmatprep.subr.bf16.mxu0 0
        %982 = vmatpush1.bf16.xpose.msra.mxu0 %v979
        %983 = vmatprep.subr.bf16.mxu0 0
        %984 = vmatpush1.bf16.xpose.msra.mxu0 0
        %985 = vmatprep.subr.bf16.mxu0 0
        %986 = vmatpush1.bf16.xpose.msra.mxu0 0
        %987 = vmatprep.subr.bf16.mxu0 0
        %988 = vmatpush1.bf16.xpose.msra.mxu0 0
        %989 = vmatprep.subr.bf16.mxu0 0
        %990 = vmatpush1.bf16.xpose.msra.mxu0 0
        %991 = vmatprep.subr.bf16.mxu0 0
        %992 = vmatpush1.bf16.xpose.msra.mxu0 0
        %993 = vmatprep.subr.bf16.mxu0 0
        %994 = vmatpush1.bf16.xpose.msra.mxu0 0
        %995 = vmatprep.subr.bf16.mxu0 0
        %996 = vmatpush1.bf16.xpose.msra.mxu0 0
        %997 = vmatprep.subr.bf16.mxu0 0
        %998 = vmatpush1.bf16.xpose.msra.mxu0 0
        %999 = vmatprep.subr.bf16.mxu0 0
        %1000 = vmatpush1.bf16.xpose.msra.mxu0 0
        %1001 = vmatprep.subr.bf16.mxu0 0
        %1002 = vmatpush1.bf16.xpose.msra.mxu0 0
        %1003 = vmatprep.subr.bf16.mxu0 0
        %1004 = vmatpush1.bf16.xpose.msra.mxu0 0
        %1005 = vmatprep.subr.bf16.mxu0 0
        %1006 = vmatpush1.bf16.xpose.msra.mxu0 0
        %1007 = vmatprep.subr.bf16.mxu0 0
        %1008 = vmatpush1.bf16.xpose.msra.mxu0 0
        %1009 = vmatprep.subr.bf16.mxu0 0
        %1010 = vmatpush1.bf16.xpose.msra.mxu0 0
        %1011 = vmatprep.subr.bf16.mxu0 0
        %1012 = vmatpush1.bf16.xpose.msra.mxu0 0
        %1013 = vmatprep.mubr.bf16.mxu0 0
        %1014 = vmatmul.mubr.bf16.gmra.mrb[0].mxu0 %v976
        %v1015 = vpop.f32.mrb[0].mxu0
        %v1016 = vadd.f32 %v857, %v1015
        %v1017 = vpop.f32.mrb[0].mxu0
        %v1018 = vpop.f32.mrb[0].mxu0
        %v1019 = vpop.f32.mrb[0].mxu0
        %1020 = vdwg.mxu0
        %v1021 = vsel %vm909, %v1016, -inf
        %1022 = vmax.xlane.f32.xlu0 %v1021
        %v1023 = vpop.xlane.xlu0 %1022
        %v1024 = vsub.f32 %v1016, %v1023
        %v1025 = vmul.f32 %v1024, 1.442695
        %v1026 = vpow.pop %v1025
        %v1027 = vsel %vm909, %v1026, 0.0
        %1028 = vadd.xlane.f32.xlu0 %v1027
        %v1029 = vpop.xlane.xlu0 %1028
        %v1030 = vrcp.pop %v1029
        %v1031 = vmul.f32 %v1026, %v1030
        %v1032 = vpack.c.bf16 %v1031, %v1031
        %1033 = vrot.lane.b32.xlu0 %v852, 48
        %v1034 = vpop.permute.xlu0 %1033
        %v1036 = vsel %vm909, %v1032, 0
        %v1039 = vsel %vm927, %v1034, 0
        %1041 = vmatprep.subr.bf16.mxu0 0
        %1042 = vmatpush1.bf16.msra.mxu0 %v1039
        %1043 = vmatprep.subr.bf16.mxu0 0
        %1044 = vmatpush1.bf16.msra.mxu0 0
        %1045 = vmatprep.subr.bf16.mxu0 0
        %1046 = vmatpush1.bf16.msra.mxu0 0
        %1047 = vmatprep.subr.bf16.mxu0 0
        %1048 = vmatpush1.bf16.msra.mxu0 0
        %1049 = vmatprep.subr.bf16.mxu0 0
        %1050 = vmatpush1.bf16.msra.mxu0 0
        %1051 = vmatprep.subr.bf16.mxu0 0
        %1052 = vmatpush1.bf16.msra.mxu0 0
        %1053 = vmatprep.subr.bf16.mxu0 0
        %1054 = vmatpush1.bf16.msra.mxu0 0
        %1055 = vmatprep.subr.bf16.mxu0 0
        %1056 = vmatpush1.bf16.msra.mxu0 0
        %1057 = vmatprep.subr.bf16.mxu0 0
        %1058 = vmatpush1.bf16.msra.mxu0 0
        %1059 = vmatprep.subr.bf16.mxu0 0
        %1060 = vmatpush1.bf16.msra.mxu0 0
        %1061 = vmatprep.subr.bf16.mxu0 0
        %1062 = vmatpush1.bf16.msra.mxu0 0
        %1063 = vmatprep.subr.bf16.mxu0 0
        %1064 = vmatpush1.bf16.msra.mxu0 0
        %1065 = vmatprep.subr.bf16.mxu0 0
        %1066 = vmatpush1.bf16.msra.mxu0 0
        %1067 = vmatprep.subr.bf16.mxu0 0
        %1068 = vmatpush1.bf16.msra.mxu0 0
        %1069 = vmatprep.subr.bf16.mxu0 0
        %1070 = vmatpush1.bf16.msra.mxu0 0
        %1071 = vmatprep.subr.bf16.mxu0 0
        %1072 = vmatpush1.bf16.msra.mxu0 0
        %1073 = vmatprep.mubr.bf16.mxu0 0
        %1074 = vmatmul.mubr.bf16.gmra.mrb[0].mxu0 %v1036
        %v1075 = vpop.f32.mrb[0].mxu0
        %v1076 = vadd.f32 0.0, %v1075
        %v1077 = vpop.f32.mrb[0].mxu0
        %v1078 = vpop.f32.mrb[0].mxu0
        %v1079 = vpop.f32.mrb[0].mxu0
        %1080 = vdwg.mxu0
        %1082 = vrot.lane.b32.xlu0 %v1076, 16
        %v1083 = vpop.permute.xlu0 %1082
        %v1085 = vsel %vm862, %v966, %v1083
        %v1086 = vpack.c.bf16 %v1085, %v1085
        %v1087 = vld [vmem:[%s754] sm:$0xf]
        %v1088 = vld [vmem:[%s754 + $0x4] sm:$0xf]
        %v1089 = vld [vmem:[%s754 + $0x8] sm:$0xf]
        %v1090 = vld [vmem:[%s754 + $0xc] sm:$0xf]
        %v1091 = vld [vmem:[%s620] sm:$0x1]
        %v1093 = vlaneseq
        %v1094 = vshrl.u32 %v1093, 7
        %v1095 = vsub.s32 0, %v1094
        %v1096 = vrot.slane %v1091, %v1095
        %v1102 = vunpack.c.l.b16 %v1087
        %v1103 = vunpack.c.l.b16 %v1088
        %v1104 = vunpack.c.l.b16 %v1089
        %v1105 = vunpack.c.l.b16 %v1090
        %v1106 = vpack.c.b16 %v1103, %v1102
        %v1107 = vpack.c.b16 %v1105, %v1104
        %v1111 = vsel %vm808, %v1086, 0
        %1113 = vmatprep.subr.bf16.mxu0 0
        %1114 = vmatpush1.bf16.msra.mxu0 %v1106
        %1115 = vmatprep.subr.bf16.mxu0 0
        %1116 = vmatpush1.bf16.msra.mxu0 %v1107
        %1117 = vmatprep.subr.bf16.mxu0 0
        %1118 = vmatpush1.bf16.msra.mxu0 0
        %1119 = vmatprep.subr.bf16.mxu0 0
        %1120 = vmatpush1.bf16.msra.mxu0 0
        %1121 = vmatprep.subr.bf16.mxu0 0
        %1122 = vmatpush1.bf16.msra.mxu0 0
        %1123 = vmatprep.subr.bf16.mxu0 0
        %1124 = vmatpush1.bf16.msra.mxu0 0
        %1125 = vmatprep.subr.bf16.mxu0 0
        %1126 = vmatpush1.bf16.msra.mxu0 0
        %1127 = vmatprep.subr.bf16.mxu0 0
        %1128 = vmatpush1.bf16.msra.mxu0 0
        %1129 = vmatprep.subr.bf16.mxu0 0
        %1130 = vmatpush1.bf16.msra.mxu0 0
        %1131 = vmatprep.subr.bf16.mxu0 0
        %1132 = vmatpush1.bf16.msra.mxu0 0
        %1133 = vmatprep.subr.bf16.mxu0 0
        %1134 = vmatpush1.bf16.msra.mxu0 0
        %1135 = vmatprep.subr.bf16.mxu0 0
        %1136 = vmatpush1.bf16.msra.mxu0 0
        %1137 = vmatprep.subr.bf16.mxu0 0
        %1138 = vmatpush1.bf16.msra.mxu0 0
        %1139 = vmatprep.subr.bf16.mxu0 0
        %1140 = vmatpush1.bf16.msra.mxu0 0
        %1141 = vmatprep.subr.bf16.mxu0 0
        %1142 = vmatpush1.bf16.msra.mxu0 0
        %1143 = vmatprep.subr.bf16.mxu0 0
        %1144 = vmatpush1.bf16.msra.mxu0 0
        %1145 = vmatprep.mubr.bf16.mxu0 0
        %1146 = vmatmul.mubr.bf16.gmra.mrb[0].mxu0 %v1111
        %v1147 = vpop.f32.mrb[0].mxu0
        %v1148 = vadd.f32 %v1096, %v1147
        %v1149 = vpop.f32.mrb[0].mxu0
        %v1150 = vpop.f32.mrb[0].mxu0
        %v1151 = vpop.f32.mrb[0].mxu0
        %1152 = vdwg.mxu0
        %v1153 = vadd.f32 %v782, %v1148
        %v1154 = vsel %vm808, %v1153, 0.0
        %1155 = vadd.xlane.f32.xlu0 %v1154
        %v1156 = vpop.xlane.xlu0 %1155
        %v1157 = vrcp.pop 32.0
        %v1158 = vmul.f32 %v1156, %v1157
        %v1159 = vmul.f32 %v1153, %v1153
        %v1160 = vsel %vm808, %v1159, 0.0
        %1161 = vadd.xlane.f32.xlu0 %v1160
        %v1162 = vpop.xlane.xlu0 %1161
        %v1163 = vmul.f32 %v1162, %v1157
        %v1164 = vmul.f32 %v1158, %v1158
        %v1165 = vsub.f32 %v1163, %v1164
        %v1166 = vmax.f32 %v1165, 0.0
        %v1167 = vadd.f32 %v1166, 1e-05
        %v1168 = vrsqrt.pop %v1167
        %v1169 = vsub.f32 %v1153, %v1158
        %v1170 = vmul.f32 %v1169, %v1168
        %v1171 = vld [vmem:[%s628] sm:$0x1]
        %v1173 = vlaneseq
        %v1174 = vshrl.u32 %v1173, 7
        %v1175 = vsub.s32 0, %v1174
        %v1176 = vrot.slane %v1171, %v1175
        %v1178 = vmul.f32 %v1170, %v1176
        %v1179 = vld [vmem:[%s636] sm:$0x1]
        %v1181 = vlaneseq
        %v1182 = vshrl.u32 %v1181, 7
        %v1183 = vsub.s32 0, %v1182
        %v1184 = vrot.slane %v1179, %v1183
        %v1186 = vadd.f32 %v1178, %v1184
        %v1187 = vpack.c.bf16 %v1186, %v1186
        %v1188 = vld [vmem:[%s759] sm:$0xf]
        %v1189 = vld [vmem:[%s759 + $0x4] sm:$0xf]
        %v1190 = vld [vmem:[%s759 + $0x8] sm:$0xf]
        %v1191 = vld [vmem:[%s759 + $0xc] sm:$0xf]
        %v1192 = vld [vmem:[%s644] sm:$0x1]
        %v1194 = vlaneseq
        %v1195 = vshrl.u32 %v1194, 7
        %v1196 = vsub.s32 0, %v1195
        %v1197 = vrot.slane %v1192, %v1196
        %v1203 = vunpack.c.l.b16 %v1188
        %v1204 = vunpack.c.l.b16 %v1189
        %v1205 = vunpack.c.l.b16 %v1190
        %v1206 = vunpack.c.l.b16 %v1191
        %v1207 = vpack.c.b16 %v1204, %v1203
        %v1208 = vpack.c.b16 %v1206, %v1205
        %v1212 = vsel %vm808, %v1187, 0
        %1214 = vmatprep.subr.bf16.mxu0 0
        %1215 = vmatpush1.bf16.msra.mxu0 %v1207
        %1216 = vmatprep.subr.bf16.mxu0 0
        %1217 = vmatpush1.bf16.msra.mxu0 %v1208
        %1218 = vmatprep.subr.bf16.mxu0 0
        %1219 = vmatpush1.bf16.msra.mxu0 0
        %1220 = vmatprep.subr.bf16.mxu0 0
        %1221 = vmatpush1.bf16.msra.mxu0 0
        %1222 = vmatprep.subr.bf16.mxu0 0
        %1223 = vmatpush1.bf16.msra.mxu0 0
        %1224 = vmatprep.subr.bf16.mxu0 0
        %1225 = vmatpush1.bf16.msra.mxu0 0
        %1226 = vmatprep.subr.bf16.mxu0 0
        %1227 = vmatpush1.bf16.msra.mxu0 0
        %1228 = vmatprep.subr.bf16.mxu0 0
        %1229 = vmatpush1.bf16.msra.mxu0 0
        %1230 = vmatprep.subr.bf16.mxu0 0
        %1231 = vmatpush1.bf16.msra.mxu0 0
        %1232 = vmatprep.subr.bf16.mxu0 0
        %1233 = vmatpush1.bf16.msra.mxu0 0
        %1234 = vmatprep.subr.bf16.mxu0 0
        %1235 = vmatpush1.bf16.msra.mxu0 0
        %1236 = vmatprep.subr.bf16.mxu0 0
        %1237 = vmatpush1.bf16.msra.mxu0 0
        %1238 = vmatprep.subr.bf16.mxu0 0
        %1239 = vmatpush1.bf16.msra.mxu0 0
        %1240 = vmatprep.subr.bf16.mxu0 0
        %1241 = vmatpush1.bf16.msra.mxu0 0
        %1242 = vmatprep.subr.bf16.mxu0 0
        %1243 = vmatpush1.bf16.msra.mxu0 0
        %1244 = vmatprep.subr.bf16.mxu0 0
        %1245 = vmatpush1.bf16.msra.mxu0 0
        %1246 = vmatprep.mubr.bf16.mxu0 0
        %1247 = vmatmul.mubr.bf16.gmra.mrb[0].mxu0 %v1212
        %v1248 = vpop.f32.mrb[0].mxu0
        %v1249 = vadd.f32 %v1197, %v1248
        %v1250 = vpop.f32.mrb[0].mxu0
        %v1251 = vpop.f32.mrb[0].mxu0
        %v1252 = vpop.f32.mrb[0].mxu0
        %1253 = vdwg.mxu0
        %v1254 = vmax.f32 %v1249, 0.0
        %v1255 = vpack.c.bf16 %v1254, %v1254
        %v1256 = vld [vmem:[%s764] sm:$0xf]
        %v1257 = vld [vmem:[%s764 + $0x4] sm:$0xf]
        %v1258 = vld [vmem:[%s764 + $0x8] sm:$0xf]
        %v1259 = vld [vmem:[%s764 + $0xc] sm:$0xf]
        %v1260 = vld [vmem:[%s764 + $0x10] sm:$0xf]
        %v1261 = vld [vmem:[%s764 + $0x14] sm:$0xf]
        %v1262 = vld [vmem:[%s764 + $0x18] sm:$0xf]
        %v1263 = vld [vmem:[%s764 + $0x1c] sm:$0xf]
        %v1264 = vld [vmem:[%s767] sm:$0x1]
        %v1266 = vlaneseq
        %v1267 = vshrl.u32 %v1266, 7
        %v1268 = vsub.s32 0, %v1267
        %v1269 = vrot.slane %v1264, %v1268
        %v1279 = vunpack.c.l.b16 %v1256
        %v1280 = vunpack.c.l.b16 %v1257
        %v1281 = vunpack.c.l.b16 %v1258
        %v1282 = vunpack.c.l.b16 %v1259
        %v1283 = vunpack.c.l.b16 %v1260
        %v1284 = vunpack.c.l.b16 %v1261
        %v1285 = vunpack.c.l.b16 %v1262
        %v1286 = vunpack.c.l.b16 %v1263
        %v1287 = vpack.c.b16 %v1280, %v1279
        %v1288 = vpack.c.b16 %v1282, %v1281
        %v1289 = vpack.c.b16 %v1284, %v1283
        %v1290 = vpack.c.b16 %v1286, %v1285
        %vm1295 = vcmask 523264
        %v1297 = vsel %vm1295, %v1255, 0
        %1299 = vmatprep.subr.bf16.mxu0 0
        %1300 = vmatpush1.bf16.msra.mxu0 %v1287
        %1301 = vmatprep.subr.bf16.mxu0 0
        %1302 = vmatpush1.bf16.msra.mxu0 %v1288
        %1303 = vmatprep.subr.bf16.mxu0 0
        %1304 = vmatpush1.bf16.msra.mxu0 %v1289
        %1305 = vmatprep.subr.bf16.mxu0 0
        %1306 = vmatpush1.bf16.msra.mxu0 %v1290
        %1307 = vmatprep.subr.bf16.mxu0 0
        %1308 = vmatpush1.bf16.msra.mxu0 0
        %1309 = vmatprep.subr.bf16.mxu0 0
        %1310 = vmatpush1.bf16.msra.mxu0 0
        %1311 = vmatprep.subr.bf16.mxu0 0
        %1312 = vmatpush1.bf16.msra.mxu0 0
        %1313 = vmatprep.subr.bf16.mxu0 0
        %1314 = vmatpush1.bf16.msra.mxu0 0
        %1315 = vmatprep.subr.bf16.mxu0 0
        %1316 = vmatpush1.bf16.msra.mxu0 0
        %1317 = vmatprep.subr.bf16.mxu0 0
        %1318 = vmatpush1.bf16.msra.mxu0 0
        %1319 = vmatprep.subr.bf16.mxu0 0
        %1320 = vmatpush1.bf16.msra.mxu0 0
        %1321 = vmatprep.subr.bf16.mxu0 0
        %1322 = vmatpush1.bf16.msra.mxu0 0
        %1323 = vmatprep.subr.bf16.mxu0 0
        %1324 = vmatpush1.bf16.msra.mxu0 0
        %1325 = vmatprep.subr.bf16.mxu0 0
        %1326 = vmatpush1.bf16.msra.mxu0 0
        %1327 = vmatprep.subr.bf16.mxu0 0
        %1328 = vmatpush1.bf16.msra.mxu0 0
        %1329 = vmatprep.subr.bf16.mxu0 0
        %1330 = vmatpush1.bf16.msra.mxu0 0
        %1331 = vmatprep.mubr.bf16.mxu0 0
        %1332 = vmatmul.mubr.bf16.gmra.mrb[0].mxu0 %v1297
        %v1333 = vpop.f32.mrb[0].mxu0
        %v1334 = vadd.f32 %v1269, %v1333
        %v1335 = vpop.f32.mrb[0].mxu0
        %v1336 = vpop.f32.mrb[0].mxu0
        %v1337 = vpop.f32.mrb[0].mxu0
        %1338 = vdwg.mxu0
        %v1339 = vadd.f32 %v1186, %v1334
        %v1340 = vsel %vm808, %v1339, 0.0
        %1341 = vadd.xlane.f32.xlu0 %v1340
        %v1342 = vpop.xlane.xlu0 %1341
        %v1343 = vmul.f32 %v1342, %v1157
        %v1344 = vmul.f32 %v1339, %v1339
        %v1345 = vsel %vm808, %v1344, 0.0
        %1346 = vadd.xlane.f32.xlu0 %v1345
        %v1347 = vpop.xlane.xlu0 %1346
        %v1348 = vmul.f32 %v1347, %v1157
        %v1349 = vmul.f32 %v1343, %v1343
        %v1350 = vsub.f32 %v1348, %v1349
        %v1351 = vmax.f32 %v1350, 0.0
        %v1352 = vadd.f32 %v1351, 1e-05
        %v1353 = vrsqrt.pop %v1352
        %v1354 = vsub.f32 %v1339, %v1343
        %v1355 = vmul.f32 %v1354, %v1353
        %v1356 = vld [vmem:[%s770] sm:$0x1]
        %v1358 = vlaneseq
        %v1359 = vshrl.u32 %v1358, 7
        %v1360 = vsub.s32 0, %v1359
        %v1361 = vrot.slane %v1356, %v1360
        %v1363 = vmul.f32 %v1355, %v1361
        %v1364 = vld [vmem:[%s773] sm:$0x1]
        %v1366 = vlaneseq
        %v1367 = vshrl.u32 %v1366, 7
        %v1368 = vsub.s32 0, %v1367
        %v1369 = vrot.slane %v1364, %v1368
        %v1371 = vadd.f32 %v1363, %v1369
        %1372 = vst.msk [vmem:[#allocation2] sm:$0xff] %vm808, %v1371
        %p1373 = scmp.eq.s32.totalorder %s42, 1
        // Predicated region
        $region101: #{tpu_custom_call.1} parent=75 // pred_check
          %p1374 = pneg %p1373
        $region102: #{tpu_custom_call.1} parent=75 // pred_check_branch
          %1376 = sbr.rel (%p1374) target = $region104
        $region103: #{tpu_custom_call.1} parent=75 // pred_region
          %vm1377 = vcmp.eq.f32.partialorder %v783, 0.0
          %v1378 = vsel %vm1377, 1, 0
          %v1379 = vcvt.s32.f32 %v1378
          %v1380 = vlaneseq
          %v1381 = vshrl.u32 %v1380, 7
          %v1382 = vsub.s32 0, %v1381
          %v1383 = vrot.slane %v1379, %v1382
          %1385 = vbcast.lane.b32.xlu0 %v1383, 256
          %v1386 = vpop.permute.xlu0 %1385
          %v1387 = vmul.f32 %v1371, %v1386
          %vm1388 = vcmask 57344
          %v1389 = vsel %vm1388, %v1379, 0.0
          %1390 = vadd.xlane.f32.xlu0 %v1389
          %v1391 = vpop.xlane.xlu0 %1390
          %v1392 = vmax.f32 %v1391, 1e-07
          %v1393 = vsel %vm808, %v1387, 0.0
          %v1394 = vrot.slane %v1393, 4
          %v1395 = vadd.f32 %v1393, %v1394
          %v1396 = vrot.slane %v1395, 2
          %v1397 = vadd.f32 %v1395, %v1396
          %v1398 = vrot.slane %v1397, 1
          %v1399 = vadd.f32 %v1397, %v1398
          %v1400 = vrcp.pop %v1392
          %v1401 = vmul.f32 %v1399, %v1400
          %vm1402 = vcmask 253952
          %1403 = vst.msk [vmem:[%s738] sm:$0x1] %vm1402, %v1401
        $region104: #{tpu_custom_call.1} parent=75 // pred_fallthru
          _
        %s1404 = sand.u32 %s421, 1
        %s1405 = scalar_lea.sflag [#allocation5], %s1404
        %s1406 = sand.u32 %s421, 1
        %s1407 = scalar_lea.vmem [#allocation12], %s1406
        // Predicated region
        $region105: #{tpu_custom_call.1} parent=75 // pred_check
          %p1408 = pneg %p431
        $region106: #{tpu_custom_call.1} parent=75 // pred_check_branch
          %1410 = sbr.rel (%p1408) target = $region108
        $region107: #{tpu_custom_call.1} parent=75 // pred_region
          %s1412 = ssub.s32 16, 16
          %1413 = vsyncadd %s1405, %s1412
          %s1414 = smul.addr %s41, 16
          %s1415 = scalar_lea.hbm %s14, %s1414
          %s1417 = sshll.u32 %s1407, 4
          %s1418 = int_to_ptr.vmem [resolvable:$true] %s1417
          %1420 = dma.vmem_to_hbm [thread:$0]  %s1418, 16, %s1415, %s1405
        $region108: #{tpu_custom_call.1} parent=75 // pred_fallthru
          _
      $region76: #{tpu_custom_call.1} parent=5 // pred_fallthru
        _
      %p1421 = scmp.le.s32.totalorder 2, %s32
      // Predicated region
      $region109: #{tpu_custom_call.1} parent=5 // pred_check
        %p1422 = pneg %p1421
      $region110: #{tpu_custom_call.1} parent=5 // pred_check_branch
        %1424 = sbr.rel (%p1422) target = $region112
      $region111: #{tpu_custom_call.1} parent=5 // pred_region
        %s1425 = ssub.s32 %s32, 2
        // Predicated region
        $region113: #{tpu_custom_call.1} parent=111 // pred_check
          %p1426 = pneg %p437
        $region114: #{tpu_custom_call.1} parent=111 // pred_check_branch
          %1428 = sbr.rel (%p1426) target = $region116
        $region115: #{tpu_custom_call.1} parent=111 // pred_region
          %s1429 = sand.u32 %s422, 1
          %s1430 = scalar_lea.sflag [#allocation5], %s1429
          %s1431 = sand.u32 %s422, 1
          %s1432 = scalar_lea.vmem [#allocation12], %s1431
          %1433 = dma.done %s1430, 16
        $region116: #{tpu_custom_call.1} parent=111 // pred_fallthru
          _
      $region112: #{tpu_custom_call.1} parent=5 // pred_fallthru
        _
    $region6: #{tpu_custom_call.1} parent=1 // loop_footer
      %s36 = sadd.s32 1, %s32
    $region7: #{tpu_custom_call.1} parent=1 // loop_footer_branch
      %31 = sbr.rel target = $region3
    $region8: #{tpu_custom_call.1} parent=1 // loop_exit
      _
    %1434 = vsyncpa [#allocation4], 1
    %s1435 = scalar_lea.sflag [#allocation4], 1
    %1436 = vsyncpa %s1435, 1
    %1437 = vsyncpa [#allocation7], 1
    %s1438 = scalar_lea.sflag [#allocation7], 1
    %1439 = vsyncpa %s1438, 1
    %1440 = vsyncpa [#allocation10], 1
    %s1441 = scalar_lea.sflag [#allocation10], 1
    %1442 = vsyncpa %s1441, 1
    %1443 = vsyncpa [#allocation5], 1
    %s1444 = scalar_lea.sflag [#allocation5], 1
    %1445 = vsyncpa %s1444, 1

</llo_original>
